<compile_context>
chip_gen: v7x
topology: tpu7x:2x2x1
jax: 0.10.0
libtpu: 0.0.40
codegen_flags: <defaults>
</compile_context>

<pallas_src>
import functools

import jax
import jax.numpy as jnp
from jax.experimental import pallas as pl
from jax.experimental.pallas import tpu as pltpu

NNET_HIDDEN = (128, 256, 128)          # hidden layer sizes of the repo's NNet MLP
MATMUL_DTYPE = jnp.bfloat16            # MXU operand dtype (f32 accumulation everywhere)
VMEM_LIMIT_BYTES = 32 * 1024 * 1024    # explicit scoped-VMEM budget (safe on v5e/v6e/v7x)


def _round_up(x, m):
    return ((x + m - 1) // m) * m


# ---------------------------------------------------------------------------
# Kernel 1: fused MLP — all layers in one kernel, weights VMEM-resident,
#           row-tiled grid. Used for the (layer-invariant) message edge NNet.
# ---------------------------------------------------------------------------
def _fused_mlp_kernel(*refs, n_lin, final_act, matmul_dtype):
    # refs = (x, w0, b0, ..., w_{L-1}, b_{L-1}, out)
    x_ref, o_ref = refs[0], refs[-1]
    wb = refs[1:-1]
    x = x_ref[...]
    for l in range(n_lin):
        w = wb[2 * l][...]
        b = wb[2 * l + 1][...]
        x = jnp.dot(x.astype(matmul_dtype), w.astype(matmul_dtype),
                    preferred_element_type=jnp.float32) + b
        if l < n_lin - 1:
            x = jnp.maximum(x, 0.0)
    if final_act == "sigmoid":
        x = jax.nn.sigmoid(x)
    o_ref[...] = x.astype(o_ref.dtype)


def fused_mlp(x, params, final_act="none", *, block_rows=512,
              matmul_dtype=MATMUL_DTYPE):
    R, K = x.shape
    NO = params[-1][0].shape[1]
    br = min(block_rows, _round_up(R, 8))
    r_pad = _round_up(R, br)
    if r_pad != R:                                    # tail block: pad + slice (no `else R` fallback)
        x = jnp.pad(x, ((0, r_pad - R), (0, 0)))

    in_specs = [pl.BlockSpec((br, K), lambda i: (i, 0))]
    flat_wb = []
    for (w, b) in params:
        in_specs.append(pl.BlockSpec(w.shape, lambda i: (0, 0)))       # weights resident
        in_specs.append(pl.BlockSpec((1, b.shape[0]), lambda i: (0, 0)))
        flat_wb += [w, b.reshape(1, -1)]

    out = pl.pallas_call(
        functools.partial(_fused_mlp_kernel, n_lin=len(params),
                          final_act=final_act, matmul_dtype=matmul_dtype),
        out_shape=jax.ShapeDtypeStruct((r_pad, NO), x.dtype),
        grid_spec=pltpu.PrefetchScalarGridSpec(
            num_scalar_prefetch=0,
            grid=(r_pad // br,),
            in_specs=in_specs,
            out_specs=pl.BlockSpec((br, NO), lambda i: (i, 0)),
        ),
        compiler_params=pltpu.CompilerParams(
            dimension_semantics=("parallel",),
            vmem_limit_bytes=VMEM_LIMIT_BYTES),
    )(x, *flat_wb)
    return out[:R]


# ---------------------------------------------------------------------------
# Kernel 2: fused propagation layer (per graph): message + aggregation + GRU.
#   eoq[b, i, j, m, p] already has the torch expand/view quirk folded in, so
#   message is:  m[i, j, mm] = sum_p eoq[i, j, mm, p] * h[i, p]
#   aggregation: m_rows[j, :] = sum_i g[i, j] * m[i, j, :]
#   GRU step:    h_new = GRU(m_rows, h); masked by node_mask.
# ---------------------------------------------------------------------------
def _layer_kernel(eoq_ref, g_ref, h_ref, mask_ref,
                  wih_ref, bih_ref, whh_ref, bhh_ref, o_ref, *, H, matmul_dtype):
    md = matmul_dtype
    eoq = eoq_ref[0]                     # (N, N, M, H)  [src i, dst j, msg, hidden]
    g = g_ref[0]                         # (N, N)        g[i, j]
    h = h_ref[0]                         # (N, H)
    mask = mask_ref[0]                   # (N, 1)

    # MessageFunction (quirk pre-folded) — stays entirely in VMEM.
    m = jnp.sum(eoq * h[:, None, None, :], axis=-1)      # (N, N, M)
    # Adjacency-weighted aggregation over source nodes i.
    m_rows = jnp.sum(g[:, :, None] * m, axis=0)          # (N, M)

    # GRU single step (UpdateFunction), gate order r | z | n.
    gi = jnp.dot(m_rows.astype(md), wih_ref[...].astype(md),
                 preferred_element_type=jnp.float32) + bih_ref[...]
    gh = jnp.dot(h.astype(md), whh_ref[...].astype(md),
                 preferred_element_type=jnp.float32) + bhh_ref[...]
    r = jax.nn.sigmoid(gi[:, 0:H] + gh[:, 0:H])
    z = jax.nn.sigmoid(gi[:, H:2 * H] + gh[:, H:2 * H])
    n = jnp.tanh(gi[:, 2 * H:3 * H] + r * gh[:, 2 * H:3 * H])
    h_new = (1.0 - z) * n + z * h
    o_ref[0] = (h_new * mask).astype(o_ref.dtype)


def mpnn_layer(eoq, g, h, mask3, gru_params, *, H, matmul_dtype=MATMUL_DTYPE):
    B, N = g.shape[0], g.shape[1]
    M = eoq.shape[3]
    w_ih, w_hh, b_ih, b_hh = gru_params
    return pl.pallas_call(
        functools.partial(_layer_kernel, H=H, matmul_dtype=matmul_dtype),
        out_shape=jax.ShapeDtypeStruct((B, N, H), h.dtype),
        grid_spec=pltpu.PrefetchScalarGridSpec(
            num_scalar_prefetch=0,
            grid=(B,),
            in_specs=[
                pl.BlockSpec((1, N, N, M, H), lambda b: (b, 0, 0, 0, 0)),
                pl.BlockSpec((1, N, N), lambda b: (b, 0, 0)),
                pl.BlockSpec((1, N, H), lambda b: (b, 0, 0)),
                pl.BlockSpec((1, N, 1), lambda b: (b, 0, 0)),
                pl.BlockSpec((M, 3 * H), lambda b: (0, 0)),
                pl.BlockSpec((1, 3 * H), lambda b: (0, 0)),
                pl.BlockSpec((H, 3 * H), lambda b: (0, 0)),
                pl.BlockSpec((1, 3 * H), lambda b: (0, 0)),
            ],
            out_specs=pl.BlockSpec((1, N, H), lambda b: (b, 0, 0)),
        ),
        compiler_params=pltpu.CompilerParams(
            dimension_semantics=("parallel",),
            vmem_limit_bytes=VMEM_LIMIT_BYTES),
    )(eoq, g, h, mask3, w_ih, b_ih.reshape(1, -1), w_hh, b_hh.reshape(1, -1))


# ---------------------------------------------------------------------------
# Kernel 3: fused ReadoutFunction (per graph): both NNets + sigmoid * linear,
#           node mask, and node sum, all in one kernel.
# ---------------------------------------------------------------------------
def _readout_kernel(*refs, n1, n2, H, matmul_dtype):
    # refs = (h0, hT, mask, [n1 x (w, b)], [n2 x (w, b)], out)
    h0 = refs[0][0]                      # (N, H)
    hT = refs[1][0]                      # (N, H)
    mask = refs[2][0]                    # (N, 1)
    o_ref = refs[-1]
    wb = refs[3:-1]
    md = matmul_dtype

    def dot(a, w):
        return jnp.dot(a.astype(md), w.astype(md), preferred_element_type=jnp.float32)

    # NNet1 on cat([h0, hT], 1): first layer split as h0 @ W[:H] + hT @ W[H:]
    # (mathematically identical, avoids an in-kernel lane concat).
    w0 = wb[0][...]
    b0 = wb[1][...]
    x = dot(h0, w0[0:H, :]) + dot(hT, w0[H:2 * H, :]) + b0
    if n1 > 1:
        x = jnp.maximum(x, 0.0)
    for l in range(1, n1):
        w = wb[2 * l][...]
        b = wb[2 * l + 1][...]
        x = dot(x, w) + b
        if l < n1 - 1:
            x = jnp.maximum(x, 0.0)
    s1 = jax.nn.sigmoid(x)                                   # (N, T)

    # NNet2 on hT
    y = hT
    for l in range(n2):
        w = wb[2 * n1 + 2 * l][...]
        b = wb[2 * n1 + 2 * l + 1][...]
        y = dot(y, w) + b
        if l < n2 - 1:
            y = jnp.maximum(y, 0.0)
    s2 = y                                                   # (N, T)

    nn_res = s1 * s2 * mask                                  # (N, T), masked nodes zeroed
    o_ref[0] = jnp.sum(nn_res, axis=0, keepdims=True).astype(o_ref.dtype)   # (1, T)


def readout(h0, hT, mask3, ps1, ps2, *, H, matmul_dtype=MATMUL_DTYPE):
    B, N, _ = h0.shape
    T = ps1[-1][0].shape[1]
    n1, n2 = len(ps1), len(ps2)

    in_specs = [pl.BlockSpec((1, N, H), lambda b: (b, 0, 0)),
                pl.BlockSpec((1, N, H), lambda b: (b, 0, 0)),
                pl.BlockSpec((1, N, 1), lambda b: (b, 0, 0))]
    flat_wb = []
    for (w, b) in list(ps1) + list(ps2):
        in_specs.append(pl.BlockSpec(w.shape, lambda b: (0, 0)))
        in_specs.append(pl.BlockSpec((1, b.shape[0]), lambda b: (0, 0)))
        flat_wb += [w, b.reshape(1, -1)]

    out = pl.pallas_call(
        functools.partial(_readout_kernel, n1=n1, n2=n2, H=H, matmul_dtype=matmul_dtype),
        out_shape=jax.ShapeDtypeStruct((B, 1, T), h0.dtype),
        grid_spec=pltpu.PrefetchScalarGridSpec(
            num_scalar_prefetch=0,
            grid=(B,),
            in_specs=in_specs,
            out_specs=pl.BlockSpec((1, 1, T), lambda b: (b, 0, 0)),
        ),
        compiler_params=pltpu.CompilerParams(
            dimension_semantics=("parallel",),
            vmem_limit_bytes=VMEM_LIMIT_BYTES),
    )(h0, hT, mask3, *flat_wb)
    return out.reshape(B, T)


# ---------------------------------------------------------------------------
# Parameter init (deterministic, synthetic)
# ---------------------------------------------------------------------------
def init_nnet(key, n_in, n_out, scale=0.1):
    sizes = (n_in,) + NNET_HIDDEN + (n_out,)
    params = []
    for i in range(len(sizes) - 1):
        key, kw, kb = jax.random.split(key, 3)
        w = scale * jax.random.normal(kw, (sizes[i], sizes[i + 1]), jnp.float32)
        b = scale * jax.random.normal(kb, (sizes[i + 1],), jnp.float32)
        params.append((w, b))
    return params


def init_gru(key, in_m, out, scale=0.1):
    k1, k2, k3, k4 = jax.random.split(key, 4)
    w_ih = scale * jax.random.normal(k1, (in_m, 3 * out), jnp.float32)   # gates r, z, n
    w_hh = scale * jax.random.normal(k2, (out, 3 * out), jnp.float32)
    b_ih = scale * jax.random.normal(k3, (3 * out,), jnp.float32)
    b_hh = scale * jax.random.normal(k4, (3 * out,), jnp.float32)
    return w_ih, w_hh, b_ih, b_hh


# ---------------------------------------------------------------------------
# Full forward: 1 fused-MLP call + n_layers fused layer calls + 1 fused readout.
# ---------------------------------------------------------------------------
def mpnn_linear_forward(params, g, h_in, e, *, n_layers, H, M,
                        matmul_dtype=MATMUL_DTYPE):
    B, N, F = h_in.shape
    E = e.shape[-1]
    dtype = h_in.dtype

    # pad node features with zeros up to the hidden state size H
    if H == F:
        h0 = h_in
    else:
        h0 = jnp.concatenate([h_in, jnp.zeros((B, N, H - F), dtype)], axis=2)   # (B, N, H)
    node_mask = (jnp.sum(h_in, axis=2) > 0).astype(dtype)                       # (B, N)
    mask3 = node_mask[:, :, None]                                               # (B, N, 1)

    # MessageFunction edge network depends only on e (weight tying) -> compute once,
    # fused over all B*N*N rows with weights held in VMEM.
    edge_out = fused_mlp(e.reshape(B * N * N, E), params["msg_nnet"],
                         matmul_dtype=matmul_dtype)                             # (BNN, M*H)
    eo5 = edge_out.reshape(B, N, N, M, H)

    # Fold the torch `h_w[..., None].expand(BN, H, N).contiguous().view(-1, H)` quirk into
    # the layer-invariant edge tensor (exact 0/1 regrouping, done ONCE):
    #   hw[(b,i,j), c] = h_aux[(b,i), (j*H + c)//N]
    #   => eoq[b,i,j,m,p] = sum_{h : (j*H+h)//N == p} eo[b,i,j,m,h]
    idx = (jnp.arange(N)[:, None] * H + jnp.arange(H)[None, :]) // N            # (N, H)
    sel = (idx[:, :, None] == jnp.arange(H)[None, None, :]).astype(eo5.dtype)   # (N, H, H)
    eoq = jnp.einsum("bijmh,jhp->bijmp", eo5, sel)                              # (B, N, N, M, H)

    h_t = h0
    for _ in range(n_layers):
        h_t = mpnn_layer(eoq, g, h_t, mask3, params["gru"], H=H,
                         matmul_dtype=matmul_dtype)

    # ReadoutFunction (self.linear eye-init never used in forward; regression -> no LogSoftmax)
    return readout(h0, h_t, mask3, params["ro_nnet1"], params["ro_nnet2"], H=H,
                   matmul_dtype=matmul_dtype)


# ---------------------------------------------------------------------------
# Pure-JAX reference, using the ORIGINAL (un-folded) formulation, with the same
# matmul operand dtype so the numerical check stays tight.
# ---------------------------------------------------------------------------
def reference_forward(params, g, h_in, e, n_layers, H, M, matmul_dtype=jnp.float32):
    def mm(x, w):
        return jnp.dot(x.astype(matmul_dtype), w.astype(matmul_dtype),
                       preferred_element_type=jnp.float32)

    def nnet(ps, x, final_act=None):
        for (w, b) in ps[:-1]:
            x = jnp.maximum(mm(x, w) + b, 0.0)
        w, b = ps[-1]
        x = mm(x, w) + b
        return jax.nn.sigmoid(x) if final_act == "sigmoid" else x

    B, N, F = h_in.shape
    E = e.shape[-1]
    h0 = jnp.concatenate([h_in, jnp.zeros((B, N, H - F), h_in.dtype)], 2)
    mask = (jnp.sum(h_in, 2) > 0).astype(h_in.dtype)
    eo = nnet(params["msg_nnet"], e.reshape(-1, E)).reshape(B * N * N, M, H)
    w_ih, w_hh, b_ih, b_hh = params["gru"]
    h_t = h0
    for _ in range(n_layers):
        h_aux = h_t.reshape(B * N, H)
        hwr = jnp.broadcast_to(h_aux[:, :, None], (B * N, H, N)).reshape(B * N * N, H)
        m = jnp.einsum("rmh,rh->rm", eo, hwr).reshape(B, N, N, M)
        magg = jnp.sum(g[..., None] * m, axis=1).reshape(B * N, M)
        gi = mm(magg, w_ih) + b_ih
        gh = mm(h_aux, w_hh) + b_hh
        r = jax.nn.sigmoid(gi[:, :H] + gh[:, :H])
        z = jax.nn.sigmoid(gi[:, H:2 * H] + gh[:, H:2 * H])
        n = jnp.tanh(gi[:, 2 * H:] + r * gh[:, 2 * H:])
        h_new = (1.0 - z) * n + z * h_aux
        h_t = (h_new * mask.reshape(B * N, 1)).reshape(B, N, H)
    h0r, hTr = h0.reshape(B * N, H), h_t.reshape(B * N, H)
    s1 = nnet(params["ro_nnet1"], jnp.concatenate([h0r, hTr], 1), "sigmoid")
    s2 = nnet(params["ro_nnet2"], hTr)
    nn_res = (s1 * s2).reshape(B, N, 10) * mask[:, :, None]
    return jnp.sum(nn_res, axis=1)


if __name__ == "__main__":
    # small shapes consistent with MPNN_Linear(in_n=[4, 4], hidden_state_size=16,
    #                                          message_size=16, n_layers=2, l_target=10)
    B, N = 2, 8
    F_node, E_edge = 4, 4
    H, M = 16, 16
    n_layers = 2

    key = jax.random.PRNGKey(0)
    k_g, k_h, k_e, k_p = jax.random.split(key, 4)
    g = (jax.random.uniform(k_g, (B, N, N)) > 0.5).astype(jnp.float32)
    h_in = jax.random.uniform(k_h, (B, N, F_node), dtype=jnp.float32)
    h_in = h_in.at[:, -1, :].set(0.0)   # one all-zero node per graph -> exercises masking
    e = jax.random.uniform(k_e, (B, N, N, E_edge), dtype=jnp.float32)

    k1, k2, k3, k4 = jax.random.split(k_p, 4)
    params = {
        "msg_nnet": init_nnet(k1, E_edge, H * M),     # MessageFunction edge NNet
        "gru": init_gru(k2, M, H),                    # UpdateFunction nn.GRU (single step)
        "ro_nnet1": init_nnet(k3, 2 * H, 10),         # ReadoutFunction NNet(2H -> 10)
        "ro_nnet2": init_nnet(k4, H, 10),             # ReadoutFunction NNet(H -> 10)
    }

    fwd = jax.jit(functools.partial(mpnn_linear_forward, n_layers=n_layers, H=H, M=M))
    out = jax.block_until_ready(fwd(params, g, h_in, e))

    ref = reference_forward(params, g, h_in, e, n_layers, H, M,
                            matmul_dtype=MATMUL_DTYPE)
    assert out.shape == (B, 10)
    assert bool(jnp.all(jnp.isfinite(out)))
    rel_err = float(jnp.max(jnp.abs(out - ref)) / (jnp.max(jnp.abs(ref)) + 1e-6))
    assert rel_err < 2e-2, f"mismatch vs reference: rel_err={rel_err}"
    print("KERNEL_OK")
</pallas_src>

<mosaic_0001>
module attributes {stable_mosaic.version = 11 : i64} {
  func.func @_fused_mlp_kernel(%arg0: i32, %arg1: memref<128x4xf32, #tpu.memory_space<vmem>>, %arg2: memref<4x128xf32, #tpu.memory_space<vmem>>, %arg3: memref<1x128xf32, #tpu.memory_space<vmem>>, %arg4: memref<128x256xf32, #tpu.memory_space<vmem>>, %arg5: memref<1x256xf32, #tpu.memory_space<vmem>>, %arg6: memref<256x128xf32, #tpu.memory_space<vmem>>, %arg7: memref<1x128xf32, #tpu.memory_space<vmem>>, %arg8: memref<128x256xf32, #tpu.memory_space<vmem>>, %arg9: memref<1x256xf32, #tpu.memory_space<vmem>>, %arg10: memref<128x256xf32, #tpu.memory_space<vmem>>) attributes {dimension_semantics = [#tpu.dimension_semantics<parallel>], iteration_bounds = array<i64: 1>, scalar_prefetch = 0 : i64, scratch_operands = 0 : i64, tpu.core_type = #tpu.core_type<tc>, window_params = [{transform_indices = @transform_0, window_bounds = array<i64: 128, 4>}, {pipeline_mode = #tpu.pipeline_mode<synchronous>, transform_indices = @transform_1, window_bounds = array<i64: 4, 128>}, {pipeline_mode = #tpu.pipeline_mode<synchronous>, transform_indices = @transform_2, window_bounds = array<i64: 1, 128>}, {pipeline_mode = #tpu.pipeline_mode<synchronous>, transform_indices = @transform_3, window_bounds = array<i64: 128, 256>}, {pipeline_mode = #tpu.pipeline_mode<synchronous>, transform_indices = @transform_4, window_bounds = array<i64: 1, 256>}, {pipeline_mode = #tpu.pipeline_mode<synchronous>, transform_indices = @transform_5, window_bounds = array<i64: 256, 128>}, {pipeline_mode = #tpu.pipeline_mode<synchronous>, transform_indices = @transform_6, window_bounds = array<i64: 1, 128>}, {pipeline_mode = #tpu.pipeline_mode<synchronous>, transform_indices = @transform_7, window_bounds = array<i64: 128, 256>}, {pipeline_mode = #tpu.pipeline_mode<synchronous>, transform_indices = @transform_8, window_bounds = array<i64: 1, 256>}, {transform_indices = @transform_9, window_bounds = array<i64: 128, 256>}]} {
    %c0 = arith.constant 0 : index
    %c0_0 = arith.constant 0 : index
    %0 = vector.load %arg1[%c0, %c0_0] : memref<128x4xf32, #tpu.memory_space<vmem>>, vector<128x4xf32>
    %c0_1 = arith.constant 0 : index
    %c0_2 = arith.constant 0 : index
    %1 = vector.load %arg2[%c0_1, %c0_2] : memref<4x128xf32, #tpu.memory_space<vmem>>, vector<4x128xf32>
    %c0_3 = arith.constant 0 : index
    %c0_4 = arith.constant 0 : index
    %2 = vector.load %arg3[%c0_3, %c0_4] : memref<1x128xf32, #tpu.memory_space<vmem>>, vector<1x128xf32>
    %3 = arith.truncf %0 : vector<128x4xf32> to vector<128x4xbf16>
    %4 = arith.truncf %1 : vector<4x128xf32> to vector<4x128xbf16>
    %cst = arith.constant dense<0.000000e+00> : vector<128x128xf32>
    %5 = tpu.matmul %3, %4, %cst {dimension_numbers = #tpu.dot_dimension_numbers<[1], [0], [0], [1], [0, 0, 1, 1], [], []>} : vector<128x4xbf16>, vector<4x128xbf16>, vector<128x128xf32> -> vector<128x128xf32>
    %6 = vector.broadcast %2 : vector<1x128xf32> to vector<128x128xf32>
    %7 = arith.addf %5, %6 : vector<128x128xf32>
    %cst_5 = arith.constant 0.000000e+00 : f32
    %8 = vector.broadcast %cst_5 : f32 to vector<128x128xf32>
    %9 = arith.maximumf %7, %8 : vector<128x128xf32>
    %c0_6 = arith.constant 0 : index
    %c0_7 = arith.constant 0 : index
    %10 = vector.load %arg4[%c0_6, %c0_7] : memref<128x256xf32, #tpu.memory_space<vmem>>, vector<128x256xf32>
    %c0_8 = arith.constant 0 : index
    %c0_9 = arith.constant 0 : index
    %11 = vector.load %arg5[%c0_8, %c0_9] : memref<1x256xf32, #tpu.memory_space<vmem>>, vector<1x256xf32>
    %12 = arith.truncf %9 : vector<128x128xf32> to vector<128x128xbf16>
    %13 = arith.truncf %10 : vector<128x256xf32> to vector<128x256xbf16>
    %cst_10 = arith.constant dense<0.000000e+00> : vector<128x256xf32>
    %14 = tpu.matmul %12, %13, %cst_10 {dimension_numbers = #tpu.dot_dimension_numbers<[1], [0], [0], [1], [0, 0, 1, 1], [], []>} : vector<128x128xbf16>, vector<128x256xbf16>, vector<128x256xf32> -> vector<128x256xf32>
    %15 = vector.broadcast %11 : vector<1x256xf32> to vector<128x256xf32>
    %16 = arith.addf %14, %15 : vector<128x256xf32>
    %cst_11 = arith.constant 0.000000e+00 : f32
    %17 = vector.broadcast %cst_11 : f32 to vector<128x256xf32>
    %18 = arith.maximumf %16, %17 : vector<128x256xf32>
    %c0_12 = arith.constant 0 : index
    %c0_13 = arith.constant 0 : index
    %19 = vector.load %arg6[%c0_12, %c0_13] : memref<256x128xf32, #tpu.memory_space<vmem>>, vector<256x128xf32>
    %c0_14 = arith.constant 0 : index
    %c0_15 = arith.constant 0 : index
    %20 = vector.load %arg7[%c0_14, %c0_15] : memref<1x128xf32, #tpu.memory_space<vmem>>, vector<1x128xf32>
    %21 = arith.truncf %18 : vector<128x256xf32> to vector<128x256xbf16>
    %22 = arith.truncf %19 : vector<256x128xf32> to vector<256x128xbf16>
    %cst_16 = arith.constant dense<0.000000e+00> : vector<128x128xf32>
    %23 = tpu.matmul %21, %22, %cst_16 {dimension_numbers = #tpu.dot_dimension_numbers<[1], [0], [0], [1], [0, 0, 1, 1], [], []>} : vector<128x256xbf16>, vector<256x128xbf16>, vector<128x128xf32> -> vector<128x128xf32>
    %24 = vector.broadcast %20 : vector<1x128xf32> to vector<128x128xf32>
    %25 = arith.addf %23, %24 : vector<128x128xf32>
    %cst_17 = arith.constant 0.000000e+00 : f32
    %26 = vector.broadcast %cst_17 : f32 to vector<128x128xf32>
    %27 = arith.maximumf %25, %26 : vector<128x128xf32>
    %c0_18 = arith.constant 0 : index
    %c0_19 = arith.constant 0 : index
    %28 = vector.load %arg8[%c0_18, %c0_19] : memref<128x256xf32, #tpu.memory_space<vmem>>, vector<128x256xf32>
    %c0_20 = arith.constant 0 : index
    %c0_21 = arith.constant 0 : index
    %29 = vector.load %arg9[%c0_20, %c0_21] : memref<1x256xf32, #tpu.memory_space<vmem>>, vector<1x256xf32>
    %30 = arith.truncf %27 : vector<128x128xf32> to vector<128x128xbf16>
    %31 = arith.truncf %28 : vector<128x256xf32> to vector<128x256xbf16>
    %cst_22 = arith.constant dense<0.000000e+00> : vector<128x256xf32>
    %32 = tpu.matmul %30, %31, %cst_22 {dimension_numbers = #tpu.dot_dimension_numbers<[1], [0], [0], [1], [0, 0, 1, 1], [], []>} : vector<128x128xbf16>, vector<128x256xbf16>, vector<128x256xf32> -> vector<128x256xf32>
    %33 = vector.broadcast %29 : vector<1x256xf32> to vector<128x256xf32>
    %34 = arith.addf %32, %33 : vector<128x256xf32>
    %c0_23 = arith.constant 0 : index
    %c0_24 = arith.constant 0 : index
    %35 = vector.load %arg10[%c0_23, %c0_24] : memref<128x256xf32, #tpu.memory_space<vmem>>, vector<128x256xf32>
    tpu.vector_store %arg10[%c0_23, %c0_24], %34 {strides = array<i32>} : memref<128x256xf32, #tpu.memory_space<vmem>>, vector<128x256xf32>,
    return
  }
  func.func @transform_0(%arg0: i32) -> (i32, i32) {
    %c0_i32 = arith.constant 0 : i32
    %c0_i32_0 = arith.constant 0 : i32
    return %arg0, %c0_i32 : i32, i32
  }
  func.func @transform_1(%arg0: i32) -> (i32, i32) {
    %c0_i32 = arith.constant 0 : i32
    %c0_i32_0 = arith.constant 0 : i32
    %c0_i32_1 = arith.constant 0 : i32
    return %c0_i32, %c0_i32_0 : i32, i32
  }
  func.func @transform_2(%arg0: i32) -> (i32, i32) {
    %c0_i32 = arith.constant 0 : i32
    %c0_i32_0 = arith.constant 0 : i32
    %c0_i32_1 = arith.constant 0 : i32
    return %c0_i32, %c0_i32_0 : i32, i32
  }
  func.func @transform_3(%arg0: i32) -> (i32, i32) {
    %c0_i32 = arith.constant 0 : i32
    %c0_i32_0 = arith.constant 0 : i32
    %c0_i32_1 = arith.constant 0 : i32
    return %c0_i32, %c0_i32_0 : i32, i32
  }
  func.func @transform_4(%arg0: i32) -> (i32, i32) {
    %c0_i32 = arith.constant 0 : i32
    %c0_i32_0 = arith.constant 0 : i32
    %c0_i32_1 = arith.constant 0 : i32
    return %c0_i32, %c0_i32_0 : i32, i32
  }
  func.func @transform_5(%arg0: i32) -> (i32, i32) {
    %c0_i32 = arith.constant 0 : i32
    %c0_i32_0 = arith.constant 0 : i32
    %c0_i32_1 = arith.constant 0 : i32
    return %c0_i32, %c0_i32_0 : i32, i32
  }
  func.func @transform_6(%arg0: i32) -> (i32, i32) {
    %c0_i32 = arith.constant 0 : i32
    %c0_i32_0 = arith.constant 0 : i32
    %c0_i32_1 = arith.constant 0 : i32
    return %c0_i32, %c0_i32_0 : i32, i32
  }
  func.func @transform_7(%arg0: i32) -> (i32, i32) {
    %c0_i32 = arith.constant 0 : i32
    %c0_i32_0 = arith.constant 0 : i32
    %c0_i32_1 = arith.constant 0 : i32
    return %c0_i32, %c0_i32_0 : i32, i32
  }
  func.func @transform_8(%arg0: i32) -> (i32, i32) {
    %c0_i32 = arith.constant 0 : i32
    %c0_i32_0 = arith.constant 0 : i32
    %c0_i32_1 = arith.constant 0 : i32
    return %c0_i32, %c0_i32_0 : i32, i32
  }
  func.func @transform_9(%arg0: i32) -> (i32, i32) {
    %c0_i32 = arith.constant 0 : i32
    %c0_i32_0 = arith.constant 0 : i32
    return %arg0, %c0_i32 : i32, i32
  }
}

module attributes {stable_mosaic.version = 11 : i64} {
  func.func @_layer_kernel(%arg0: i32, %arg1: memref<1x8x8x16x16xf32, #tpu.memory_space<vmem>>, %arg2: memref<1x8x8xf32, #tpu.memory_space<vmem>>, %arg3: memref<1x8x16xf32, #tpu.memory_space<vmem>>, %arg4: memref<1x8x1xf32, #tpu.memory_space<vmem>>, %arg5: memref<16x48xf32, #tpu.memory_space<vmem>>, %arg6: memref<1x48xf32, #tpu.memory_space<vmem>>, %arg7: memref<16x48xf32, #tpu.memory_space<vmem>>, %arg8: memref<1x48xf32, #tpu.memory_space<vmem>>, %arg9: memref<1x8x16xf32, #tpu.memory_space<vmem>>) attributes {dimension_semantics = [#tpu.dimension_semantics<parallel>], iteration_bounds = array<i64: 2>, scalar_prefetch = 0 : i64, scratch_operands = 0 : i64, tpu.core_type = #tpu.core_type<tc>, window_params = [{transform_indices = @transform_0, window_bounds = array<i64: 1, 8, 8, 16, 16>}, {transform_indices = @transform_1, window_bounds = array<i64: 1, 8, 8>}, {transform_indices = @transform_2, window_bounds = array<i64: 1, 8, 16>}, {transform_indices = @transform_3, window_bounds = array<i64: 1, 8, 1>}, {pipeline_mode = #tpu.pipeline_mode<synchronous>, transform_indices = @transform_4, window_bounds = array<i64: 16, 48>}, {pipeline_mode = #tpu.pipeline_mode<synchronous>, transform_indices = @transform_5, window_bounds = array<i64: 1, 48>}, {pipeline_mode = #tpu.pipeline_mode<synchronous>, transform_indices = @transform_6, window_bounds = array<i64: 16, 48>}, {pipeline_mode = #tpu.pipeline_mode<synchronous>, transform_indices = @transform_7, window_bounds = array<i64: 1, 48>}, {transform_indices = @transform_8, window_bounds = array<i64: 1, 8, 16>}]} {
    %c0 = arith.constant 0 : index
    %c0_0 = arith.constant 0 : index
    %c0_1 = arith.constant 0 : index
    %c0_2 = arith.constant 0 : index
    %c0_3 = arith.constant 0 : index
    %0 = vector.load %arg1[%c0, %c0_0, %c0_1, %c0_2, %c0_3] : memref<1x8x8x16x16xf32, #tpu.memory_space<vmem>>, vector<1x8x8x16x16xf32>
    %1 = vector.shape_cast %0 : vector<1x8x8x16x16xf32> to vector<8x8x16x16xf32>
    %c0_4 = arith.constant 0 : index
    %c0_5 = arith.constant 0 : index
    %c0_6 = arith.constant 0 : index
    %2 = vector.load %arg2[%c0_4, %c0_5, %c0_6] : memref<1x8x8xf32, #tpu.memory_space<vmem>>, vector<1x8x8xf32>
    %3 = vector.shape_cast %2 : vector<1x8x8xf32> to vector<8x8xf32>
    %c0_7 = arith.constant 0 : index
    %c0_8 = arith.constant 0 : index
    %c0_9 = arith.constant 0 : index
    %4 = vector.load %arg3[%c0_7, %c0_8, %c0_9] : memref<1x8x16xf32, #tpu.memory_space<vmem>>, vector<1x8x16xf32>
    %5 = vector.shape_cast %4 : vector<1x8x16xf32> to vector<8x16xf32>
    %c0_10 = arith.constant 0 : index
    %c0_11 = arith.constant 0 : index
    %c0_12 = arith.constant 0 : index
    %6 = vector.load %arg4[%c0_10, %c0_11, %c0_12] : memref<1x8x1xf32, #tpu.memory_space<vmem>>, vector<1x8x1xf32>
    %7 = vector.shape_cast %6 : vector<1x8x1xf32> to vector<8x1xf32>
    %8 = vector.shape_cast %5 : vector<8x16xf32> to vector<8x1x1x16xf32>
    %9 = vector.broadcast %8 : vector<8x1x1x16xf32> to vector<8x8x16x16xf32>
    %10 = arith.mulf %1, %9 : vector<8x8x16x16xf32>
    %cst = arith.constant dense<0.000000e+00> : vector<8x8x16xf32>
    %11 = vector.multi_reduction <add>, %10, %cst [3] : vector<8x8x16x16xf32> to vector<8x8x16xf32>
    %12 = vector.shape_cast %3 : vector<8x8xf32> to vector<8x8x1xf32>
    %13 = vector.broadcast %12 : vector<8x8x1xf32> to vector<8x8x16xf32>
    %14 = arith.mulf %13, %11 : vector<8x8x16xf32>
    %cst_13 = arith.constant dense<0.000000e+00> : vector<8x16xf32>
    %15 = vector.multi_reduction <add>, %14, %cst_13 [0] : vector<8x8x16xf32> to vector<8x16xf32>
    %16 = arith.truncf %15 : vector<8x16xf32> to vector<8x16xbf16>
    %c0_14 = arith.constant 0 : index
    %c0_15 = arith.constant 0 : index
    %17 = vector.load %arg5[%c0_14, %c0_15] : memref<16x48xf32, #tpu.memory_space<vmem>>, vector<16x48xf32>
    %18 = arith.truncf %17 : vector<16x48xf32> to vector<16x48xbf16>
    %cst_16 = arith.constant dense<0.000000e+00> : vector<8x48xf32>
    %19 = tpu.matmul %16, %18, %cst_16 {dimension_numbers = #tpu.dot_dimension_numbers<[1], [0], [0], [1], [0, 0, 1, 1], [], []>} : vector<8x16xbf16>, vector<16x48xbf16>, vector<8x48xf32> -> vector<8x48xf32>
    %c0_17 = arith.constant 0 : index
    %c0_18 = arith.constant 0 : index
    %20 = vector.load %arg6[%c0_17, %c0_18] : memref<1x48xf32, #tpu.memory_space<vmem>>, vector<1x48xf32>
    %21 = vector.broadcast %20 : vector<1x48xf32> to vector<8x48xf32>
    %22 = arith.addf %19, %21 : vector<8x48xf32>
    %23 = arith.truncf %5 : vector<8x16xf32> to vector<8x16xbf16>
    %c0_19 = arith.constant 0 : index
    %c0_20 = arith.constant 0 : index
    %24 = vector.load %arg7[%c0_19, %c0_20] : memref<16x48xf32, #tpu.memory_space<vmem>>, vector<16x48xf32>
    %25 = arith.truncf %24 : vector<16x48xf32> to vector<16x48xbf16>
    %cst_21 = arith.constant dense<0.000000e+00> : vector<8x48xf32>
    %26 = tpu.matmul %23, %25, %cst_21 {dimension_numbers = #tpu.dot_dimension_numbers<[1], [0], [0], [1], [0, 0, 1, 1], [], []>} : vector<8x16xbf16>, vector<16x48xbf16>, vector<8x48xf32> -> vector<8x48xf32>
    %c0_22 = arith.constant 0 : index
    %c0_23 = arith.constant 0 : index
    %27 = vector.load %arg8[%c0_22, %c0_23] : memref<1x48xf32, #tpu.memory_space<vmem>>, vector<1x48xf32>
    %28 = vector.broadcast %27 : vector<1x48xf32> to vector<8x48xf32>
    %29 = arith.addf %26, %28 : vector<8x48xf32>
    %30 = vector.extract_strided_slice %22 {offsets = [0, 0], sizes = [8, 16], strides = [1, 1]} : vector<8x48xf32> to vector<8x16xf32>
    %31 = vector.extract_strided_slice %29 {offsets = [0, 0], sizes = [8, 16], strides = [1, 1]} : vector<8x48xf32> to vector<8x16xf32>
    %32 = arith.addf %30, %31 : vector<8x16xf32>
    %33 = arith.negf %32 : vector<8x16xf32>
    %34 = math.exp %33 : vector<8x16xf32>
    %cst_24 = arith.constant 1.000000e+00 : f32
    %35 = vector.broadcast %cst_24 : f32 to vector<8x16xf32>
    %36 = arith.addf %35, %34 : vector<8x16xf32>
    %37 = arith.divf %35, %36 : vector<8x16xf32>
    %38 = vector.extract_strided_slice %22 {offsets = [0, 16], sizes = [8, 16], strides = [1, 1]} : vector<8x48xf32> to vector<8x16xf32>
    %39 = vector.extract_strided_slice %29 {offsets = [0, 16], sizes = [8, 16], strides = [1, 1]} : vector<8x48xf32> to vector<8x16xf32>
    %40 = arith.addf %38, %39 : vector<8x16xf32>
    %41 = arith.negf %40 : vector<8x16xf32>
    %42 = math.exp %41 : vector<8x16xf32>
    %cst_25 = arith.constant 1.000000e+00 : f32
    %43 = vector.broadcast %cst_25 : f32 to vector<8x16xf32>
    %44 = arith.addf %43, %42 : vector<8x16xf32>
    %45 = arith.divf %43, %44 : vector<8x16xf32>
    %46 = vector.extract_strided_slice %22 {offsets = [0, 32], sizes = [8, 16], strides = [1, 1]} : vector<8x48xf32> to vector<8x16xf32>
    %47 = vector.extract_strided_slice %29 {offsets = [0, 32], sizes = [8, 16], strides = [1, 1]} : vector<8x48xf32> to vector<8x16xf32>
    %48 = arith.mulf %37, %47 : vector<8x16xf32>
    %49 = arith.addf %46, %48 : vector<8x16xf32>
    %50 = math.tanh %49 : vector<8x16xf32>
    %cst_26 = arith.constant 1.000000e+00 : f32
    %51 = vector.broadcast %cst_26 : f32 to vector<8x16xf32>
    %52 = arith.subf %51, %45 : vector<8x16xf32>
    %53 = arith.mulf %52, %50 : vector<8x16xf32>
    %54 = arith.mulf %45, %5 : vector<8x16xf32>
    %55 = arith.addf %53, %54 : vector<8x16xf32>
    %56 = vector.broadcast %7 : vector<8x1xf32> to vector<8x16xf32>
    %57 = arith.mulf %55, %56 : vector<8x16xf32>
    %c0_27 = arith.constant 0 : index
    %c0_28 = arith.constant 0 : index
    %c0_29 = arith.constant 0 : index
    %58 = vector.load %arg9[%c0_27, %c0_28, %c0_29] : memref<1x8x16xf32, #tpu.memory_space<vmem>>, vector<1x8x16xf32>
    %59 = vector.shape_cast %58 : vector<1x8x16xf32> to vector<8x16xf32>
    %60 = vector.shape_cast %57 : vector<8x16xf32> to vector<1x8x16xf32>
    tpu.vector_store %arg9[%c0_27, %c0_28, %c0_29], %60 {strides = array<i32>} : memref<1x8x16xf32, #tpu.memory_space<vmem>>, vector<1x8x16xf32>,
    return
  }
  func.func @transform_0(%arg0: i32) -> (i32, i32, i32, i32, i32) {
    %c0_i32 = arith.constant 0 : i32
    %c0_i32_0 = arith.constant 0 : i32
    %c0_i32_1 = arith.constant 0 : i32
    %c0_i32_2 = arith.constant 0 : i32
    %c0_i32_3 = arith.constant 0 : i32
    return %arg0, %c0_i32, %c0_i32_0, %c0_i32_1, %c0_i32_2 : i32, i32, i32, i32, i32
  }
  func.func @transform_1(%arg0: i32) -> (i32, i32, i32) {
    %c0_i32 = arith.constant 0 : i32
    %c0_i32_0 = arith.constant 0 : i32
    %c0_i32_1 = arith.constant 0 : i32
    return %arg0, %c0_i32, %c0_i32_0 : i32, i32, i32
  }
  func.func @transform_2(%arg0: i32) -> (i32, i32, i32) {
    %c0_i32 = arith.constant 0 : i32
    %c0_i32_0 = arith.constant 0 : i32
    %c0_i32_1 = arith.constant 0 : i32
    return %arg0, %c0_i32, %c0_i32_0 : i32, i32, i32
  }
  func.func @transform_3(%arg0: i32) -> (i32, i32, i32) {
    %c0_i32 = arith.constant 0 : i32
    %c0_i32_0 = arith.constant 0 : i32
    %c0_i32_1 = arith.constant 0 : i32
    return %arg0, %c0_i32, %c0_i32_0 : i32, i32, i32
  }
  func.func @transform_4(%arg0: i32) -> (i32, i32) {
    %c0_i32 = arith.constant 0 : i32
    %c0_i32_0 = arith.constant 0 : i32
    %c0_i32_1 = arith.constant 0 : i32
    return %c0_i32, %c0_i32_0 : i32, i32
  }
  func.func @transform_5(%arg0: i32) -> (i32, i32) {
    %c0_i32 = arith.constant 0 : i32
    %c0_i32_0 = arith.constant 0 : i32
    %c0_i32_1 = arith.constant 0 : i32
    return %c0_i32, %c0_i32_0 : i32, i32
  }
  func.func @transform_6(%arg0: i32) -> (i32, i32) {
    %c0_i32 = arith.constant 0 : i32
    %c0_i32_0 = arith.constant 0 : i32
    %c0_i32_1 = arith.constant 0 : i32
    return %c0_i32, %c0_i32_0 : i32, i32
  }
  func.func @transform_7(%arg0: i32) -> (i32, i32) {
    %c0_i32 = arith.constant 0 : i32
    %c0_i32_0 = arith.constant 0 : i32
    %c0_i32_1 = arith.constant 0 : i32
    return %c0_i32, %c0_i32_0 : i32, i32
  }
  func.func @transform_8(%arg0: i32) -> (i32, i32, i32) {
    %c0_i32 = arith.constant 0 : i32
    %c0_i32_0 = arith.constant 0 : i32
    %c0_i32_1 = arith.constant 0 : i32
    return %arg0, %c0_i32, %c0_i32_0 : i32, i32, i32
  }
}

module attributes {stable_mosaic.version = 11 : i64} {
  func.func @_readout_kernel(%arg0: i32, %arg1: memref<1x8x16xf32, #tpu.memory_space<vmem>>, %arg2: memref<1x8x16xf32, #tpu.memory_space<vmem>>, %arg3: memref<1x8x1xf32, #tpu.memory_space<vmem>>, %arg4: memref<32x128xf32, #tpu.memory_space<vmem>>, %arg5: memref<1x128xf32, #tpu.memory_space<vmem>>, %arg6: memref<128x256xf32, #tpu.memory_space<vmem>>, %arg7: memref<1x256xf32, #tpu.memory_space<vmem>>, %arg8: memref<256x128xf32, #tpu.memory_space<vmem>>, %arg9: memref<1x128xf32, #tpu.memory_space<vmem>>, %arg10: memref<128x10xf32, #tpu.memory_space<vmem>>, %arg11: memref<1x10xf32, #tpu.memory_space<vmem>>, %arg12: memref<16x128xf32, #tpu.memory_space<vmem>>, %arg13: memref<1x128xf32, #tpu.memory_space<vmem>>, %arg14: memref<128x256xf32, #tpu.memory_space<vmem>>, %arg15: memref<1x256xf32, #tpu.memory_space<vmem>>, %arg16: memref<256x128xf32, #tpu.memory_space<vmem>>, %arg17: memref<1x128xf32, #tpu.memory_space<vmem>>, %arg18: memref<128x10xf32, #tpu.memory_space<vmem>>, %arg19: memref<1x10xf32, #tpu.memory_space<vmem>>, %arg20: memref<1x1x10xf32, #tpu.memory_space<vmem>>) attributes {dimension_semantics = [#tpu.dimension_semantics<parallel>], iteration_bounds = array<i64: 2>, scalar_prefetch = 0 : i64, scratch_operands = 0 : i64, tpu.core_type = #tpu.core_type<tc>, window_params = [{transform_indices = @transform_0, window_bounds = array<i64: 1, 8, 16>}, {transform_indices = @transform_1, window_bounds = array<i64: 1, 8, 16>}, {transform_indices = @transform_2, window_bounds = array<i64: 1, 8, 1>}, {pipeline_mode = #tpu.pipeline_mode<synchronous>, transform_indices = @transform_3, window_bounds = array<i64: 32, 128>}, {pipeline_mode = #tpu.pipeline_mode<synchronous>, transform_indices = @transform_4, window_bounds = array<i64: 1, 128>}, {pipeline_mode = #tpu.pipeline_mode<synchronous>, transform_indices = @transform_5, window_bounds = array<i64: 128, 256>}, {pipeline_mode = #tpu.pipeline_mode<synchronous>, transform_indices = @transform_6, window_bounds = array<i64: 1, 256>}, {pipeline_mode = #tpu.pipeline_mode<synchronous>, transform_indices = @transform_7, window_bounds = array<i64: 256, 128>}, {pipeline_mode = #tpu.pipeline_mode<synchronous>, transform_indices = @transform_8, window_bounds = array<i64: 1, 128>}, {pipeline_mode = #tpu.pipeline_mode<synchronous>, transform_indices = @transform_9, window_bounds = array<i64: 128, 10>}, {pipeline_mode = #tpu.pipeline_mode<synchronous>, transform_indices = @transform_10, window_bounds = array<i64: 1, 10>}, {pipeline_mode = #tpu.pipeline_mode<synchronous>, transform_indices = @transform_11, window_bounds = array<i64: 16, 128>}, {pipeline_mode = #tpu.pipeline_mode<synchronous>, transform_indices = @transform_12, window_bounds = array<i64: 1, 128>}, {pipeline_mode = #tpu.pipeline_mode<synchronous>, transform_indices = @transform_13, window_bounds = array<i64: 128, 256>}, {pipeline_mode = #tpu.pipeline_mode<synchronous>, transform_indices = @transform_14, window_bounds = array<i64: 1, 256>}, {pipeline_mode = #tpu.pipeline_mode<synchronous>, transform_indices = @transform_15, window_bounds = array<i64: 256, 128>}, {pipeline_mode = #tpu.pipeline_mode<synchronous>, transform_indices = @transform_16, window_bounds = array<i64: 1, 128>}, {pipeline_mode = #tpu.pipeline_mode<synchronous>, transform_indices = @transform_17, window_bounds = array<i64: 128, 10>}, {pipeline_mode = #tpu.pipeline_mode<synchronous>, transform_indices = @transform_18, window_bounds = array<i64: 1, 10>}, {transform_indices = @transform_19, window_bounds = array<i64: 1, 1, 10>}]} {
    %c0 = arith.constant 0 : index
    %c0_0 = arith.constant 0 : index
    %c0_1 = arith.constant 0 : index
    %0 = vector.load %arg1[%c0, %c0_0, %c0_1] : memref<1x8x16xf32, #tpu.memory_space<vmem>>, vector<1x8x16xf32>
    %1 = vector.shape_cast %0 : vector<1x8x16xf32> to vector<8x16xf32>
    %c0_2 = arith.constant 0 : index
    %c0_3 = arith.constant 0 : index
    %c0_4 = arith.constant 0 : index
    %2 = vector.load %arg2[%c0_2, %c0_3, %c0_4] : memref<1x8x16xf32, #tpu.memory_space<vmem>>, vector<1x8x16xf32>
    %3 = vector.shape_cast %2 : vector<1x8x16xf32> to vector<8x16xf32>
    %c0_5 = arith.constant 0 : index
    %c0_6 = arith.constant 0 : index
    %c0_7 = arith.constant 0 : index
    %4 = vector.load %arg3[%c0_5, %c0_6, %c0_7] : memref<1x8x1xf32, #tpu.memory_space<vmem>>, vector<1x8x1xf32>
    %5 = vector.shape_cast %4 : vector<1x8x1xf32> to vector<8x1xf32>
    %c0_8 = arith.constant 0 : index
    %c0_9 = arith.constant 0 : index
    %6 = vector.load %arg4[%c0_8, %c0_9] : memref<32x128xf32, #tpu.memory_space<vmem>>, vector<32x128xf32>
    %c0_10 = arith.constant 0 : index
    %c0_11 = arith.constant 0 : index
    %7 = vector.load %arg5[%c0_10, %c0_11] : memref<1x128xf32, #tpu.memory_space<vmem>>, vector<1x128xf32>
    %8 = vector.extract_strided_slice %6 {offsets = [0, 0], sizes = [16, 128], strides = [1, 1]} : vector<32x128xf32> to vector<16x128xf32>
    %9 = arith.truncf %1 : vector<8x16xf32> to vector<8x16xbf16>
    %10 = arith.truncf %8 : vector<16x128xf32> to vector<16x128xbf16>
    %cst = arith.constant dense<0.000000e+00> : vector<8x128xf32>
    %11 = tpu.matmul %9, %10, %cst {dimension_numbers = #tpu.dot_dimension_numbers<[1], [0], [0], [1], [0, 0, 1, 1], [], []>} : vector<8x16xbf16>, vector<16x128xbf16>, vector<8x128xf32> -> vector<8x128xf32>
    %12 = vector.extract_strided_slice %6 {offsets = [16, 0], sizes = [16, 128], strides = [1, 1]} : vector<32x128xf32> to vector<16x128xf32>
    %13 = arith.truncf %3 : vector<8x16xf32> to vector<8x16xbf16>
    %14 = arith.truncf %12 : vector<16x128xf32> to vector<16x128xbf16>
    %cst_12 = arith.constant dense<0.000000e+00> : vector<8x128xf32>
    %15 = tpu.matmul %13, %14, %cst_12 {dimension_numbers = #tpu.dot_dimension_numbers<[1], [0], [0], [1], [0, 0, 1, 1], [], []>} : vector<8x16xbf16>, vector<16x128xbf16>, vector<8x128xf32> -> vector<8x128xf32>
    %16 = arith.addf %11, %15 : vector<8x128xf32>
    %17 = vector.broadcast %7 : vector<1x128xf32> to vector<8x128xf32>
    %18 = arith.addf %16, %17 : vector<8x128xf32>
    %cst_13 = arith.constant 0.000000e+00 : f32
    %19 = vector.broadcast %cst_13 : f32 to vector<8x128xf32>
    %20 = arith.maximumf %18, %19 : vector<8x128xf32>
    %c0_14 = arith.constant 0 : index
    %c0_15 = arith.constant 0 : index
    %21 = vector.load %arg6[%c0_14, %c0_15] : memref<128x256xf32, #tpu.memory_space<vmem>>, vector<128x256xf32>
    %c0_16 = arith.constant 0 : index
    %c0_17 = arith.constant 0 : index
    %22 = vector.load %arg7[%c0_16, %c0_17] : memref<1x256xf32, #tpu.memory_space<vmem>>, vector<1x256xf32>
    %23 = arith.truncf %20 : vector<8x128xf32> to vector<8x128xbf16>
    %24 = arith.truncf %21 : vector<128x256xf32> to vector<128x256xbf16>
    %cst_18 = arith.constant dense<0.000000e+00> : vector<8x256xf32>
    %25 = tpu.matmul %23, %24, %cst_18 {dimension_numbers = #tpu.dot_dimension_numbers<[1], [0], [0], [1], [0, 0, 1, 1], [], []>} : vector<8x128xbf16>, vector<128x256xbf16>, vector<8x256xf32> -> vector<8x256xf32>
    %26 = vector.broadcast %22 : vector<1x256xf32> to vector<8x256xf32>
    %27 = arith.addf %25, %26 : vector<8x256xf32>
    %cst_19 = arith.constant 0.000000e+00 : f32
    %28 = vector.broadcast %cst_19 : f32 to vector<8x256xf32>
    %29 = arith.maximumf %27, %28 : vector<8x256xf32>
    %c0_20 = arith.constant 0 : index
    %c0_21 = arith.constant 0 : index
    %30 = vector.load %arg8[%c0_20, %c0_21] : memref<256x128xf32, #tpu.memory_space<vmem>>, vector<256x128xf32>
    %c0_22 = arith.constant 0 : index
    %c0_23 = arith.constant 0 : index
    %31 = vector.load %arg9[%c0_22, %c0_23] : memref<1x128xf32, #tpu.memory_space<vmem>>, vector<1x128xf32>
    %32 = arith.truncf %29 : vector<8x256xf32> to vector<8x256xbf16>
    %33 = arith.truncf %30 : vector<256x128xf32> to vector<256x128xbf16>
    %cst_24 = arith.constant dense<0.000000e+00> : vector<8x128xf32>
    %34 = tpu.matmul %32, %33, %cst_24 {dimension_numbers = #tpu.dot_dimension_numbers<[1], [0], [0], [1], [0, 0, 1, 1], [], []>} : vector<8x256xbf16>, vector<256x128xbf16>, vector<8x128xf32> -> vector<8x128xf32>
    %35 = vector.broadcast %31 : vector<1x128xf32> to vector<8x128xf32>
    %36 = arith.addf %34, %35 : vector<8x128xf32>
    %cst_25 = arith.constant 0.000000e+00 : f32
    %37 = vector.broadcast %cst_25 : f32 to vector<8x128xf32>
    %38 = arith.maximumf %36, %37 : vector<8x128xf32>
    %c0_26 = arith.constant 0 : index
    %c0_27 = arith.constant 0 : index
    %39 = vector.load %arg10[%c0_26, %c0_27] : memref<128x10xf32, #tpu.memory_space<vmem>>, vector<128x10xf32>
    %c0_28 = arith.constant 0 : index
    %c0_29 = arith.constant 0 : index
    %40 = vector.load %arg11[%c0_28, %c0_29] : memref<1x10xf32, #tpu.memory_space<vmem>>, vector<1x10xf32>
    %41 = arith.truncf %38 : vector<8x128xf32> to vector<8x128xbf16>
    %42 = arith.truncf %39 : vector<128x10xf32> to vector<128x10xbf16>
    %cst_30 = arith.constant dense<0.000000e+00> : vector<8x10xf32>
    %43 = tpu.matmul %41, %42, %cst_30 {dimension_numbers = #tpu.dot_dimension_numbers<[1], [0], [0], [1], [0, 0, 1, 1], [], []>} : vector<8x128xbf16>, vector<128x10xbf16>, vector<8x10xf32> -> vector<8x10xf32>
    %44 = vector.broadcast %40 : vector<1x10xf32> to vector<8x10xf32>
    %45 = arith.addf %43, %44 : vector<8x10xf32>
    %46 = arith.negf %45 : vector<8x10xf32>
    %47 = math.exp %46 : vector<8x10xf32>
    %cst_31 = arith.constant 1.000000e+00 : f32
    %48 = vector.broadcast %cst_31 : f32 to vector<8x10xf32>
    %49 = arith.addf %48, %47 : vector<8x10xf32>
    %50 = arith.divf %48, %49 : vector<8x10xf32>
    %c0_32 = arith.constant 0 : index
    %c0_33 = arith.constant 0 : index
    %51 = vector.load %arg12[%c0_32, %c0_33] : memref<16x128xf32, #tpu.memory_space<vmem>>, vector<16x128xf32>
    %c0_34 = arith.constant 0 : index
    %c0_35 = arith.constant 0 : index
    %52 = vector.load %arg13[%c0_34, %c0_35] : memref<1x128xf32, #tpu.memory_space<vmem>>, vector<1x128xf32>
    %53 = arith.truncf %3 : vector<8x16xf32> to vector<8x16xbf16>
    %54 = arith.truncf %51 : vector<16x128xf32> to vector<16x128xbf16>
    %cst_36 = arith.constant dense<0.000000e+00> : vector<8x128xf32>
    %55 = tpu.matmul %53, %54, %cst_36 {dimension_numbers = #tpu.dot_dimension_numbers<[1], [0], [0], [1], [0, 0, 1, 1], [], []>} : vector<8x16xbf16>, vector<16x128xbf16>, vector<8x128xf32> -> vector<8x128xf32>
    %56 = vector.broadcast %52 : vector<1x128xf32> to vector<8x128xf32>
    %57 = arith.addf %55, %56 : vector<8x128xf32>
    %cst_37 = arith.constant 0.000000e+00 : f32
    %58 = vector.broadcast %cst_37 : f32 to vector<8x128xf32>
    %59 = arith.maximumf %57, %58 : vector<8x128xf32>
    %c0_38 = arith.constant 0 : index
    %c0_39 = arith.constant 0 : index
    %60 = vector.load %arg14[%c0_38, %c0_39] : memref<128x256xf32, #tpu.memory_space<vmem>>, vector<128x256xf32>
    %c0_40 = arith.constant 0 : index
    %c0_41 = arith.constant 0 : index
    %61 = vector.load %arg15[%c0_40, %c0_41] : memref<1x256xf32, #tpu.memory_space<vmem>>, vector<1x256xf32>
    %62 = arith.truncf %59 : vector<8x128xf32> to vector<8x128xbf16>
    %63 = arith.truncf %60 : vector<128x256xf32> to vector<128x256xbf16>
    %cst_42 = arith.constant dense<0.000000e+00> : vector<8x256xf32>
    %64 = tpu.matmul %62, %63, %cst_42 {dimension_numbers = #tpu.dot_dimension_numbers<[1], [0], [0], [1], [0, 0, 1, 1], [], []>} : vector<8x128xbf16>, vector<128x256xbf16>, vector<8x256xf32> -> vector<8x256xf32>
    %65 = vector.broadcast %61 : vector<1x256xf32> to vector<8x256xf32>
    %66 = arith.addf %64, %65 : vector<8x256xf32>
    %cst_43 = arith.constant 0.000000e+00 : f32
    %67 = vector.broadcast %cst_43 : f32 to vector<8x256xf32>
    %68 = arith.maximumf %66, %67 : vector<8x256xf32>
    %c0_44 = arith.constant 0 : index
    %c0_45 = arith.constant 0 : index
    %69 = vector.load %arg16[%c0_44, %c0_45] : memref<256x128xf32, #tpu.memory_space<vmem>>, vector<256x128xf32>
    %c0_46 = arith.constant 0 : index
    %c0_47 = arith.constant 0 : index
    %70 = vector.load %arg17[%c0_46, %c0_47] : memref<1x128xf32, #tpu.memory_space<vmem>>, vector<1x128xf32>
    %71 = arith.truncf %68 : vector<8x256xf32> to vector<8x256xbf16>
    %72 = arith.truncf %69 : vector<256x128xf32> to vector<256x128xbf16>
    %cst_48 = arith.constant dense<0.000000e+00> : vector<8x128xf32>
    %73 = tpu.matmul %71, %72, %cst_48 {dimension_numbers = #tpu.dot_dimension_numbers<[1], [0], [0], [1], [0, 0, 1, 1], [], []>} : vector<8x256xbf16>, vector<256x128xbf16>, vector<8x128xf32> -> vector<8x128xf32>
    %74 = vector.broadcast %70 : vector<1x128xf32> to vector<8x128xf32>
    %75 = arith.addf %73, %74 : vector<8x128xf32>
    %cst_49 = arith.constant 0.000000e+00 : f32
    %76 = vector.broadcast %cst_49 : f32 to vector<8x128xf32>
    %77 = arith.maximumf %75, %76 : vector<8x128xf32>
    %c0_50 = arith.constant 0 : index
    %c0_51 = arith.constant 0 : index
    %78 = vector.load %arg18[%c0_50, %c0_51] : memref<128x10xf32, #tpu.memory_space<vmem>>, vector<128x10xf32>
    %c0_52 = arith.constant 0 : index
    %c0_53 = arith.constant 0 : index
    %79 = vector.load %arg19[%c0_52, %c0_53] : memref<1x10xf32, #tpu.memory_space<vmem>>, vector<1x10xf32>
    %80 = arith.truncf %77 : vector<8x128xf32> to vector<8x128xbf16>
    %81 = arith.truncf %78 : vector<128x10xf32> to vector<128x10xbf16>
    %cst_54 = arith.constant dense<0.000000e+00> : vector<8x10xf32>
    %82 = tpu.matmul %80, %81, %cst_54 {dimension_numbers = #tpu.dot_dimension_numbers<[1], [0], [0], [1], [0, 0, 1, 1], [], []>} : vector<8x128xbf16>, vector<128x10xbf16>, vector<8x10xf32> -> vector<8x10xf32>
    %83 = vector.broadcast %79 : vector<1x10xf32> to vector<8x10xf32>
    %84 = arith.addf %82, %83 : vector<8x10xf32>
    %85 = arith.mulf %50, %84 : vector<8x10xf32>
    %86 = vector.broadcast %5 : vector<8x1xf32> to vector<8x10xf32>
    %87 = arith.mulf %85, %86 : vector<8x10xf32>
    %cst_55 = arith.constant dense<0.000000e+00> : vector<10xf32>
    %88 = vector.multi_reduction <add>, %87, %cst_55 [0] : vector<8x10xf32> to vector<10xf32>
    %89 = vector.shape_cast %88 : vector<10xf32> to vector<1x10xf32>
    %c0_56 = arith.constant 0 : index
    %c0_57 = arith.constant 0 : index
    %c0_58 = arith.constant 0 : index
    %90 = vector.load %arg20[%c0_56, %c0_57, %c0_58] : memref<1x1x10xf32, #tpu.memory_space<vmem>>, vector<1x1x10xf32>
    %91 = vector.shape_cast %90 : vector<1x1x10xf32> to vector<1x10xf32>
    %92 = vector.shape_cast %89 : vector<1x10xf32> to vector<1x1x10xf32>
    tpu.vector_store %arg20[%c0_56, %c0_57, %c0_58], %92 {strides = array<i32>} : memref<1x1x10xf32, #tpu.memory_space<vmem>>, vector<1x1x10xf32>,
    return
  }
  func.func @transform_0(%arg0: i32) -> (i32, i32, i32) {
    %c0_i32 = arith.constant 0 : i32
    %c0_i32_0 = arith.constant 0 : i32
    %c0_i32_1 = arith.constant 0 : i32
    return %arg0, %c0_i32, %c0_i32_0 : i32, i32, i32
  }
  func.func @transform_1(%arg0: i32) -> (i32, i32, i32) {
    %c0_i32 = arith.constant 0 : i32
    %c0_i32_0 = arith.constant 0 : i32
    %c0_i32_1 = arith.constant 0 : i32
    return %arg0, %c0_i32, %c0_i32_0 : i32, i32, i32
  }
  func.func @transform_2(%arg0: i32) -> (i32, i32, i32) {
    %c0_i32 = arith.constant 0 : i32
    %c0_i32_0 = arith.constant 0 : i32
    %c0_i32_1 = arith.constant 0 : i32
    return %arg0, %c0_i32, %c0_i32_0 : i32, i32, i32
  }
  func.func @transform_3(%arg0: i32) -> (i32, i32) {
    %c0_i32 = arith.constant 0 : i32
    %c0_i32_0 = arith.constant 0 : i32
    %c0_i32_1 = arith.constant 0 : i32
    return %c0_i32, %c0_i32_0 : i32, i32
  }
  func.func @transform_4(%arg0: i32) -> (i32, i32) {
    %c0_i32 = arith.constant 0 : i32
    %c0_i32_0 = arith.constant 0 : i32
    %c0_i32_1 = arith.constant 0 : i32
    return %c0_i32, %c0_i32_0 : i32, i32
  }
  func.func @transform_5(%arg0: i32) -> (i32, i32) {
    %c0_i32 = arith.constant 0 : i32
    %c0_i32_0 = arith.constant 0 : i32
    %c0_i32_1 = arith.constant 0 : i32
    return %c0_i32, %c0_i32_0 : i32, i32
  }
  func.func @transform_6(%arg0: i32) -> (i32, i32) {
    %c0_i32 = arith.constant 0 : i32
    %c0_i32_0 = arith.constant 0 : i32
    %c0_i32_1 = arith.constant 0 : i32
    return %c0_i32, %c0_i32_0 : i32, i32
  }
  func.func @transform_7(%arg0: i32) -> (i32, i32) {
    %c0_i32 = arith.constant 0 : i32
    %c0_i32_0 = arith.constant 0 : i32
    %c0_i32_1 = arith.constant 0 : i32
    return %c0_i32, %c0_i32_0 : i32, i32
  }
  func.func @transform_8(%arg0: i32) -> (i32, i32) {
    %c0_i32 = arith.constant 0 : i32
    %c0_i32_0 = arith.constant 0 : i32
    %c0_i32_1 = arith.constant 0 : i32
    return %c0_i32, %c0_i32_0 : i32, i32
  }
  func.func @transform_9(%arg0: i32) -> (i32, i32) {
    %c0_i32 = arith.constant 0 : i32
    %c0_i32_0 = arith.constant 0 : i32
    %c0_i32_1 = arith.constant 0 : i32
    return %c0_i32, %c0_i32_0 : i32, i32
  }
  func.func @transform_10(%arg0: i32) -> (i32, i32) {
    %c0_i32 = arith.constant 0 : i32
    %c0_i32_0 = arith.constant 0 : i32
    %c0_i32_1 = arith.constant 0 : i32
    return %c0_i32, %c0_i32_0 : i32, i32
  }
  func.func @transform_11(%arg0: i32) -> (i32, i32) {
    %c0_i32 = arith.constant 0 : i32
    %c0_i32_0 = arith.constant 0 : i32
    %c0_i32_1 = arith.constant 0 : i32
    return %c0_i32, %c0_i32_0 : i32, i32
  }
  func.func @transform_12(%arg0: i32) -> (i32, i32) {
    %c0_i32 = arith.constant 0 : i32
    %c0_i32_0 = arith.constant 0 : i32
    %c0_i32_1 = arith.constant 0 : i32
    return %c0_i32, %c0_i32_0 : i32, i32
  }
  func.func @transform_13(%arg0: i32) -> (i32, i32) {
    %c0_i32 = arith.constant 0 : i32
    %c0_i32_0 = arith.constant 0 : i32
    %c0_i32_1 = arith.constant 0 : i32
    return %c0_i32, %c0_i32_0 : i32, i32
  }
  func.func @transform_14(%arg0: i32) -> (i32, i32) {
    %c0_i32 = arith.constant 0 : i32
    %c0_i32_0 = arith.constant 0 : i32
    %c0_i32_1 = arith.constant 0 : i32
    return %c0_i32, %c0_i32_0 : i32, i32
  }
  func.func @transform_15(%arg0: i32) -> (i32, i32) {
    %c0_i32 = arith.constant 0 : i32
    %c0_i32_0 = arith.constant 0 : i32
    %c0_i32_1 = arith.constant 0 : i32
    return %c0_i32, %c0_i32_0 : i32, i32
  }
  func.func @transform_16(%arg0: i32) -> (i32, i32) {
    %c0_i32 = arith.constant 0 : i32
    %c0_i32_0 = arith.constant 0 : i32
    %c0_i32_1 = arith.constant 0 : i32
    return %c0_i32, %c0_i32_0 : i32, i32
  }
  func.func @transform_17(%arg0: i32) -> (i32, i32) {
    %c0_i32 = arith.constant 0 : i32
    %c0_i32_0 = arith.constant 0 : i32
    %c0_i32_1 = arith.constant 0 : i32
    return %c0_i32, %c0_i32_0 : i32, i32
  }
  func.func @transform_18(%arg0: i32) -> (i32, i32) {
    %c0_i32 = arith.constant 0 : i32
    %c0_i32_0 = arith.constant 0 : i32
    %c0_i32_1 = arith.constant 0 : i32
    return %c0_i32, %c0_i32_0 : i32, i32
  }
  func.func @transform_19(%arg0: i32) -> (i32, i32, i32) {
    %c0_i32 = arith.constant 0 : i32
    %c0_i32_0 = arith.constant 0 : i32
    %c0_i32_1 = arith.constant 0 : i32
    return %arg0, %c0_i32, %c0_i32_0 : i32, i32, i32
  }
}

</mosaic_0001>

<llo_original>
// kernel: mpnn_linear_forward.4
$region0: #{mpnn_linear_forward.4}
  #allocation0 [shape = 'u32[]', space=smem, size = 0x4, offset = 0x4, fixed_abs, tag = 'smem constant byte address 0x4 - core index']
  #allocation1 [shape = 'u32[144,128]{1,0:T(1,128)}', space=vmem, size = 0x12000, scoped, tag = 'internal scratch']
  %s0 = inlined_call_operand.vmem [shape: f32[128,4], index: 0, kind: input, shape index: {}]
  %s1 = inlined_call_operand.vmem [shape: f32[4,128], index: 1, kind: input, shape index: {}]
  %s2 = inlined_call_operand.vmem [shape: f32[1,128], index: 2, kind: input, shape index: {}]
  %s3 = inlined_call_operand.vmem [shape: f32[128,256], index: 3, kind: input, shape index: {}]
  %s4 = inlined_call_operand.vmem [shape: f32[1,256], index: 4, kind: input, shape index: {}]
  %s5 = inlined_call_operand.hbm [shape: f32[256,128], index: 5, kind: input, shape index: {}]
  %s6 = inlined_call_operand.vmem [shape: f32[1,128], index: 6, kind: input, shape index: {}]
  %s7 = inlined_call_operand.hbm [shape: f32[128,256], index: 7, kind: input, shape index: {}]
  %s8 = inlined_call_operand.vmem [shape: f32[1,256], index: 8, kind: input, shape index: {}]
  %s9 = inlined_call_operand.vmem [shape: f32[128,256], index: 9, kind: output, shape index: {}]
  %s10 = sld [smem:[#allocation0]]
  $region54: #{mpnn_linear_forward.4} parent=0
    _
  %s12 = ssub.s32 1, %s10
  %s13 = scalar_select 0, %s12, %s10
  $region1: #{mpnn_linear_forward.4} parent=0
    #allocation2 [shape = 'u8[131072]{0}', space=vmem, size = 0x20000, scoped, tag = 'input window, operand 5, single buffered']
    #allocation3 [shape = 's32[1]{0}', space=sflag, size = 0x4, scoped, tag = 'scoped memory for mpnn_linear_forward.4']
    #allocation4 [shape = 'u8[131072]{0}', space=vmem, size = 0x20000, scoped, tag = 'input window, operand 7, single buffered']
    #allocation5 [shape = 's32[1]{0}', space=sflag, size = 0x4, scoped, tag = 'scoped memory for mpnn_linear_forward.4']
    %14 = vsyncpa [#allocation3], 0
    %15 = vsyncpa [#allocation5], 0
    // Predicated region
    $region2: #{mpnn_linear_forward.4} parent=1 // pred_check
      _
    $region3: #{mpnn_linear_forward.4} parent=1 // pred_check_branch
      %17 = sbr.rel (0) target = $region5
    $region4: #{mpnn_linear_forward.4} parent=1 // pred_region
      _
    $region5: #{mpnn_linear_forward.4} parent=1 // pred_fallthru
      _
    // Predicated region
    $region6: #{mpnn_linear_forward.4} parent=1 // pred_check
      _
    $region7: #{mpnn_linear_forward.4} parent=1 // pred_check_branch
      %19 = sbr.rel (0) target = $region9
    $region8: #{mpnn_linear_forward.4} parent=1 // pred_region
      _
    $region9: #{mpnn_linear_forward.4} parent=1 // pred_fallthru
      _
    // Predicated region
    $region10: #{mpnn_linear_forward.4} parent=1 // pred_check
      _
    $region11: #{mpnn_linear_forward.4} parent=1 // pred_check_branch
      %21 = sbr.rel (0) target = $region13
    $region12: #{mpnn_linear_forward.4} parent=1 // pred_region
      _
    $region13: #{mpnn_linear_forward.4} parent=1 // pred_fallthru
      _
    // Predicated region
    $region14: #{mpnn_linear_forward.4} parent=1 // pred_check
      _
    $region15: #{mpnn_linear_forward.4} parent=1 // pred_check_branch
      %23 = sbr.rel (0) target = $region17
    $region16: #{mpnn_linear_forward.4} parent=1 // pred_region
      _
    $region17: #{mpnn_linear_forward.4} parent=1 // pred_fallthru
      _
    // Predicated region
    $region18: #{mpnn_linear_forward.4} parent=1 // pred_check
      _
    $region19: #{mpnn_linear_forward.4} parent=1 // pred_check_branch
      %25 = sbr.rel (0) target = $region21
    $region20: #{mpnn_linear_forward.4} parent=1 // pred_region
      _
    $region21: #{mpnn_linear_forward.4} parent=1 // pred_fallthru
      _
    // Predicated region
    $region22: #{mpnn_linear_forward.4} parent=1 // pred_check
      _
    $region23: #{mpnn_linear_forward.4} parent=1 // pred_check_branch
      %27 = sbr.rel (0) target = $region25
    $region24: #{mpnn_linear_forward.4} parent=1 // pred_region
      %s29 = ssub.s32 4096, 4096
      %30 = vsyncadd [#allocation3], %s29
      %s31 = sshll.u32 [#allocation2], 4
      %s32 = int_to_ptr.vmem [resolvable:$true] %s31
      %37 = dma.hbm_to_vmem [thread:$0]  %s5, 4096, %s32, [#allocation3], 128, 128, 8
    $region25: #{mpnn_linear_forward.4} parent=1 // pred_fallthru
      _
    // Predicated region
    $region26: #{mpnn_linear_forward.4} parent=1 // pred_check
      _
    $region27: #{mpnn_linear_forward.4} parent=1 // pred_check_branch
      %39 = sbr.rel (0) target = $region29
    $region28: #{mpnn_linear_forward.4} parent=1 // pred_region
      _
    $region29: #{mpnn_linear_forward.4} parent=1 // pred_fallthru
      _
    // Predicated region
    $region30: #{mpnn_linear_forward.4} parent=1 // pred_check
      _
    $region31: #{mpnn_linear_forward.4} parent=1 // pred_check_branch
      %41 = sbr.rel (0) target = $region33
    $region32: #{mpnn_linear_forward.4} parent=1 // pred_region
      %s43 = ssub.s32 4096, 4096
      %44 = vsyncadd [#allocation5], %s43
      %s45 = sshll.u32 [#allocation4], 4
      %s46 = int_to_ptr.vmem [resolvable:$true] %s45
      %51 = dma.hbm_to_vmem [thread:$0]  %s7, 4096, %s46, [#allocation5], 256, 256, 16
    $region33: #{mpnn_linear_forward.4} parent=1 // pred_fallthru
      _
    // Predicated region
    $region34: #{mpnn_linear_forward.4} parent=1 // pred_check
      _
    $region35: #{mpnn_linear_forward.4} parent=1 // pred_check_branch
      %53 = sbr.rel (0) target = $region37
    $region36: #{mpnn_linear_forward.4} parent=1 // pred_region
      _
    $region37: #{mpnn_linear_forward.4} parent=1 // pred_fallthru
      _
    // Predicated region
    $region38: #{mpnn_linear_forward.4} parent=1 // pred_check
      _
    $region39: #{mpnn_linear_forward.4} parent=1 // pred_check_branch
      %55 = sbr.rel (0) target = $region41
    $region40: #{mpnn_linear_forward.4} parent=1 // pred_region
      %56 = dma.done [#allocation3], 4096
    $region41: #{mpnn_linear_forward.4} parent=1 // pred_fallthru
      _
    // Predicated region
    $region42: #{mpnn_linear_forward.4} parent=1 // pred_check
      _
    $region43: #{mpnn_linear_forward.4} parent=1 // pred_check_branch
      %58 = sbr.rel (0) target = $region45
    $region44: #{mpnn_linear_forward.4} parent=1 // pred_region
      %59 = dma.done [#allocation5], 4096
    $region45: #{mpnn_linear_forward.4} parent=1 // pred_fallthru
      _
    %v61 = vld [vmem:[%s0] sm:$0xff]
    %v62 = vld [vmem:[%s0 + $0x8] sm:$0xff]
    %v63 = vld [vmem:[%s0 + $0x10] sm:$0xff]
    %v64 = vld [vmem:[%s0 + $0x18] sm:$0xff]
    %v65 = vld [vmem:[%s0 + $0x20] sm:$0xff]
    %v66 = vld [vmem:[%s0 + $0x28] sm:$0xff]
    %v67 = vld [vmem:[%s0 + $0x30] sm:$0xff]
    %v68 = vld [vmem:[%s0 + $0x38] sm:$0xff]
    %v69 = vld [vmem:[%s0 + $0x40] sm:$0xff]
    %v70 = vld [vmem:[%s0 + $0x48] sm:$0xff]
    %v71 = vld [vmem:[%s0 + $0x50] sm:$0xff]
    %v72 = vld [vmem:[%s0 + $0x58] sm:$0xff]
    %v73 = vld [vmem:[%s0 + $0x60] sm:$0xff]
    %v74 = vld [vmem:[%s0 + $0x68] sm:$0xff]
    %v75 = vld [vmem:[%s0 + $0x70] sm:$0xff]
    %v76 = vld [vmem:[%s0 + $0x78] sm:$0xff]
    %v77 = vld [vmem:[%s1] sm:$0xf]
    %v78 = vld [vmem:[%s2] sm:$0x1]
    %v79 = vpack.c.bf16 %v62, %v61
    %v80 = vpack.c.bf16 %v64, %v63
    %v81 = vpack.c.bf16 %v66, %v65
    %v82 = vpack.c.bf16 %v68, %v67
    %v83 = vpack.c.bf16 %v70, %v69
    %v84 = vpack.c.bf16 %v72, %v71
    %v85 = vpack.c.bf16 %v74, %v73
    %v86 = vpack.c.bf16 %v76, %v75
    %v87 = vpack.c.bf16 %v77, %v77
    %v89 = vlaneseq
    %v90 = vshrl.u32 %v89, 7
    %v91 = vsub.s32 0, %v90
    %v92 = vrot.slane %v78, %v91
    %vm94 = vcmask 31744
    %v96 = vsel %vm94, %v79, 0
    %v99 = vsel %vm94, %v80, 0
    %v102 = vsel %vm94, %v81, 0
    %v105 = vsel %vm94, %v82, 0
    %v108 = vsel %vm94, %v83, 0
    %v111 = vsel %vm94, %v84, 0
    %v114 = vsel %vm94, %v85, 0
    %v117 = vsel %vm94, %v86, 0
    %vm119 = vcmask 1041408
    %v121 = vsel %vm119, %v87, 0
    %123 = vmatprep.subr.bf16.mxu0 0
    %124 = vmatpush1.bf16.msra.mxu0 %v121
    %125 = vmatprep.subr.bf16.mxu0 0
    %126 = vmatpush1.bf16.msra.mxu0 0
    %127 = vmatprep.subr.bf16.mxu0 0
    %128 = vmatpush1.bf16.msra.mxu0 0
    %129 = vmatprep.subr.bf16.mxu0 0
    %130 = vmatpush1.bf16.msra.mxu0 0
    %131 = vmatprep.subr.bf16.mxu0 0
    %132 = vmatpush1.bf16.msra.mxu0 0
    %133 = vmatprep.subr.bf16.mxu0 0
    %134 = vmatpush1.bf16.msra.mxu0 0
    %135 = vmatprep.subr.bf16.mxu0 0
    %136 = vmatpush1.bf16.msra.mxu0 0
    %137 = vmatprep.subr.bf16.mxu0 0
    %138 = vmatpush1.bf16.msra.mxu0 0
    %139 = vmatprep.subr.bf16.mxu0 0
    %140 = vmatpush1.bf16.msra.mxu0 0
    %141 = vmatprep.subr.bf16.mxu0 0
    %142 = vmatpush1.bf16.msra.mxu0 0
    %143 = vmatprep.subr.bf16.mxu0 0
    %144 = vmatpush1.bf16.msra.mxu0 0
    %145 = vmatprep.subr.bf16.mxu0 0
    %146 = vmatpush1.bf16.msra.mxu0 0
    %147 = vmatprep.subr.bf16.mxu0 0
    %148 = vmatpush1.bf16.msra.mxu0 0
    %149 = vmatprep.subr.bf16.mxu0 0
    %150 = vmatpush1.bf16.msra.mxu0 0
    %151 = vmatprep.subr.bf16.mxu0 0
    %152 = vmatpush1.bf16.msra.mxu0 0
    %153 = vmatprep.subr.bf16.mxu0 0
    %154 = vmatpush1.bf16.msra.mxu0 0
    %155 = vmatprep.mubr.bf16.mxu0 0
    %156 = vmatmul.mubr.bf16.gmra.mrb[0].mxu0 %v96
    %v157 = vpop.f32.mrb[0].mxu0
    %v158 = vadd.f32 %v92, %v157
    %v159 = vpop.f32.mrb[0].mxu0
    %v160 = vpop.f32.mrb[0].mxu0
    %v161 = vadd.f32 %v92, %v160
    %v162 = vpop.f32.mrb[0].mxu0
    %163 = vmatprep.mubr.bf16.mxu0 0
    %164 = vmatmul.mubr.bf16.gmra.mrb[0].mxu0 %v99
    %v165 = vpop.f32.mrb[0].mxu0
    %v166 = vadd.f32 %v92, %v165
    %v167 = vpop.f32.mrb[0].mxu0
    %v168 = vpop.f32.mrb[0].mxu0
    %v169 = vadd.f32 %v92, %v168
    %v170 = vpop.f32.mrb[0].mxu0
    %171 = vmatprep.mubr.bf16.mxu0 0
    %172 = vmatmul.mubr.bf16.gmra.mrb[0].mxu0 %v102
    %v173 = vpop.f32.mrb[0].mxu0
    %v174 = vadd.f32 %v92, %v173
    %v175 = vpop.f32.mrb[0].mxu0
    %v176 = vpop.f32.mrb[0].mxu0
    %v177 = vadd.f32 %v92, %v176
    %v178 = vpop.f32.mrb[0].mxu0
    %179 = vmatprep.mubr.bf16.mxu0 0
    %180 = vmatmul.mubr.bf16.gmra.mrb[0].mxu0 %v105
    %v181 = vpop.f32.mrb[0].mxu0
    %v182 = vadd.f32 %v92, %v181
    %v183 = vpop.f32.mrb[0].mxu0
    %v184 = vpop.f32.mrb[0].mxu0
    %v185 = vadd.f32 %v92, %v184
    %v186 = vpop.f32.mrb[0].mxu0
    %187 = vmatprep.mubr.bf16.mxu0 0
    %188 = vmatmul.mubr.bf16.gmra.mrb[0].mxu0 %v108
    %v189 = vpop.f32.mrb[0].mxu0
    %v190 = vadd.f32 %v92, %v189
    %v191 = vpop.f32.mrb[0].mxu0
    %v192 = vpop.f32.mrb[0].mxu0
    %v193 = vadd.f32 %v92, %v192
    %v194 = vpop.f32.mrb[0].mxu0
    %195 = vmatprep.mubr.bf16.mxu0 0
    %196 = vmatmul.mubr.bf16.gmra.mrb[0].mxu0 %v111
    %v197 = vpop.f32.mrb[0].mxu0
    %v198 = vadd.f32 %v92, %v197
    %v199 = vpop.f32.mrb[0].mxu0
    %v200 = vpop.f32.mrb[0].mxu0
    %v201 = vadd.f32 %v92, %v200
    %v202 = vpop.f32.mrb[0].mxu0
    %203 = vmatprep.mubr.bf16.mxu0 0
    %204 = vmatmul.mubr.bf16.gmra.mrb[0].mxu0 %v114
    %v205 = vpop.f32.mrb[0].mxu0
    %v206 = vadd.f32 %v92, %v205
    %v207 = vpop.f32.mrb[0].mxu0
    %v208 = vpop.f32.mrb[0].mxu0
    %v209 = vadd.f32 %v92, %v208
    %v210 = vpop.f32.mrb[0].mxu0
    %211 = vmatprep.mubr.bf16.mxu0 0
    %212 = vmatmul.mubr.bf16.gmra.mrb[0].mxu0 %v117
    %v213 = vpop.f32.mrb[0].mxu0
    %v214 = vadd.f32 %v92, %v213
    %v215 = vpop.f32.mrb[0].mxu0
    %v216 = vpop.f32.mrb[0].mxu0
    %v217 = vadd.f32 %v92, %v216
    %v218 = vpop.f32.mrb[0].mxu0
    %219 = vdwg.mxu0
    %v220 = vmax.f32 %v158, 0.0
    %v221 = vmax.f32 %v161, 0.0
    %v222 = vmax.f32 %v166, 0.0
    %v223 = vmax.f32 %v169, 0.0
    %v224 = vmax.f32 %v174, 0.0
    %v225 = vmax.f32 %v177, 0.0
    %v226 = vmax.f32 %v182, 0.0
    %v227 = vmax.f32 %v185, 0.0
    %v228 = vmax.f32 %v190, 0.0
    %v229 = vmax.f32 %v193, 0.0
    %v230 = vmax.f32 %v198, 0.0
    %v231 = vmax.f32 %v201, 0.0
    %v232 = vmax.f32 %v206, 0.0
    %v233 = vmax.f32 %v209, 0.0
    %v234 = vmax.f32 %v214, 0.0
    %v235 = vmax.f32 %v217, 0.0
    %v236 = vld [vmem:[%s3] sm:$0xff]
    %v237 = vld [vmem:[%s3 + $0x8] sm:$0xff]
    %v238 = vld [vmem:[%s3 + $0x10] sm:$0xff]
    %v239 = vld [vmem:[%s3 + $0x18] sm:$0xff]
    %v240 = vld [vmem:[%s3 + $0x20] sm:$0xff]
    %v241 = vld [vmem:[%s3 + $0x28] sm:$0xff]
    %v242 = vld [vmem:[%s3 + $0x30] sm:$0xff]
    %v243 = vld [vmem:[%s3 + $0x38] sm:$0xff]
    %v244 = vld [vmem:[%s3 + $0x40] sm:$0xff]
    %v245 = vld [vmem:[%s3 + $0x48] sm:$0xff]
    %v246 = vld [vmem:[%s3 + $0x50] sm:$0xff]
    %v247 = vld [vmem:[%s3 + $0x58] sm:$0xff]
    %v248 = vld [vmem:[%s3 + $0x60] sm:$0xff]
    %v249 = vld [vmem:[%s3 + $0x68] sm:$0xff]
    %v250 = vld [vmem:[%s3 + $0x70] sm:$0xff]
    %v251 = vld [vmem:[%s3 + $0x78] sm:$0xff]
    %v252 = vld [vmem:[%s3 + $0x80] sm:$0xff]
    %v253 = vld [vmem:[%s3 + $0x88] sm:$0xff]
    %v254 = vld [vmem:[%s3 + $0x90] sm:$0xff]
    %v255 = vld [vmem:[%s3 + $0x98] sm:$0xff]
    %v256 = vld [vmem:[%s3 + $0xa0] sm:$0xff]
    %v257 = vld [vmem:[%s3 + $0xa8] sm:$0xff]
    %v258 = vld [vmem:[%s3 + $0xb0] sm:$0xff]
    %v259 = vld [vmem:[%s3 + $0xb8] sm:$0xff]
    %v260 = vld [vmem:[%s3 + $0xc0] sm:$0xff]
    %v261 = vld [vmem:[%s3 + $0xc8] sm:$0xff]
    %v262 = vld [vmem:[%s3 + $0xd0] sm:$0xff]
    %v263 = vld [vmem:[%s3 + $0xd8] sm:$0xff]
    %v264 = vld [vmem:[%s3 + $0xe0] sm:$0xff]
    %v265 = vld [vmem:[%s3 + $0xe8] sm:$0xff]
    %v266 = vld [vmem:[%s3 + $0xf0] sm:$0xff]
    %v267 = vld [vmem:[%s3 + $0xf8] sm:$0xff]
    %v268 = vld [vmem:[%s4] sm:$0x3]
    %v269 = vpack.c.bf16 %v221, %v220
    %v270 = vpack.c.bf16 %v223, %v222
    %v271 = vpack.c.bf16 %v225, %v224
    %v272 = vpack.c.bf16 %v227, %v226
    %v273 = vpack.c.bf16 %v229, %v228
    %v274 = vpack.c.bf16 %v231, %v230
    %v275 = vpack.c.bf16 %v233, %v232
    %v276 = vpack.c.bf16 %v235, %v234
    %v277 = vpack.c.bf16 %v238, %v236
    %v278 = vpack.c.bf16 %v239, %v237
    %v279 = vpack.c.bf16 %v242, %v240
    %v280 = vpack.c.bf16 %v243, %v241
    %v281 = vpack.c.bf16 %v246, %v244
    %v282 = vpack.c.bf16 %v247, %v245
    %v283 = vpack.c.bf16 %v250, %v248
    %v284 = vpack.c.bf16 %v251, %v249
    %v285 = vpack.c.bf16 %v254, %v252
    %v286 = vpack.c.bf16 %v255, %v253
    %v287 = vpack.c.bf16 %v258, %v256
    %v288 = vpack.c.bf16 %v259, %v257
    %v289 = vpack.c.bf16 %v262, %v260
    %v290 = vpack.c.bf16 %v263, %v261
    %v291 = vpack.c.bf16 %v266, %v264
    %v292 = vpack.c.bf16 %v267, %v265
    %v294 = vlaneseq
    %v295 = vshrl.u32 %v294, 7
    %v296 = vsub.s32 0, %v295
    %v297 = vrot.slane %v268, %v296
    %v298 = vlaneseq
    %v299 = vshrl.u32 %v298, 7
    %v300 = vsub.s32 1, %v299
    %v301 = vrot.slane %v268, %v300
    %304 = vmatprep.subr.bf16.mxu0 %v278
    %305 = vmatpush1.bf16.msra.mxu0 %v277
    %306 = vmatprep.subr.bf16.mxu0 %v280
    %307 = vmatpush1.bf16.msra.mxu0 %v279
    %308 = vmatprep.subr.bf16.mxu0 %v282
    %309 = vmatpush1.bf16.msra.mxu0 %v281
    %310 = vmatprep.subr.bf16.mxu0 %v284
    %311 = vmatpush1.bf16.msra.mxu0 %v283
    %312 = vmatprep.subr.bf16.mxu0 %v286
    %313 = vmatpush1.bf16.msra.mxu0 %v285
    %314 = vmatprep.subr.bf16.mxu0 %v288
    %315 = vmatpush1.bf16.msra.mxu0 %v287
    %316 = vmatprep.subr.bf16.mxu0 %v290
    %317 = vmatpush1.bf16.msra.mxu0 %v289
    %318 = vmatprep.subr.bf16.mxu0 %v292
    %319 = vmatpush1.bf16.msra.mxu0 %v291
    %320 = vmatprep.subr.bf16.mxu0 0
    %321 = vmatpush1.bf16.msra.mxu0 0
    %322 = vmatprep.subr.bf16.mxu0 0
    %323 = vmatpush1.bf16.msra.mxu0 0
    %324 = vmatprep.subr.bf16.mxu0 0
    %325 = vmatpush1.bf16.msra.mxu0 0
    %326 = vmatprep.subr.bf16.mxu0 0
    %327 = vmatpush1.bf16.msra.mxu0 0
    %328 = vmatprep.subr.bf16.mxu0 0
    %329 = vmatpush1.bf16.msra.mxu0 0
    %330 = vmatprep.subr.bf16.mxu0 0
    %331 = vmatpush1.bf16.msra.mxu0 0
    %332 = vmatprep.subr.bf16.mxu0 0
    %333 = vmatpush1.bf16.msra.mxu0 0
    %334 = vmatprep.subr.bf16.mxu0 0
    %335 = vmatpush1.bf16.msra.mxu0 0
    %336 = vmatprep.mubr.bf16.mxu0 0
    %337 = vmatmul.mubr.bf16.gmra.mrb[0].mxu0 %v269
    %v338 = vpop.f32.mrb[0].mxu0
    %v339 = vadd.f32 %v297, %v338
    %v340 = vpop.f32.mrb[0].mxu0
    %v341 = vadd.f32 %v301, %v340
    %v342 = vpop.f32.mrb[0].mxu0
    %v343 = vadd.f32 %v297, %v342
    %v344 = vpop.f32.mrb[0].mxu0
    %v345 = vadd.f32 %v301, %v344
    %346 = vmatprep.mubr.bf16.mxu0 0
    %347 = vmatmul.mubr.bf16.gmra.mrb[0].mxu0 %v270
    %v348 = vpop.f32.mrb[0].mxu0
    %v349 = vadd.f32 %v297, %v348
    %v350 = vpop.f32.mrb[0].mxu0
    %v351 = vadd.f32 %v301, %v350
    %v352 = vpop.f32.mrb[0].mxu0
    %v353 = vadd.f32 %v297, %v352
    %v354 = vpop.f32.mrb[0].mxu0
    %v355 = vadd.f32 %v301, %v354
    %356 = vmatprep.mubr.bf16.mxu0 0
    %357 = vmatmul.mubr.bf16.gmra.mrb[0].mxu0 %v271
    %v358 = vpop.f32.mrb[0].mxu0
    %v359 = vadd.f32 %v297, %v358
    %v360 = vpop.f32.mrb[0].mxu0
    %v361 = vadd.f32 %v301, %v360
    %v362 = vpop.f32.mrb[0].mxu0
    %v363 = vadd.f32 %v297, %v362
    %v364 = vpop.f32.mrb[0].mxu0
    %v365 = vadd.f32 %v301, %v364
    %366 = vmatprep.mubr.bf16.mxu0 0
    %367 = vmatmul.mubr.bf16.gmra.mrb[0].mxu0 %v272
    %v368 = vpop.f32.mrb[0].mxu0
    %v369 = vadd.f32 %v297, %v368
    %v370 = vpop.f32.mrb[0].mxu0
    %v371 = vadd.f32 %v301, %v370
    %v372 = vpop.f32.mrb[0].mxu0
    %v373 = vadd.f32 %v297, %v372
    %v374 = vpop.f32.mrb[0].mxu0
    %v375 = vadd.f32 %v301, %v374
    %376 = vmatprep.mubr.bf16.mxu0 0
    %377 = vmatmul.mubr.bf16.gmra.mrb[0].mxu0 %v273
    %v378 = vpop.f32.mrb[0].mxu0
    %v379 = vadd.f32 %v297, %v378
    %v380 = vpop.f32.mrb[0].mxu0
    %v381 = vadd.f32 %v301, %v380
    %v382 = vpop.f32.mrb[0].mxu0
    %v383 = vadd.f32 %v297, %v382
    %v384 = vpop.f32.mrb[0].mxu0
    %v385 = vadd.f32 %v301, %v384
    %386 = vmatprep.mubr.bf16.mxu0 0
    %387 = vmatmul.mubr.bf16.gmra.mrb[0].mxu0 %v274
    %v388 = vpop.f32.mrb[0].mxu0
    %v389 = vadd.f32 %v297, %v388
    %v390 = vpop.f32.mrb[0].mxu0
    %v391 = vadd.f32 %v301, %v390
    %v392 = vpop.f32.mrb[0].mxu0
    %v393 = vadd.f32 %v297, %v392
    %v394 = vpop.f32.mrb[0].mxu0
    %v395 = vadd.f32 %v301, %v394
    %396 = vmatprep.mubr.bf16.mxu0 0
    %397 = vmatmul.mubr.bf16.gmra.mrb[0].mxu0 %v275
    %v398 = vpop.f32.mrb[0].mxu0
    %v399 = vadd.f32 %v297, %v398
    %v400 = vpop.f32.mrb[0].mxu0
    %v401 = vadd.f32 %v301, %v400
    %v402 = vpop.f32.mrb[0].mxu0
    %v403 = vadd.f32 %v297, %v402
    %v404 = vpop.f32.mrb[0].mxu0
    %v405 = vadd.f32 %v301, %v404
    %406 = vmatprep.mubr.bf16.mxu0 0
    %407 = vmatmul.mubr.bf16.gmra.mrb[0].mxu0 %v276
    %v408 = vpop.f32.mrb[0].mxu0
    %v409 = vadd.f32 %v297, %v408
    %v410 = vpop.f32.mrb[0].mxu0
    %v411 = vadd.f32 %v301, %v410
    %v412 = vpop.f32.mrb[0].mxu0
    %v413 = vadd.f32 %v297, %v412
    %v414 = vpop.f32.mrb[0].mxu0
    %v415 = vadd.f32 %v301, %v414
    %416 = vdwg.mxu0
    %v417 = vmax.f32 %v339, 0.0
    %v418 = vmax.f32 %v341, 0.0
    %v419 = vmax.f32 %v343, 0.0
    %v420 = vmax.f32 %v345, 0.0
    %v421 = vmax.f32 %v349, 0.0
    %v422 = vmax.f32 %v351, 0.0
    %v423 = vmax.f32 %v353, 0.0
    %v424 = vmax.f32 %v355, 0.0
    %v425 = vmax.f32 %v359, 0.0
    %v426 = vmax.f32 %v361, 0.0
    %v427 = vmax.f32 %v363, 0.0
    %v428 = vmax.f32 %v365, 0.0
    %v429 = vmax.f32 %v369, 0.0
    %v430 = vmax.f32 %v371, 0.0
    %v431 = vmax.f32 %v373, 0.0
    %v432 = vmax.f32 %v375, 0.0
    %v433 = vmax.f32 %v379, 0.0
    %v434 = vmax.f32 %v381, 0.0
    %v435 = vmax.f32 %v383, 0.0
    %v436 = vmax.f32 %v385, 0.0
    %v437 = vmax.f32 %v389, 0.0
    %v438 = vmax.f32 %v391, 0.0
    %v439 = vmax.f32 %v393, 0.0
    %v440 = vmax.f32 %v395, 0.0
    %v441 = vmax.f32 %v399, 0.0
    %v442 = vmax.f32 %v401, 0.0
    %v443 = vmax.f32 %v403, 0.0
    %v444 = vmax.f32 %v405, 0.0
    %v445 = vmax.f32 %v409, 0.0
    %v446 = vmax.f32 %v411, 0.0
    %v447 = vmax.f32 %v413, 0.0
    %v448 = vmax.f32 %v415, 0.0
    %v449 = vld [vmem:[#allocation2] sm:$0xff]
    %v450 = vld [vmem:[#allocation2 + $0x8] sm:$0xff]
    %v451 = vld [vmem:[#allocation2 + $0x10] sm:$0xff]
    %v452 = vld [vmem:[#allocation2 + $0x18] sm:$0xff]
    %v453 = vld [vmem:[#allocation2 + $0x20] sm:$0xff]
    %v454 = vld [vmem:[#allocation2 + $0x28] sm:$0xff]
    %v455 = vld [vmem:[#allocation2 + $0x30] sm:$0xff]
    %v456 = vld [vmem:[#allocation2 + $0x38] sm:$0xff]
    %v457 = vld [vmem:[#allocation2 + $0x40] sm:$0xff]
    %v458 = vld [vmem:[#allocation2 + $0x48] sm:$0xff]
    %v459 = vld [vmem:[#allocation2 + $0x50] sm:$0xff]
    %v460 = vld [vmem:[#allocation2 + $0x58] sm:$0xff]
    %v461 = vld [vmem:[#allocation2 + $0x60] sm:$0xff]
    %v462 = vld [vmem:[#allocation2 + $0x68] sm:$0xff]
    %v463 = vld [vmem:[#allocation2 + $0x70] sm:$0xff]
    %v464 = vld [vmem:[#allocation2 + $0x78] sm:$0xff]
    %v465 = vld [vmem:[#allocation2 + $0x80] sm:$0xff]
    %v466 = vld [vmem:[#allocation2 + $0x88] sm:$0xff]
    %v467 = vld [vmem:[#allocation2 + $0x90] sm:$0xff]
    %v468 = vld [vmem:[#allocation2 + $0x98] sm:$0xff]
    %v469 = vld [vmem:[#allocation2 + $0xa0] sm:$0xff]
    %v470 = vld [vmem:[#allocation2 + $0xa8] sm:$0xff]
    %v471 = vld [vmem:[#allocation2 + $0xb0] sm:$0xff]
    %v472 = vld [vmem:[#allocation2 + $0xb8] sm:$0xff]
    %v473 = vld [vmem:[#allocation2 + $0xc0] sm:$0xff]
    %v474 = vld [vmem:[#allocation2 + $0xc8] sm:$0xff]
    %v475 = vld [vmem:[#allocation2 + $0xd0] sm:$0xff]
    %v476 = vld [vmem:[#allocation2 + $0xd8] sm:$0xff]
    %v477 = vld [vmem:[#allocation2 + $0xe0] sm:$0xff]
    %v478 = vld [vmem:[#allocation2 + $0xe8] sm:$0xff]
    %v479 = vld [vmem:[#allocation2 + $0xf0] sm:$0xff]
    %v480 = vld [vmem:[#allocation2 + $0xf8] sm:$0xff]
    %v481 = vld [vmem:[%s6] sm:$0x1]
    %v482 = vpack.c.bf16 %v419, %v417
    %v483 = vpack.c.bf16 %v420, %v418
    %v484 = vpack.c.bf16 %v423, %v421
    %v485 = vpack.c.bf16 %v424, %v422
    %v486 = vpack.c.bf16 %v427, %v425
    %v487 = vpack.c.bf16 %v428, %v426
    %v488 = vpack.c.bf16 %v431, %v429
    %v489 = vpack.c.bf16 %v432, %v430
    %v490 = vpack.c.bf16 %v435, %v433
    %v491 = vpack.c.bf16 %v436, %v434
    %v492 = vpack.c.bf16 %v439, %v437
    %v493 = vpack.c.bf16 %v440, %v438
    %v494 = vpack.c.bf16 %v443, %v441
    %v495 = vpack.c.bf16 %v444, %v442
    %v496 = vpack.c.bf16 %v447, %v445
    %v497 = vpack.c.bf16 %v448, %v446
    %v498 = vpack.c.bf16 %v450, %v449
    %v499 = vpack.c.bf16 %v452, %v451
    %v500 = vpack.c.bf16 %v454, %v453
    %v501 = vpack.c.bf16 %v456, %v455
    %v502 = vpack.c.bf16 %v458, %v457
    %v503 = vpack.c.bf16 %v460, %v459
    %v504 = vpack.c.bf16 %v462, %v461
    %v505 = vpack.c.bf16 %v464, %v463
    %v506 = vpack.c.bf16 %v466, %v465
    %v507 = vpack.c.bf16 %v468, %v467
    %v508 = vpack.c.bf16 %v470, %v469
    %v509 = vpack.c.bf16 %v472, %v471
    %v510 = vpack.c.bf16 %v474, %v473
    %v511 = vpack.c.bf16 %v476, %v475
    %v512 = vpack.c.bf16 %v478, %v477
    %v513 = vpack.c.bf16 %v480, %v479
    %v515 = vlaneseq
    %v516 = vshrl.u32 %v515, 7
    %v517 = vsub.s32 0, %v516
    %v518 = vrot.slane %v481, %v517
    %520 = vmatprep.subr.bf16.mxu0 0
    %521 = vmatpush1.bf16.msra.mxu0 %v498
    %522 = vmatprep.subr.bf16.mxu0 0
    %523 = vmatpush1.bf16.msra.mxu0 %v499
    %524 = vmatprep.subr.bf16.mxu0 0
    %525 = vmatpush1.bf16.msra.mxu0 %v500
    %526 = vmatprep.subr.bf16.mxu0 0
    %527 = vmatpush1.bf16.msra.mxu0 %v501
    %528 = vmatprep.subr.bf16.mxu0 0
    %529 = vmatpush1.bf16.msra.mxu0 %v502
    %530 = vmatprep.subr.bf16.mxu0 0
    %531 = vmatpush1.bf16.msra.mxu0 %v503
    %532 = vmatprep.subr.bf16.mxu0 0
    %533 = vmatpush1.bf16.msra.mxu0 %v504
    %534 = vmatprep.subr.bf16.mxu0 0
    %535 = vmatpush1.bf16.msra.mxu0 %v505
    %536 = vmatprep.subr.bf16.mxu0 0
    %537 = vmatpush1.bf16.msra.mxu0 %v506
    %538 = vmatprep.subr.bf16.mxu0 0
    %539 = vmatpush1.bf16.msra.mxu0 %v507
    %540 = vmatprep.subr.bf16.mxu0 0
    %541 = vmatpush1.bf16.msra.mxu0 %v508
    %542 = vmatprep.subr.bf16.mxu0 0
    %543 = vmatpush1.bf16.msra.mxu0 %v509
    %544 = vmatprep.subr.bf16.mxu0 0
    %545 = vmatpush1.bf16.msra.mxu0 %v510
    %546 = vmatprep.subr.bf16.mxu0 0
    %547 = vmatpush1.bf16.msra.mxu0 %v511
    %548 = vmatprep.subr.bf16.mxu0 0
    %549 = vmatpush1.bf16.msra.mxu0 %v512
    %550 = vmatprep.subr.bf16.mxu0 0
    %551 = vmatpush1.bf16.msra.mxu0 %v513
    %552 = vmatprep.mubr.bf16.mxu0 %v483
    %553 = vmatmul.mubr.bf16.gmra.mrb[0].mxu0 %v482
    %v554 = vpop.f32.mrb[0].mxu0
    %v555 = vadd.f32 %v518, %v554
    %v556 = vpop.f32.mrb[0].mxu0
    %v557 = vpop.f32.mrb[0].mxu0
    %v558 = vadd.f32 %v518, %v557
    %v559 = vpop.f32.mrb[0].mxu0
    %560 = vmatprep.mubr.bf16.mxu0 %v485
    %561 = vmatmul.mubr.bf16.gmra.mrb[0].mxu0 %v484
    %v562 = vpop.f32.mrb[0].mxu0
    %v563 = vadd.f32 %v518, %v562
    %v564 = vpop.f32.mrb[0].mxu0
    %v565 = vpop.f32.mrb[0].mxu0
    %v566 = vadd.f32 %v518, %v565
    %v567 = vpop.f32.mrb[0].mxu0
    %568 = vmatprep.mubr.bf16.mxu0 %v487
    %569 = vmatmul.mubr.bf16.gmra.mrb[0].mxu0 %v486
    %v570 = vpop.f32.mrb[0].mxu0
    %v571 = vadd.f32 %v518, %v570
    %v572 = vpop.f32.mrb[0].mxu0
    %v573 = vpop.f32.mrb[0].mxu0
    %v574 = vadd.f32 %v518, %v573
    %v575 = vpop.f32.mrb[0].mxu0
    %576 = vmatprep.mubr.bf16.mxu0 %v489
    %577 = vmatmul.mubr.bf16.gmra.mrb[0].mxu0 %v488
    %v578 = vpop.f32.mrb[0].mxu0
    %v579 = vadd.f32 %v518, %v578
    %v580 = vpop.f32.mrb[0].mxu0
    %v581 = vpop.f32.mrb[0].mxu0
    %v582 = vadd.f32 %v518, %v581
    %v583 = vpop.f32.mrb[0].mxu0
    %584 = vmatprep.mubr.bf16.mxu0 %v491
    %585 = vmatmul.mubr.bf16.gmra.mrb[0].mxu0 %v490
    %v586 = vpop.f32.mrb[0].mxu0
    %v587 = vadd.f32 %v518, %v586
    %v588 = vpop.f32.mrb[0].mxu0
    %v589 = vpop.f32.mrb[0].mxu0
    %v590 = vadd.f32 %v518, %v589
    %v591 = vpop.f32.mrb[0].mxu0
    %592 = vmatprep.mubr.bf16.mxu0 %v493
    %593 = vmatmul.mubr.bf16.gmra.mrb[0].mxu0 %v492
    %v594 = vpop.f32.mrb[0].mxu0
    %v595 = vadd.f32 %v518, %v594
    %v596 = vpop.f32.mrb[0].mxu0
    %v597 = vpop.f32.mrb[0].mxu0
    %v598 = vadd.f32 %v518, %v597
    %v599 = vpop.f32.mrb[0].mxu0
    %600 = vmatprep.mubr.bf16.mxu0 %v495
    %601 = vmatmul.mubr.bf16.gmra.mrb[0].mxu0 %v494
    %v602 = vpop.f32.mrb[0].mxu0
    %v603 = vadd.f32 %v518, %v602
    %v604 = vpop.f32.mrb[0].mxu0
    %v605 = vpop.f32.mrb[0].mxu0
    %v606 = vadd.f32 %v518, %v605
    %v607 = vpop.f32.mrb[0].mxu0
    %608 = vmatprep.mubr.bf16.mxu0 %v497
    %609 = vmatmul.mubr.bf16.gmra.mrb[0].mxu0 %v496
    %v610 = vpop.f32.mrb[0].mxu0
    %v611 = vadd.f32 %v518, %v610
    %v612 = vpop.f32.mrb[0].mxu0
    %v613 = vpop.f32.mrb[0].mxu0
    %v614 = vadd.f32 %v518, %v613
    %v615 = vpop.f32.mrb[0].mxu0
    %616 = vdwg.mxu0
    %v617 = vmax.f32 %v555, 0.0
    %v618 = vmax.f32 %v558, 0.0
    %v619 = vmax.f32 %v563, 0.0
    %v620 = vmax.f32 %v566, 0.0
    %v621 = vmax.f32 %v571, 0.0
    %v622 = vmax.f32 %v574, 0.0
    %v623 = vmax.f32 %v579, 0.0
    %v624 = vmax.f32 %v582, 0.0
    %v625 = vmax.f32 %v587, 0.0
    %v626 = vmax.f32 %v590, 0.0
    %v627 = vmax.f32 %v595, 0.0
    %v628 = vmax.f32 %v598, 0.0
    %v629 = vmax.f32 %v603, 0.0
    %v630 = vmax.f32 %v606, 0.0
    %v631 = vmax.f32 %v611, 0.0
    %v632 = vmax.f32 %v614, 0.0
    %v633 = vld [vmem:[#allocation4] sm:$0xff]
    %v634 = vld [vmem:[#allocation4 + $0x8] sm:$0xff]
    %v635 = vld [vmem:[#allocation4 + $0x10] sm:$0xff]
    %v636 = vld [vmem:[#allocation4 + $0x18] sm:$0xff]
    %v637 = vld [vmem:[#allocation4 + $0x20] sm:$0xff]
    %v638 = vld [vmem:[#allocation4 + $0x28] sm:$0xff]
    %v639 = vld [vmem:[#allocation4 + $0x30] sm:$0xff]
    %v640 = vld [vmem:[#allocation4 + $0x38] sm:$0xff]
    %v641 = vld [vmem:[#allocation4 + $0x40] sm:$0xff]
    %v642 = vld [vmem:[#allocation4 + $0x48] sm:$0xff]
    %v643 = vld [vmem:[#allocation4 + $0x50] sm:$0xff]
    %v644 = vld [vmem:[#allocation4 + $0x58] sm:$0xff]
    %v645 = vld [vmem:[#allocation4 + $0x60] sm:$0xff]
    %v646 = vld [vmem:[#allocation4 + $0x68] sm:$0xff]
    %v647 = vld [vmem:[#allocation4 + $0x70] sm:$0xff]
    %v648 = vld [vmem:[#allocation4 + $0x78] sm:$0xff]
    %v649 = vld [vmem:[#allocation4 + $0x80] sm:$0xff]
    %v650 = vld [vmem:[#allocation4 + $0x88] sm:$0xff]
    %v651 = vld [vmem:[#allocation4 + $0x90] sm:$0xff]
    %v652 = vld [vmem:[#allocation4 + $0x98] sm:$0xff]
    %v653 = vld [vmem:[#allocation4 + $0xa0] sm:$0xff]
    %v654 = vld [vmem:[#allocation4 + $0xa8] sm:$0xff]
    %v655 = vld [vmem:[#allocation4 + $0xb0] sm:$0xff]
    %v656 = vld [vmem:[#allocation4 + $0xb8] sm:$0xff]
    %v657 = vld [vmem:[#allocation4 + $0xc0] sm:$0xff]
    %v658 = vld [vmem:[#allocation4 + $0xc8] sm:$0xff]
    %v659 = vld [vmem:[#allocation4 + $0xd0] sm:$0xff]
    %v660 = vld [vmem:[#allocation4 + $0xd8] sm:$0xff]
    %v661 = vld [vmem:[#allocation4 + $0xe0] sm:$0xff]
    %v662 = vld [vmem:[#allocation4 + $0xe8] sm:$0xff]
    %v663 = vld [vmem:[#allocation4 + $0xf0] sm:$0xff]
    %v664 = vld [vmem:[#allocation4 + $0xf8] sm:$0xff]
    %v665 = vld [vmem:[%s8] sm:$0x3]
    %v666 = vpack.c.bf16 %v618, %v617
    %v667 = vpack.c.bf16 %v620, %v619
    %v668 = vpack.c.bf16 %v622, %v621
    %v669 = vpack.c.bf16 %v624, %v623
    %v670 = vpack.c.bf16 %v626, %v625
    %v671 = vpack.c.bf16 %v628, %v627
    %v672 = vpack.c.bf16 %v630, %v629
    %v673 = vpack.c.bf16 %v632, %v631
    %v674 = vpack.c.bf16 %v635, %v633
    %v675 = vpack.c.bf16 %v636, %v634
    %v676 = vpack.c.bf16 %v639, %v637
    %v677 = vpack.c.bf16 %v640, %v638
    %v678 = vpack.c.bf16 %v643, %v641
    %v679 = vpack.c.bf16 %v644, %v642
    %v680 = vpack.c.bf16 %v647, %v645
    %v681 = vpack.c.bf16 %v648, %v646
    %v682 = vpack.c.bf16 %v651, %v649
    %v683 = vpack.c.bf16 %v652, %v650
    %v684 = vpack.c.bf16 %v655, %v653
    %v685 = vpack.c.bf16 %v656, %v654
    %v686 = vpack.c.bf16 %v659, %v657
    %v687 = vpack.c.bf16 %v660, %v658
    %v688 = vpack.c.bf16 %v663, %v661
    %v689 = vpack.c.bf16 %v664, %v662
    %v691 = vlaneseq
    %v692 = vshrl.u32 %v691, 7
    %v693 = vsub.s32 0, %v692
    %v694 = vrot.slane %v665, %v693
    %v695 = vlaneseq
    %v696 = vshrl.u32 %v695, 7
    %v697 = vsub.s32 1, %v696
    %v698 = vrot.slane %v665, %v697
    %701 = vmatprep.subr.bf16.mxu0 %v675
    %702 = vmatpush1.bf16.msra.mxu0 %v674
    %703 = vmatprep.subr.bf16.mxu0 %v677
    %704 = vmatpush1.bf16.msra.mxu0 %v676
    %705 = vmatprep.subr.bf16.mxu0 %v679
    %706 = vmatpush1.bf16.msra.mxu0 %v678
    %707 = vmatprep.subr.bf16.mxu0 %v681
    %708 = vmatpush1.bf16.msra.mxu0 %v680
    %709 = vmatprep.subr.bf16.mxu0 %v683
    %710 = vmatpush1.bf16.msra.mxu0 %v682
    %711 = vmatprep.subr.bf16.mxu0 %v685
    %712 = vmatpush1.bf16.msra.mxu0 %v684
    %713 = vmatprep.subr.bf16.mxu0 %v687
    %714 = vmatpush1.bf16.msra.mxu0 %v686
    %715 = vmatprep.subr.bf16.mxu0 %v689
    %716 = vmatpush1.bf16.msra.mxu0 %v688
    %717 = vmatprep.subr.bf16.mxu0 0
    %718 = vmatpush1.bf16.msra.mxu0 0
    %719 = vmatprep.subr.bf16.mxu0 0
    %720 = vmatpush1.bf16.msra.mxu0 0
    %721 = vmatprep.subr.bf16.mxu0 0
    %722 = vmatpush1.bf16.msra.mxu0 0
    %723 = vmatprep.subr.bf16.mxu0 0
    %724 = vmatpush1.bf16.msra.mxu0 0
    %725 = vmatprep.subr.bf16.mxu0 0
    %726 = vmatpush1.bf16.msra.mxu0 0
    %727 = vmatprep.subr.bf16.mxu0 0
    %728 = vmatpush1.bf16.msra.mxu0 0
    %729 = vmatprep.subr.bf16.mxu0 0
    %730 = vmatpush1.bf16.msra.mxu0 0
    %731 = vmatprep.subr.bf16.mxu0 0
    %732 = vmatpush1.bf16.msra.mxu0 0
    %733 = vmatprep.mubr.bf16.mxu0 0
    %734 = vmatmul.mubr.bf16.gmra.mrb[0].mxu0 %v666
    %v735 = vpop.f32.mrb[0].mxu0
    %v736 = vadd.f32 %v694, %v735
    %v737 = vpop.f32.mrb[0].mxu0
    %v738 = vadd.f32 %v698, %v737
    %v739 = vpop.f32.mrb[0].mxu0
    %v740 = vadd.f32 %v694, %v739
    %v741 = vpop.f32.mrb[0].mxu0
    %v742 = vadd.f32 %v698, %v741
    %743 = vmatprep.mubr.bf16.mxu0 0
    %744 = vmatmul.mubr.bf16.gmra.mrb[0].mxu0 %v667
    %v745 = vpop.f32.mrb[0].mxu0
    %v746 = vadd.f32 %v694, %v745
    %v747 = vpop.f32.mrb[0].mxu0
    %v748 = vadd.f32 %v698, %v747
    %v749 = vpop.f32.mrb[0].mxu0
    %v750 = vadd.f32 %v694, %v749
    %v751 = vpop.f32.mrb[0].mxu0
    %v752 = vadd.f32 %v698, %v751
    %753 = vmatprep.mubr.bf16.mxu0 0
    %754 = vmatmul.mubr.bf16.gmra.mrb[0].mxu0 %v668
    %v755 = vpop.f32.mrb[0].mxu0
    %v756 = vadd.f32 %v694, %v755
    %v757 = vpop.f32.mrb[0].mxu0
    %v758 = vadd.f32 %v698, %v757
    %v759 = vpop.f32.mrb[0].mxu0
    %v760 = vadd.f32 %v694, %v759
    %v761 = vpop.f32.mrb[0].mxu0
    %v762 = vadd.f32 %v698, %v761
    %763 = vmatprep.mubr.bf16.mxu0 0
    %764 = vmatmul.mubr.bf16.gmra.mrb[0].mxu0 %v669
    %v765 = vpop.f32.mrb[0].mxu0
    %v766 = vadd.f32 %v694, %v765
    %v767 = vpop.f32.mrb[0].mxu0
    %v768 = vadd.f32 %v698, %v767
    %v769 = vpop.f32.mrb[0].mxu0
    %v770 = vadd.f32 %v694, %v769
    %v771 = vpop.f32.mrb[0].mxu0
    %v772 = vadd.f32 %v698, %v771
    %773 = vmatprep.mubr.bf16.mxu0 0
    %774 = vmatmul.mubr.bf16.gmra.mrb[0].mxu0 %v670
    %v775 = vpop.f32.mrb[0].mxu0
    %v776 = vadd.f32 %v694, %v775
    %v777 = vpop.f32.mrb[0].mxu0
    %v778 = vadd.f32 %v698, %v777
    %v779 = vpop.f32.mrb[0].mxu0
    %v780 = vadd.f32 %v694, %v779
    %v781 = vpop.f32.mrb[0].mxu0
    %v782 = vadd.f32 %v698, %v781
    %783 = vmatprep.mubr.bf16.mxu0 0
    %784 = vmatmul.mubr.bf16.gmra.mrb[0].mxu0 %v671
    %v785 = vpop.f32.mrb[0].mxu0
    %v786 = vadd.f32 %v694, %v785
    %v787 = vpop.f32.mrb[0].mxu0
    %v788 = vadd.f32 %v698, %v787
    %v789 = vpop.f32.mrb[0].mxu0
    %v790 = vadd.f32 %v694, %v789
    %v791 = vpop.f32.mrb[0].mxu0
    %v792 = vadd.f32 %v698, %v791
    %793 = vmatprep.mubr.bf16.mxu0 0
    %794 = vmatmul.mubr.bf16.gmra.mrb[0].mxu0 %v672
    %v795 = vpop.f32.mrb[0].mxu0
    %v796 = vadd.f32 %v694, %v795
    %v797 = vpop.f32.mrb[0].mxu0
    %v798 = vadd.f32 %v698, %v797
    %v799 = vpop.f32.mrb[0].mxu0
    %v800 = vadd.f32 %v694, %v799
    %v801 = vpop.f32.mrb[0].mxu0
    %v802 = vadd.f32 %v698, %v801
    %803 = vmatprep.mubr.bf16.mxu0 0
    %804 = vmatmul.mubr.bf16.gmra.mrb[0].mxu0 %v673
    %v805 = vpop.f32.mrb[0].mxu0
    %v806 = vadd.f32 %v694, %v805
    %v807 = vpop.f32.mrb[0].mxu0
    %v808 = vadd.f32 %v698, %v807
    %v809 = vpop.f32.mrb[0].mxu0
    %v810 = vadd.f32 %v694, %v809
    %v811 = vpop.f32.mrb[0].mxu0
    %v812 = vadd.f32 %v698, %v811
    %813 = vdwg.mxu0
    %814 = vst [vmem:[%s9] sm:$0xff] %v736
    %815 = vst [vmem:[%s9 + $0x8] sm:$0xff] %v738
    %816 = vst [vmem:[%s9 + $0x10] sm:$0xff] %v740
    %817 = vst [vmem:[%s9 + $0x18] sm:$0xff] %v742
    %818 = vst [vmem:[%s9 + $0x20] sm:$0xff] %v746
    %819 = vst [vmem:[%s9 + $0x28] sm:$0xff] %v748
    %820 = vst [vmem:[%s9 + $0x30] sm:$0xff] %v750
    %821 = vst [vmem:[%s9 + $0x38] sm:$0xff] %v752
    %822 = vst [vmem:[%s9 + $0x40] sm:$0xff] %v756
    %823 = vst [vmem:[%s9 + $0x48] sm:$0xff] %v758
    %824 = vst [vmem:[%s9 + $0x50] sm:$0xff] %v760
    %825 = vst [vmem:[%s9 + $0x58] sm:$0xff] %v762
    %826 = vst [vmem:[%s9 + $0x60] sm:$0xff] %v766
    %827 = vst [vmem:[%s9 + $0x68] sm:$0xff] %v768
    %828 = vst [vmem:[%s9 + $0x70] sm:$0xff] %v770
    %829 = vst [vmem:[%s9 + $0x78] sm:$0xff] %v772
    %830 = vst [vmem:[%s9 + $0x80] sm:$0xff] %v776
    %831 = vst [vmem:[%s9 + $0x88] sm:$0xff] %v778
    %832 = vst [vmem:[%s9 + $0x90] sm:$0xff] %v780
    %833 = vst [vmem:[%s9 + $0x98] sm:$0xff] %v782
    %834 = vst [vmem:[%s9 + $0xa0] sm:$0xff] %v786
    %835 = vst [vmem:[%s9 + $0xa8] sm:$0xff] %v788
    %836 = vst [vmem:[%s9 + $0xb0] sm:$0xff] %v790
    %837 = vst [vmem:[%s9 + $0xb8] sm:$0xff] %v792
    %838 = vst [vmem:[%s9 + $0xc0] sm:$0xff] %v796
    %839 = vst [vmem:[%s9 + $0xc8] sm:$0xff] %v798
    %840 = vst [vmem:[%s9 + $0xd0] sm:$0xff] %v800
    %841 = vst [vmem:[%s9 + $0xd8] sm:$0xff] %v802
    %842 = vst [vmem:[%s9 + $0xe0] sm:$0xff] %v806
    %843 = vst [vmem:[%s9 + $0xe8] sm:$0xff] %v808
    %844 = vst [vmem:[%s9 + $0xf0] sm:$0xff] %v810
    %845 = vst [vmem:[%s9 + $0xf8] sm:$0xff] %v812
    // Predicated region
    $region46: #{mpnn_linear_forward.4} parent=1 // pred_check
      _
    $region47: #{mpnn_linear_forward.4} parent=1 // pred_check_branch
      %847 = sbr.rel (0) target = $region49
    $region48: #{mpnn_linear_forward.4} parent=1 // pred_region
      _
    $region49: #{mpnn_linear_forward.4} parent=1 // pred_fallthru
      _
    // Predicated region
    $region50: #{mpnn_linear_forward.4} parent=1 // pred_check
      _
    $region51: #{mpnn_linear_forward.4} parent=1 // pred_check_branch
      %849 = sbr.rel (0) target = $region53
    $region52: #{mpnn_linear_forward.4} parent=1 // pred_region
      _
    $region53: #{mpnn_linear_forward.4} parent=1 // pred_fallthru
      _
    %850 = vsyncpa [#allocation3], 1
    %851 = vsyncpa [#allocation5], 1

// kernel: mpnn_linear_forward.5
$region0: #{mpnn_linear_forward.5}
  #allocation0 [shape = 'u32[]', space=smem, size = 0x4, offset = 0x4, fixed_abs, tag = 'smem constant byte address 0x4 - core index']
  #allocation1 [shape = 'u32[144,128]{1,0:T(1,128)}', space=vmem, size = 0x12000, scoped, tag = 'internal scratch']
  %s0 = inlined_call_operand.vmem [shape: f32[2,8,8,16,16], index: 0, kind: input, shape index: {}]
  %s1 = inlined_call_operand.vmem [shape: f32[2,8,8], index: 1, kind: input, shape index: {}]
  %s2 = inlined_call_operand.vmem [shape: f32[2,8,16], index: 2, kind: input, shape index: {}]
  %s3 = inlined_call_operand.vmem [shape: f32[2,8,1], index: 3, kind: input, shape index: {}]
  %s4 = inlined_call_operand.vmem [shape: f32[16,48], index: 4, kind: input, shape index: {}]
  %s5 = inlined_call_operand.vmem [shape: f32[1,48], index: 5, kind: input, shape index: {}]
  %s6 = inlined_call_operand.vmem [shape: f32[16,48], index: 6, kind: input, shape index: {}]
  %s7 = inlined_call_operand.vmem [shape: f32[1,48], index: 7, kind: input, shape index: {}]
  %s8 = inlined_call_operand.vmem [shape: f32[2,8,16], index: 8, kind: output, shape index: {}]
  %s9 = sld [smem:[#allocation0]]
  $region65: #{mpnn_linear_forward.5} parent=0
    _
  %s11 = ssub.s32 1, %s9
  %s12 = scalar_select 0, %s11, %s9
  loop: start=0, step=1, limit=4
  $region2: #{mpnn_linear_forward.5} parent=0 // loop_pre_header
    _
  $region3: #{mpnn_linear_forward.5} parent=0 // loop_header
    %s14 = sphi 0, %s18
    %p15 = scmp.ge.s32.totalorder %s14, 4
    %s24 = sphi 0, %s26
    %s27 = sphi 0, %s24
    %s28 = sphi 0, %s27
    %s44 = sphi 0, %s28
    %s50 = sphi 0, %s52
    %s53 = sphi 0, %s50
    %s54 = sphi 0, %s53
    %s70 = sphi 0, %s54
    %s76 = sphi 0, %s78
    %s79 = sphi 0, %s76
    %s80 = sphi 0, %s79
    %s96 = sphi 0, %s80
    %s102 = sphi 0, %s104
    %s105 = sphi 0, %s102
    %s106 = sphi 0, %s105
    %s122 = sphi 0, %s106
    %s126 = sphi 0, %s126
    %s128 = sphi 0, %s126
    %s129 = sphi 0, %s128
    %s143 = sphi 0, %s129
    %s147 = sphi 0, %s147
    %s149 = sphi 0, %s147
    %s150 = sphi 0, %s149
    %s164 = sphi 0, %s150
    %s168 = sphi 0, %s168
    %s170 = sphi 0, %s168
    %s171 = sphi 0, %s170
    %s185 = sphi 0, %s171
    %s189 = sphi 0, %s189
    %s191 = sphi 0, %s189
    %s192 = sphi 0, %s191
    %s206 = sphi 0, %s192
    %s212 = sphi 0, %s214
    %s215 = sphi 0, %s212
    %s216 = sphi 0, %s215
    %s232 = sphi 0, %s216
  $region4: #{mpnn_linear_forward.5} parent=0 // loop_header_branch
    %17 = sbr.rel (%p15) target = $region8
  $region5: #{mpnn_linear_forward.5} parent=0 // loop_body
    %s19 = ssub.s32 %s14, 1
    %s20 = ssub.s32 %s14, 2
    %s21 = sadd.s32 %s14, 1
    %s22 = ssub.s32 %s14, %s21
    %p23 = scmp.eq.s32.totalorder %s22, 0
    %s25 = sadd.s32 %s24, 1
    %s26 = scalar_select %p23, %s24, %s25
    %p29 = pneg %p23
    %p30 = scmp.eq.s32.totalorder %s14, 1
    %p31 = por %p29, %p30
    %p32 = scmp.ne.s32.totalorder %s24, %s27
    %p33 = scmp.eq.s32.totalorder %s14, 0
    %p34 = por %p32, %p33
    %p35 = scmp.ne.s32.totalorder %s24, %s27
    %p36 = scmp.eq.s32.totalorder %s19, 1
    %p37 = por %p35, %p36
    %p38 = scmp.ne.s32.totalorder %s27, %s28
    %p39 = scmp.eq.s32.totalorder %s19, 0
    %p40 = por %p38, %p39
    %p41 = scmp.ne.s32.totalorder %s27, %s28
    %p42 = scmp.eq.s32.totalorder %s20, 1
    %p43 = por %p41, %p42
    %p45 = scmp.ne.s32.totalorder %s28, %s44
    %p46 = scmp.eq.s32.totalorder %s20, 0
    %p47 = por %p45, %p46
    %s48 = ssub.s32 %s14, %s21
    %p49 = scmp.eq.s32.totalorder %s48, 0
    %s51 = sadd.s32 %s50, 1
    %s52 = scalar_select %p49, %s50, %s51
    %p55 = pneg %p49
    %p56 = scmp.eq.s32.totalorder %s14, 1
    %p57 = por %p55, %p56
    %p58 = scmp.ne.s32.totalorder %s50, %s53
    %p59 = scmp.eq.s32.totalorder %s14, 0
    %p60 = por %p58, %p59
    %p61 = scmp.ne.s32.totalorder %s50, %s53
    %p62 = scmp.eq.s32.totalorder %s19, 1
    %p63 = por %p61, %p62
    %p64 = scmp.ne.s32.totalorder %s53, %s54
    %p65 = scmp.eq.s32.totalorder %s19, 0
    %p66 = por %p64, %p65
    %p67 = scmp.ne.s32.totalorder %s53, %s54
    %p68 = scmp.eq.s32.totalorder %s20, 1
    %p69 = por %p67, %p68
    %p71 = scmp.ne.s32.totalorder %s54, %s70
    %p72 = scmp.eq.s32.totalorder %s20, 0
    %p73 = por %p71, %p72
    %s74 = ssub.s32 %s14, %s21
    %p75 = scmp.eq.s32.totalorder %s74, 0
    %s77 = sadd.s32 %s76, 1
    %s78 = scalar_select %p75, %s76, %s77
    %p81 = pneg %p75
    %p82 = scmp.eq.s32.totalorder %s14, 1
    %p83 = por %p81, %p82
    %p84 = scmp.ne.s32.totalorder %s76, %s79
    %p85 = scmp.eq.s32.totalorder %s14, 0
    %p86 = por %p84, %p85
    %p87 = scmp.ne.s32.totalorder %s76, %s79
    %p88 = scmp.eq.s32.totalorder %s19, 1
    %p89 = por %p87, %p88
    %p90 = scmp.ne.s32.totalorder %s79, %s80
    %p91 = scmp.eq.s32.totalorder %s19, 0
    %p92 = por %p90, %p91
    %p93 = scmp.ne.s32.totalorder %s79, %s80
    %p94 = scmp.eq.s32.totalorder %s20, 1
    %p95 = por %p93, %p94
    %p97 = scmp.ne.s32.totalorder %s80, %s96
    %p98 = scmp.eq.s32.totalorder %s20, 0
    %p99 = por %p97, %p98
    %s100 = ssub.s32 %s14, %s21
    %p101 = scmp.eq.s32.totalorder %s100, 0
    %s103 = sadd.s32 %s102, 1
    %s104 = scalar_select %p101, %s102, %s103
    %p107 = pneg %p101
    %p108 = scmp.eq.s32.totalorder %s14, 1
    %p109 = por %p107, %p108
    %p110 = scmp.ne.s32.totalorder %s102, %s105
    %p111 = scmp.eq.s32.totalorder %s14, 0
    %p112 = por %p110, %p111
    %p113 = scmp.ne.s32.totalorder %s102, %s105
    %p114 = scmp.eq.s32.totalorder %s19, 1
    %p115 = por %p113, %p114
    %p116 = scmp.ne.s32.totalorder %s105, %s106
    %p117 = scmp.eq.s32.totalorder %s19, 0
    %p118 = por %p116, %p117
    %p119 = scmp.ne.s32.totalorder %s105, %s106
    %p120 = scmp.eq.s32.totalorder %s20, 1
    %p121 = por %p119, %p120
    %p123 = scmp.ne.s32.totalorder %s106, %s122
    %p124 = scmp.eq.s32.totalorder %s20, 0
    %p125 = por %p123, %p124
    %s127 = sadd.s32 %s126, 1
    %p130 = scmp.eq.s32.totalorder %s14, 1
    %p131 = scmp.ne.s32.totalorder %s126, %s128
    %p132 = scmp.eq.s32.totalorder %s14, 0
    %p133 = por %p131, %p132
    %p134 = scmp.ne.s32.totalorder %s126, %s128
    %p135 = scmp.eq.s32.totalorder %s19, 1
    %p136 = por %p134, %p135
    %p137 = scmp.ne.s32.totalorder %s128, %s129
    %p138 = scmp.eq.s32.totalorder %s19, 0
    %p139 = por %p137, %p138
    %p140 = scmp.ne.s32.totalorder %s128, %s129
    %p141 = scmp.eq.s32.totalorder %s20, 1
    %p142 = por %p140, %p141
    %p144 = scmp.ne.s32.totalorder %s129, %s143
    %p145 = scmp.eq.s32.totalorder %s20, 0
    %p146 = por %p144, %p145
    %s148 = sadd.s32 %s147, 1
    %p151 = scmp.eq.s32.totalorder %s14, 1
    %p152 = scmp.ne.s32.totalorder %s147, %s149
    %p153 = scmp.eq.s32.totalorder %s14, 0
    %p154 = por %p152, %p153
    %p155 = scmp.ne.s32.totalorder %s147, %s149
    %p156 = scmp.eq.s32.totalorder %s19, 1
    %p157 = por %p155, %p156
    %p158 = scmp.ne.s32.totalorder %s149, %s150
    %p159 = scmp.eq.s32.totalorder %s19, 0
    %p160 = por %p158, %p159
    %p161 = scmp.ne.s32.totalorder %s149, %s150
    %p162 = scmp.eq.s32.totalorder %s20, 1
    %p163 = por %p161, %p162
    %p165 = scmp.ne.s32.totalorder %s150, %s164
    %p166 = scmp.eq.s32.totalorder %s20, 0
    %p167 = por %p165, %p166
    %s169 = sadd.s32 %s168, 1
    %p172 = scmp.eq.s32.totalorder %s14, 1
    %p173 = scmp.ne.s32.totalorder %s168, %s170
    %p174 = scmp.eq.s32.totalorder %s14, 0
    %p175 = por %p173, %p174
    %p176 = scmp.ne.s32.totalorder %s168, %s170
    %p177 = scmp.eq.s32.totalorder %s19, 1
    %p178 = por %p176, %p177
    %p179 = scmp.ne.s32.totalorder %s170, %s171
    %p180 = scmp.eq.s32.totalorder %s19, 0
    %p181 = por %p179, %p180
    %p182 = scmp.ne.s32.totalorder %s170, %s171
    %p183 = scmp.eq.s32.totalorder %s20, 1
    %p184 = por %p182, %p183
    %p186 = scmp.ne.s32.totalorder %s171, %s185
    %p187 = scmp.eq.s32.totalorder %s20, 0
    %p188 = por %p186, %p187
    %s190 = sadd.s32 %s189, 1
    %p193 = scmp.eq.s32.totalorder %s14, 1
    %p194 = scmp.ne.s32.totalorder %s189, %s191
    %p195 = scmp.eq.s32.totalorder %s14, 0
    %p196 = por %p194, %p195
    %p197 = scmp.ne.s32.totalorder %s189, %s191
    %p198 = scmp.eq.s32.totalorder %s19, 1
    %p199 = por %p197, %p198
    %p200 = scmp.ne.s32.totalorder %s191, %s192
    %p201 = scmp.eq.s32.totalorder %s19, 0
    %p202 = por %p200, %p201
    %p203 = scmp.ne.s32.totalorder %s191, %s192
    %p204 = scmp.eq.s32.totalorder %s20, 1
    %p205 = por %p203, %p204
    %p207 = scmp.ne.s32.totalorder %s192, %s206
    %p208 = scmp.eq.s32.totalorder %s20, 0
    %p209 = por %p207, %p208
    %s210 = ssub.s32 %s14, %s21
    %p211 = scmp.eq.s32.totalorder %s210, 0
    %s213 = sadd.s32 %s212, 1
    %s214 = scalar_select %p211, %s212, %s213
    %p217 = pneg %p211
    %p218 = scmp.eq.s32.totalorder %s14, 1
    %p219 = por %p217, %p218
    %p220 = scmp.ne.s32.totalorder %s212, %s215
    %p221 = scmp.eq.s32.totalorder %s14, 0
    %p222 = por %p220, %p221
    %p223 = scmp.ne.s32.totalorder %s212, %s215
    %p224 = scmp.eq.s32.totalorder %s19, 1
    %p225 = por %p223, %p224
    %p226 = scmp.ne.s32.totalorder %s215, %s216
    %p227 = scmp.eq.s32.totalorder %s19, 0
    %p228 = por %p226, %p227
    %p229 = scmp.ne.s32.totalorder %s215, %s216
    %p230 = scmp.eq.s32.totalorder %s20, 1
    %p231 = por %p229, %p230
    %p233 = scmp.ne.s32.totalorder %s216, %s232
    %p234 = scmp.eq.s32.totalorder %s20, 0
    %p235 = por %p233, %p234
    %p236 = scmp.le.s32.totalorder 1, %s14
    %p237 = scmp.lt.s32.totalorder %s14, 3
    %p238 = pnand %p236, %p237
    %p239 = pneg %p238
    // Predicated region
    $region9: #{mpnn_linear_forward.5} parent=5 // pred_check
      _
    $region10: #{mpnn_linear_forward.5} parent=5 // pred_check_branch
      %241 = sbr.rel (%p238) target = $region12
    $region11: #{mpnn_linear_forward.5} parent=5 // pred_region
      %s242 = ssub.s32 %s14, 1
      // Predicated region
      $region13: #{mpnn_linear_forward.5} parent=11 // pred_check
        %p243 = pneg %p139
      $region14: #{mpnn_linear_forward.5} parent=11 // pred_check_branch
        %245 = sbr.rel (%p243) target = $region16
      $region15: #{mpnn_linear_forward.5} parent=11 // pred_region
        _
      $region16: #{mpnn_linear_forward.5} parent=11 // pred_fallthru
        _
      // Predicated region
      $region17: #{mpnn_linear_forward.5} parent=11 // pred_check
        %p246 = pneg %p160
      $region18: #{mpnn_linear_forward.5} parent=11 // pred_check_branch
        %248 = sbr.rel (%p246) target = $region20
      $region19: #{mpnn_linear_forward.5} parent=11 // pred_region
        _
      $region20: #{mpnn_linear_forward.5} parent=11 // pred_fallthru
        _
      // Predicated region
      $region21: #{mpnn_linear_forward.5} parent=11 // pred_check
        %p249 = pneg %p181
      $region22: #{mpnn_linear_forward.5} parent=11 // pred_check_branch
        %251 = sbr.rel (%p249) target = $region24
      $region23: #{mpnn_linear_forward.5} parent=11 // pred_region
        _
      $region24: #{mpnn_linear_forward.5} parent=11 // pred_fallthru
        _
      // Predicated region
      $region25: #{mpnn_linear_forward.5} parent=11 // pred_check
        %p252 = pneg %p202
      $region26: #{mpnn_linear_forward.5} parent=11 // pred_check_branch
        %254 = sbr.rel (%p252) target = $region28
      $region27: #{mpnn_linear_forward.5} parent=11 // pred_region
        _
      $region28: #{mpnn_linear_forward.5} parent=11 // pred_fallthru
        _
    $region12: #{mpnn_linear_forward.5} parent=5 // pred_fallthru
      _
    %p255 = scmp.lt.s32.totalorder %s14, 2
    // Predicated region
    $region29: #{mpnn_linear_forward.5} parent=5 // pred_check
      %p256 = pneg %p255
    $region30: #{mpnn_linear_forward.5} parent=5 // pred_check_branch
      %258 = sbr.rel (%p256) target = $region32
    $region31: #{mpnn_linear_forward.5} parent=5 // pred_region
      // Predicated region
      $region33: #{mpnn_linear_forward.5} parent=31 // pred_check
        %p259 = pneg %p34
      $region34: #{mpnn_linear_forward.5} parent=31 // pred_check_branch
        %261 = sbr.rel (%p259) target = $region36
      $region35: #{mpnn_linear_forward.5} parent=31 // pred_region
        %p262 = scmp.lt.s32.totalorder %s14, 1
        %s263 = scalar_select %p262, %s14, 1
        %s264 = smul.addr %s263, 128
        %s265 = smul.addr %s264, 8
        %s266 = scalar_lea.vmem %s0, %s265
      $region36: #{mpnn_linear_forward.5} parent=31 // pred_fallthru
        _
      // Predicated region
      $region37: #{mpnn_linear_forward.5} parent=31 // pred_check
        %p267 = pneg %p60
      $region38: #{mpnn_linear_forward.5} parent=31 // pred_check_branch
        %269 = sbr.rel (%p267) target = $region40
      $region39: #{mpnn_linear_forward.5} parent=31 // pred_region
        %p270 = scmp.lt.s32.totalorder %s14, 1
        %s271 = scalar_select %p270, %s14, 1
        %s272 = smul.addr %s271, 8
        %s273 = scalar_lea.vmem %s1, %s272
      $region40: #{mpnn_linear_forward.5} parent=31 // pred_fallthru
        _
      // Predicated region
      $region41: #{mpnn_linear_forward.5} parent=31 // pred_check
        %p274 = pneg %p86
      $region42: #{mpnn_linear_forward.5} parent=31 // pred_check_branch
        %276 = sbr.rel (%p274) target = $region44
      $region43: #{mpnn_linear_forward.5} parent=31 // pred_region
        %p277 = scmp.lt.s32.totalorder %s14, 1
        %s278 = scalar_select %p277, %s14, 1
        %s279 = smul.addr %s278, 8
        %s280 = scalar_lea.vmem %s2, %s279
      $region44: #{mpnn_linear_forward.5} parent=31 // pred_fallthru
        _
      // Predicated region
      $region45: #{mpnn_linear_forward.5} parent=31 // pred_check
        %p281 = pneg %p112
      $region46: #{mpnn_linear_forward.5} parent=31 // pred_check_branch
        %283 = sbr.rel (%p281) target = $region48
      $region47: #{mpnn_linear_forward.5} parent=31 // pred_region
        %p284 = scmp.lt.s32.totalorder %s14, 1
        %s285 = scalar_select %p284, %s14, 1
        %s286 = smul.addr %s285, 8
        %s287 = scalar_lea.vmem %s3, %s286
      $region48: #{mpnn_linear_forward.5} parent=31 // pred_fallthru
        _
    $region32: #{mpnn_linear_forward.5} parent=5 // pred_fallthru
      _
    %p288 = scmp.le.s32.totalorder 1, %s14
    %p289 = scmp.lt.s32.totalorder %s14, 3
    %p290 = pnand %p288, %p289
    %p291 = pneg %p290
    // Predicated region
    $region49: #{mpnn_linear_forward.5} parent=5 // pred_check
      _
    $region50: #{mpnn_linear_forward.5} parent=5 // pred_check_branch
      %293 = sbr.rel (%p290) target = $region52
    $region51: #{mpnn_linear_forward.5} parent=5 // pred_region
      %s294 = ssub.s32 %s14, 1
      %p295 = scmp.lt.s32.totalorder %s19, 1
      %s296 = scalar_select %p295, %s19, 1
      %s297 = smul.addr %s296, 128
      %s298 = smul.addr %s297, 8
      %s299 = scalar_lea.vmem %s0, %s298
      %p300 = pneg %p40
      %p301 = pneg %p37
      %p302 = scmp.lt.s32.totalorder %s19, 1
      %s303 = scalar_select %p302, %s19, 1
      %s304 = smul.addr %s303, 8
      %s305 = scalar_lea.vmem %s1, %s304
      %p306 = pneg %p66
      %p307 = pneg %p63
      %p308 = scmp.lt.s32.totalorder %s19, 1
      %s309 = scalar_select %p308, %s19, 1
      %s310 = smul.addr %s309, 8
      %s311 = scalar_lea.vmem %s2, %s310
      %p312 = pneg %p92
      %p313 = pneg %p89
      %p314 = scmp.lt.s32.totalorder %s19, 1
      %s315 = scalar_select %p314, %s19, 1
      %s316 = smul.addr %s315, 8
      %s317 = scalar_lea.vmem %s3, %s316
      %p318 = pneg %p118
      %p319 = pneg %p115
      %p320 = pneg %p139
      %p321 = pneg %p136
      %p322 = pneg %p160
      %p323 = pneg %p157
      %p324 = pneg %p181
      %p325 = pneg %p178
      %p326 = pneg %p202
      %p327 = pneg %p199
      %p328 = pneg %p228
      %p329 = pneg %p225
      %p330 = scmp.lt.s32.totalorder %s19, 1
      %s331 = scalar_select %p330, %s19, 1
      %s332 = smul.addr %s331, 8
      %s333 = scalar_lea.vmem %s8, %s332
      %p334 = scmp.lt.s32.totalorder %s19, 1
      %s335 = scalar_select %p334, %s19, 1
      %s336 = smul.addr %s335, 128
      %s337 = smul.addr %s336, 8
      %s338 = scalar_lea.vmem %s0, %s337
      %p339 = scmp.lt.s32.totalorder %s19, 1
      %s340 = scalar_select %p339, %s19, 1
      %s341 = smul.addr %s340, 8
      %s342 = scalar_lea.vmem %s1, %s341
      %p343 = scmp.lt.s32.totalorder %s19, 1
      %s344 = scalar_select %p343, %s19, 1
      %s345 = smul.addr %s344, 8
      %s346 = scalar_lea.vmem %s2, %s345
      %p347 = scmp.lt.s32.totalorder %s19, 1
      %s348 = scalar_select %p347, %s19, 1
      %s349 = smul.addr %s348, 8
      %s350 = scalar_lea.vmem %s3, %s349
      %p351 = scmp.lt.s32.totalorder %s19, 1
      %s352 = scalar_select %p351, %s19, 1
      %s353 = smul.addr %s352, 8
      %s354 = scalar_lea.vmem %s8, %s353
      %v356 = vld [vmem:[%s338] sm:$0xff]
      %v357 = vld [vmem:[%s338 + $0x8] sm:$0xff]
      %v358 = vld [vmem:[%s338 + $0x10] sm:$0xff]
      %v359 = vld [vmem:[%s338 + $0x18] sm:$0xff]
      %v360 = vld [vmem:[%s338 + $0x20] sm:$0xff]
      %v361 = vld [vmem:[%s338 + $0x28] sm:$0xff]
      %v362 = vld [vmem:[%s338 + $0x30] sm:$0xff]
      %v363 = vld [vmem:[%s338 + $0x38] sm:$0xff]
      %v364 = vld [vmem:[%s338 + $0x40] sm:$0xff]
      %v365 = vld [vmem:[%s338 + $0x48] sm:$0xff]
      %v366 = vld [vmem:[%s338 + $0x50] sm:$0xff]
      %v367 = vld [vmem:[%s338 + $0x58] sm:$0xff]
      %v368 = vld [vmem:[%s338 + $0x60] sm:$0xff]
      %v369 = vld [vmem:[%s338 + $0x68] sm:$0xff]
      %v370 = vld [vmem:[%s338 + $0x70] sm:$0xff]
      %v371 = vld [vmem:[%s338 + $0x78] sm:$0xff]
      %v372 = vld [vmem:[%s338 + $0x80] sm:$0xff]
      %v373 = vld [vmem:[%s338 + $0x88] sm:$0xff]
      %v374 = vld [vmem:[%s338 + $0x90] sm:$0xff]
      %v375 = vld [vmem:[%s338 + $0x98] sm:$0xff]
      %v376 = vld [vmem:[%s338 + $0xa0] sm:$0xff]
      %v377 = vld [vmem:[%s338 + $0xa8] sm:$0xff]
      %v378 = vld [vmem:[%s338 + $0xb0] sm:$0xff]
      %v379 = vld [vmem:[%s338 + $0xb8] sm:$0xff]
      %v380 = vld [vmem:[%s338 + $0xc0] sm:$0xff]
      %v381 = vld [vmem:[%s338 + $0xc8] sm:$0xff]
      %v382 = vld [vmem:[%s338 + $0xd0] sm:$0xff]
      %v383 = vld [vmem:[%s338 + $0xd8] sm:$0xff]
      %v384 = vld [vmem:[%s338 + $0xe0] sm:$0xff]
      %v385 = vld [vmem:[%s338 + $0xe8] sm:$0xff]
      %v386 = vld [vmem:[%s338 + $0xf0] sm:$0xff]
      %v387 = vld [vmem:[%s338 + $0xf8] sm:$0xff]
      %v388 = vld [vmem:[%s338 + $0x100] sm:$0xff]
      %v389 = vld [vmem:[%s338 + $0x108] sm:$0xff]
      %v390 = vld [vmem:[%s338 + $0x110] sm:$0xff]
      %v391 = vld [vmem:[%s338 + $0x118] sm:$0xff]
      %v392 = vld [vmem:[%s338 + $0x120] sm:$0xff]
      %v393 = vld [vmem:[%s338 + $0x128] sm:$0xff]
      %v394 = vld [vmem:[%s338 + $0x130] sm:$0xff]
      %v395 = vld [vmem:[%s338 + $0x138] sm:$0xff]
      %v396 = vld [vmem:[%s338 + $0x140] sm:$0xff]
      %v397 = vld [vmem:[%s338 + $0x148] sm:$0xff]
      %v398 = vld [vmem:[%s338 + $0x150] sm:$0xff]
      %v399 = vld [vmem:[%s338 + $0x158] sm:$0xff]
      %v400 = vld [vmem:[%s338 + $0x160] sm:$0xff]
      %v401 = vld [vmem:[%s338 + $0x168] sm:$0xff]
      %v402 = vld [vmem:[%s338 + $0x170] sm:$0xff]
      %v403 = vld [vmem:[%s338 + $0x178] sm:$0xff]
      %v404 = vld [vmem:[%s338 + $0x180] sm:$0xff]
      %v405 = vld [vmem:[%s338 + $0x188] sm:$0xff]
      %v406 = vld [vmem:[%s338 + $0x190] sm:$0xff]
      %v407 = vld [vmem:[%s338 + $0x198] sm:$0xff]
      %v408 = vld [vmem:[%s338 + $0x1a0] sm:$0xff]
      %v409 = vld [vmem:[%s338 + $0x1a8] sm:$0xff]
      %v410 = vld [vmem:[%s338 + $0x1b0] sm:$0xff]
      %v411 = vld [vmem:[%s338 + $0x1b8] sm:$0xff]
      %v412 = vld [vmem:[%s338 + $0x1c0] sm:$0xff]
      %v413 = vld [vmem:[%s338 + $0x1c8] sm:$0xff]
      %v414 = vld [vmem:[%s338 + $0x1d0] sm:$0xff]
      %v415 = vld [vmem:[%s338 + $0x1d8] sm:$0xff]
      %v416 = vld [vmem:[%s338 + $0x1e0] sm:$0xff]
      %v417 = vld [vmem:[%s338 + $0x1e8] sm:$0xff]
      %v418 = vld [vmem:[%s338 + $0x1f0] sm:$0xff]
      %v419 = vld [vmem:[%s338 + $0x1f8] sm:$0xff]
      %v420 = vld [vmem:[%s338 + $0x200] sm:$0xff]
      %v421 = vld [vmem:[%s338 + $0x208] sm:$0xff]
      %v422 = vld [vmem:[%s338 + $0x210] sm:$0xff]
      %v423 = vld [vmem:[%s338 + $0x218] sm:$0xff]
      %v424 = vld [vmem:[%s338 + $0x220] sm:$0xff]
      %v425 = vld [vmem:[%s338 + $0x228] sm:$0xff]
      %v426 = vld [vmem:[%s338 + $0x230] sm:$0xff]
      %v427 = vld [vmem:[%s338 + $0x238] sm:$0xff]
      %v428 = vld [vmem:[%s338 + $0x240] sm:$0xff]
      %v429 = vld [vmem:[%s338 + $0x248] sm:$0xff]
      %v430 = vld [vmem:[%s338 + $0x250] sm:$0xff]
      %v431 = vld [vmem:[%s338 + $0x258] sm:$0xff]
      %v432 = vld [vmem:[%s338 + $0x260] sm:$0xff]
      %v433 = vld [vmem:[%s338 + $0x268] sm:$0xff]
      %v434 = vld [vmem:[%s338 + $0x270] sm:$0xff]
      %v435 = vld [vmem:[%s338 + $0x278] sm:$0xff]
      %v436 = vld [vmem:[%s338 + $0x280] sm:$0xff]
      %v437 = vld [vmem:[%s338 + $0x288] sm:$0xff]
      %v438 = vld [vmem:[%s338 + $0x290] sm:$0xff]
      %v439 = vld [vmem:[%s338 + $0x298] sm:$0xff]
      %v440 = vld [vmem:[%s338 + $0x2a0] sm:$0xff]
      %v441 = vld [vmem:[%s338 + $0x2a8] sm:$0xff]
      %v442 = vld [vmem:[%s338 + $0x2b0] sm:$0xff]
      %v443 = vld [vmem:[%s338 + $0x2b8] sm:$0xff]
      %v444 = vld [vmem:[%s338 + $0x2c0] sm:$0xff]
      %v445 = vld [vmem:[%s338 + $0x2c8] sm:$0xff]
      %v446 = vld [vmem:[%s338 + $0x2d0] sm:$0xff]
      %v447 = vld [vmem:[%s338 + $0x2d8] sm:$0xff]
      %v448 = vld [vmem:[%s338 + $0x2e0] sm:$0xff]
      %v449 = vld [vmem:[%s338 + $0x2e8] sm:$0xff]
      %v450 = vld [vmem:[%s338 + $0x2f0] sm:$0xff]
      %v451 = vld [vmem:[%s338 + $0x2f8] sm:$0xff]
      %v452 = vld [vmem:[%s338 + $0x300] sm:$0xff]
      %v453 = vld [vmem:[%s338 + $0x308] sm:$0xff]
      %v454 = vld [vmem:[%s338 + $0x310] sm:$0xff]
      %v455 = vld [vmem:[%s338 + $0x318] sm:$0xff]
      %v456 = vld [vmem:[%s338 + $0x320] sm:$0xff]
      %v457 = vld [vmem:[%s338 + $0x328] sm:$0xff]
      %v458 = vld [vmem:[%s338 + $0x330] sm:$0xff]
      %v459 = vld [vmem:[%s338 + $0x338] sm:$0xff]
      %v460 = vld [vmem:[%s338 + $0x340] sm:$0xff]
      %v461 = vld [vmem:[%s338 + $0x348] sm:$0xff]
      %v462 = vld [vmem:[%s338 + $0x350] sm:$0xff]
      %v463 = vld [vmem:[%s338 + $0x358] sm:$0xff]
      %v464 = vld [vmem:[%s338 + $0x360] sm:$0xff]
      %v465 = vld [vmem:[%s338 + $0x368] sm:$0xff]
      %v466 = vld [vmem:[%s338 + $0x370] sm:$0xff]
      %v467 = vld [vmem:[%s338 + $0x378] sm:$0xff]
      %v468 = vld [vmem:[%s338 + $0x380] sm:$0xff]
      %v469 = vld [vmem:[%s338 + $0x388] sm:$0xff]
      %v470 = vld [vmem:[%s338 + $0x390] sm:$0xff]
      %v471 = vld [vmem:[%s338 + $0x398] sm:$0xff]
      %v472 = vld [vmem:[%s338 + $0x3a0] sm:$0xff]
      %v473 = vld [vmem:[%s338 + $0x3a8] sm:$0xff]
      %v474 = vld [vmem:[%s338 + $0x3b0] sm:$0xff]
      %v475 = vld [vmem:[%s338 + $0x3b8] sm:$0xff]
      %v476 = vld [vmem:[%s338 + $0x3c0] sm:$0xff]
      %v477 = vld [vmem:[%s338 + $0x3c8] sm:$0xff]
      %v478 = vld [vmem:[%s338 + $0x3d0] sm:$0xff]
      %v479 = vld [vmem:[%s338 + $0x3d8] sm:$0xff]
      %v480 = vld [vmem:[%s338 + $0x3e0] sm:$0xff]
      %v481 = vld [vmem:[%s338 + $0x3e8] sm:$0xff]
      %v482 = vld [vmem:[%s338 + $0x3f0] sm:$0xff]
      %v483 = vld [vmem:[%s338 + $0x3f8] sm:$0xff]
      %v484 = vld [vmem:[%s342] sm:$0xff]
      %v485 = vld [vmem:[%s346] sm:$0xff]
      %v486 = vld [vmem:[%s350] sm:$0xff]
      %v488 = vcombine.high %v485, %v485
      %v490 = vunpack.c.l.s4 1966171168
      %v491 = vunpack.c.0.s8 %v490
      %v492 = vlaneseq
      %v493 = vshrl.u32 %v492, 7
      %v494 = vsub.s32 %v491, %v493
      %v495 = vrot.slane %v485, %v494
      %v497 = vunpack.c.l.s4 1966171168
      %v498 = vunpack.c.0.s8 %v497
      %v499 = vlaneseq
      %v500 = vshrl.u32 %v499, 7
      %v501 = vsub.s32 %v498, %v500
      %v502 = vrot.slane %v488, %v501
      %v503 = vcombine.high %v495, %v495
      %v504 = vcombine.high %v502, %v502
      %v506 = vunpack.c.l.s4 1966171168
      %v507 = vunpack.c.0.s8 %v506
      %v508 = vlaneseq
      %v509 = vshrl.u32 %v508, 7
      %v510 = vsub.s32 %v507, %v509
      %v511 = vrot.slane %v495, %v510
      %v513 = vunpack.c.l.s4 1966171168
      %v514 = vunpack.c.0.s8 %v513
      %v515 = vlaneseq
      %v516 = vshrl.u32 %v515, 7
      %v517 = vsub.s32 %v514, %v516
      %v518 = vrot.slane %v502, %v517
      %v520 = vunpack.c.l.s4 1966171168
      %v521 = vunpack.c.0.s8 %v520
      %v522 = vlaneseq
      %v523 = vshrl.u32 %v522, 7
      %v524 = vsub.s32 %v521, %v523
      %v525 = vrot.slane %v503, %v524
      %v527 = vunpack.c.l.s4 1966171168
      %v528 = vunpack.c.0.s8 %v527
      %v529 = vlaneseq
      %v530 = vshrl.u32 %v529, 7
      %v531 = vsub.s32 %v528, %v530
      %v532 = vrot.slane %v504, %v531
      %v533 = vcombine.high %v511, %v511
      %v534 = vcombine.high %v518, %v518
      %v535 = vcombine.high %v525, %v525
      %v536 = vcombine.high %v532, %v532
      %v537 = vlaneseq
      %v538 = vshrl.u32 %v537, 7
      %v539 = vsub.s32 0, %v538
      %v540 = vrot.slane %v511, %v539
      %v541 = vlaneseq
      %v542 = vshrl.u32 %v541, 7
      %v543 = vsub.s32 0, %v542
      %v544 = vrot.slane %v525, %v543
      %v545 = vlaneseq
      %v546 = vshrl.u32 %v545, 7
      %v547 = vsub.s32 0, %v546
      %v548 = vrot.slane %v533, %v547
      %v549 = vlaneseq
      %v550 = vshrl.u32 %v549, 7
      %v551 = vsub.s32 0, %v550
      %v552 = vrot.slane %v535, %v551
      %v553 = vlaneseq
      %v554 = vshrl.u32 %v553, 7
      %v555 = vsub.s32 0, %v554
      %v556 = vrot.slane %v518, %v555
      %v557 = vlaneseq
      %v558 = vshrl.u32 %v557, 7
      %v559 = vsub.s32 0, %v558
      %v560 = vrot.slane %v532, %v559
      %v561 = vlaneseq
      %v562 = vshrl.u32 %v561, 7
      %v563 = vsub.s32 0, %v562
      %v564 = vrot.slane %v534, %v563
      %v565 = vlaneseq
      %v566 = vshrl.u32 %v565, 7
      %v567 = vsub.s32 0, %v566
      %v568 = vrot.slane %v536, %v567
      %v577 = vmul.f32 %v356, %v540
      %v578 = vmul.f32 %v357, %v540
      %v579 = vmul.f32 %v358, %v540
      %v580 = vmul.f32 %v359, %v540
      %v581 = vmul.f32 %v360, %v540
      %v582 = vmul.f32 %v361, %v540
      %v583 = vmul.f32 %v362, %v540
      %v584 = vmul.f32 %v363, %v540
      %v585 = vmul.f32 %v364, %v540
      %v586 = vmul.f32 %v365, %v540
      %v587 = vmul.f32 %v366, %v540
      %v588 = vmul.f32 %v367, %v540
      %v589 = vmul.f32 %v368, %v540
      %v590 = vmul.f32 %v369, %v540
      %v591 = vmul.f32 %v370, %v540
      %v592 = vmul.f32 %v371, %v540
      %v593 = vmul.f32 %v372, %v544
      %v594 = vmul.f32 %v373, %v544
      %v595 = vmul.f32 %v374, %v544
      %v596 = vmul.f32 %v375, %v544
      %v597 = vmul.f32 %v376, %v544
      %v598 = vmul.f32 %v377, %v544
      %v599 = vmul.f32 %v378, %v544
      %v600 = vmul.f32 %v379, %v544
      %v601 = vmul.f32 %v380, %v544
      %v602 = vmul.f32 %v381, %v544
      %v603 = vmul.f32 %v382, %v544
      %v604 = vmul.f32 %v383, %v544
      %v605 = vmul.f32 %v384, %v544
      %v606 = vmul.f32 %v385, %v544
      %v607 = vmul.f32 %v386, %v544
      %v608 = vmul.f32 %v387, %v544
      %v609 = vmul.f32 %v388, %v548
      %v610 = vmul.f32 %v389, %v548
      %v611 = vmul.f32 %v390, %v548
      %v612 = vmul.f32 %v391, %v548
      %v613 = vmul.f32 %v392, %v548
      %v614 = vmul.f32 %v393, %v548
      %v615 = vmul.f32 %v394, %v548
      %v616 = vmul.f32 %v395, %v548
      %v617 = vmul.f32 %v396, %v548
      %v618 = vmul.f32 %v397, %v548
      %v619 = vmul.f32 %v398, %v548
      %v620 = vmul.f32 %v399, %v548
      %v621 = vmul.f32 %v400, %v548
      %v622 = vmul.f32 %v401, %v548
      %v623 = vmul.f32 %v402, %v548
      %v624 = vmul.f32 %v403, %v548
      %v625 = vmul.f32 %v404, %v552
      %v626 = vmul.f32 %v405, %v552
      %v627 = vmul.f32 %v406, %v552
      %v628 = vmul.f32 %v407, %v552
      %v629 = vmul.f32 %v408, %v552
      %v630 = vmul.f32 %v409, %v552
      %v631 = vmul.f32 %v410, %v552
      %v632 = vmul.f32 %v411, %v552
      %v633 = vmul.f32 %v412, %v552
      %v634 = vmul.f32 %v413, %v552
      %v635 = vmul.f32 %v414, %v552
      %v636 = vmul.f32 %v415, %v552
      %v637 = vmul.f32 %v416, %v552
      %v638 = vmul.f32 %v417, %v552
      %v639 = vmul.f32 %v418, %v552
      %v640 = vmul.f32 %v419, %v552
      %v641 = vmul.f32 %v420, %v556
      %v642 = vmul.f32 %v421, %v556
      %v643 = vmul.f32 %v422, %v556
      %v644 = vmul.f32 %v423, %v556
      %v645 = vmul.f32 %v424, %v556
      %v646 = vmul.f32 %v425, %v556
      %v647 = vmul.f32 %v426, %v556
      %v648 = vmul.f32 %v427, %v556
      %v649 = vmul.f32 %v428, %v556
      %v650 = vmul.f32 %v429, %v556
      %v651 = vmul.f32 %v430, %v556
      %v652 = vmul.f32 %v431, %v556
      %v653 = vmul.f32 %v432, %v556
      %v654 = vmul.f32 %v433, %v556
      %v655 = vmul.f32 %v434, %v556
      %v656 = vmul.f32 %v435, %v556
      %v657 = vmul.f32 %v436, %v560
      %v658 = vmul.f32 %v437, %v560
      %v659 = vmul.f32 %v438, %v560
      %v660 = vmul.f32 %v439, %v560
      %v661 = vmul.f32 %v440, %v560
      %v662 = vmul.f32 %v441, %v560
      %v663 = vmul.f32 %v442, %v560
      %v664 = vmul.f32 %v443, %v560
      %v665 = vmul.f32 %v444, %v560
      %v666 = vmul.f32 %v445, %v560
      %v667 = vmul.f32 %v446, %v560
      %v668 = vmul.f32 %v447, %v560
      %v669 = vmul.f32 %v448, %v560
      %v670 = vmul.f32 %v449, %v560
      %v671 = vmul.f32 %v450, %v560
      %v672 = vmul.f32 %v451, %v560
      %v673 = vmul.f32 %v452, %v564
      %v674 = vmul.f32 %v453, %v564
      %v675 = vmul.f32 %v454, %v564
      %v676 = vmul.f32 %v455, %v564
      %v677 = vmul.f32 %v456, %v564
      %v678 = vmul.f32 %v457, %v564
      %v679 = vmul.f32 %v458, %v564
      %v680 = vmul.f32 %v459, %v564
      %v681 = vmul.f32 %v460, %v564
      %v682 = vmul.f32 %v461, %v564
      %v683 = vmul.f32 %v462, %v564
      %v684 = vmul.f32 %v463, %v564
      %v685 = vmul.f32 %v464, %v564
      %v686 = vmul.f32 %v465, %v564
      %v687 = vmul.f32 %v466, %v564
      %v688 = vmul.f32 %v467, %v564
      %v689 = vmul.f32 %v468, %v568
      %v690 = vmul.f32 %v469, %v568
      %v691 = vmul.f32 %v470, %v568
      %v692 = vmul.f32 %v471, %v568
      %v693 = vmul.f32 %v472, %v568
      %v694 = vmul.f32 %v473, %v568
      %v695 = vmul.f32 %v474, %v568
      %v696 = vmul.f32 %v475, %v568
      %v697 = vmul.f32 %v476, %v568
      %v698 = vmul.f32 %v477, %v568
      %v699 = vmul.f32 %v478, %v568
      %v700 = vmul.f32 %v479, %v568
      %v701 = vmul.f32 %v480, %v568
      %v702 = vmul.f32 %v481, %v568
      %v703 = vmul.f32 %v482, %v568
      %v704 = vmul.f32 %v483, %v568
      %vm705 = vcmask 130048
      %v706 = vsel %vm705, %v577, 0.0
      %707 = vadd.xlane.f32.xlu0 %v706
      %v708 = vpop.xlane.xlu0 %707
      %v709 = vsel %vm705, %v578, 0.0
      %710 = vadd.xlane.f32.xlu0 %v709
      %v711 = vpop.xlane.xlu0 %710
      %v712 = vsel %vm705, %v579, 0.0
      %713 = vadd.xlane.f32.xlu0 %v712
      %v714 = vpop.xlane.xlu0 %713
      %v715 = vsel %vm705, %v580, 0.0
      %716 = vadd.xlane.f32.xlu0 %v715
      %v717 = vpop.xlane.xlu0 %716
      %v718 = vsel %vm705, %v581, 0.0
      %719 = vadd.xlane.f32.xlu0 %v718
      %v720 = vpop.xlane.xlu0 %719
      %v721 = vsel %vm705, %v582, 0.0
      %722 = vadd.xlane.f32.xlu0 %v721
      %v723 = vpop.xlane.xlu0 %722
      %v724 = vsel %vm705, %v583, 0.0
      %725 = vadd.xlane.f32.xlu0 %v724
      %v726 = vpop.xlane.xlu0 %725
      %v727 = vsel %vm705, %v584, 0.0
      %728 = vadd.xlane.f32.xlu0 %v727
      %v729 = vpop.xlane.xlu0 %728
      %v730 = vsel %vm705, %v585, 0.0
      %731 = vadd.xlane.f32.xlu0 %v730
      %v732 = vpop.xlane.xlu0 %731
      %v733 = vsel %vm705, %v586, 0.0
      %734 = vadd.xlane.f32.xlu0 %v733
      %v735 = vpop.xlane.xlu0 %734
      %v736 = vsel %vm705, %v587, 0.0
      %737 = vadd.xlane.f32.xlu0 %v736
      %v738 = vpop.xlane.xlu0 %737
      %v739 = vsel %vm705, %v588, 0.0
      %740 = vadd.xlane.f32.xlu0 %v739
      %v741 = vpop.xlane.xlu0 %740
      %v742 = vsel %vm705, %v589, 0.0
      %743 = vadd.xlane.f32.xlu0 %v742
      %v744 = vpop.xlane.xlu0 %743
      %v745 = vsel %vm705, %v590, 0.0
      %746 = vadd.xlane.f32.xlu0 %v745
      %v747 = vpop.xlane.xlu0 %746
      %v748 = vsel %vm705, %v591, 0.0
      %749 = vadd.xlane.f32.xlu0 %v748
      %v750 = vpop.xlane.xlu0 %749
      %v751 = vsel %vm705, %v592, 0.0
      %752 = vadd.xlane.f32.xlu0 %v751
      %v753 = vpop.xlane.xlu0 %752
      %v754 = vsel %vm705, %v593, 0.0
      %755 = vadd.xlane.f32.xlu0 %v754
      %v756 = vpop.xlane.xlu0 %755
      %v757 = vsel %vm705, %v594, 0.0
      %758 = vadd.xlane.f32.xlu0 %v757
      %v759 = vpop.xlane.xlu0 %758
      %v760 = vsel %vm705, %v595, 0.0
      %761 = vadd.xlane.f32.xlu0 %v760
      %v762 = vpop.xlane.xlu0 %761
      %v763 = vsel %vm705, %v596, 0.0
      %764 = vadd.xlane.f32.xlu0 %v763
      %v765 = vpop.xlane.xlu0 %764
      %v766 = vsel %vm705, %v597, 0.0
      %767 = vadd.xlane.f32.xlu0 %v766
      %v768 = vpop.xlane.xlu0 %767
      %v769 = vsel %vm705, %v598, 0.0
      %770 = vadd.xlane.f32.xlu0 %v769
      %v771 = vpop.xlane.xlu0 %770
      %v772 = vsel %vm705, %v599, 0.0
      %773 = vadd.xlane.f32.xlu0 %v772
      %v774 = vpop.xlane.xlu0 %773
      %v775 = vsel %vm705, %v600, 0.0
      %776 = vadd.xlane.f32.xlu0 %v775
      %v777 = vpop.xlane.xlu0 %776
      %v778 = vsel %vm705, %v601, 0.0
      %779 = vadd.xlane.f32.xlu0 %v778
      %v780 = vpop.xlane.xlu0 %779
      %v781 = vsel %vm705, %v602, 0.0
      %782 = vadd.xlane.f32.xlu0 %v781
      %v783 = vpop.xlane.xlu0 %782
      %v784 = vsel %vm705, %v603, 0.0
      %785 = vadd.xlane.f32.xlu0 %v784
      %v786 = vpop.xlane.xlu0 %785
      %v787 = vsel %vm705, %v604, 0.0
      %788 = vadd.xlane.f32.xlu0 %v787
      %v789 = vpop.xlane.xlu0 %788
      %v790 = vsel %vm705, %v605, 0.0
      %791 = vadd.xlane.f32.xlu0 %v790
      %v792 = vpop.xlane.xlu0 %791
      %v793 = vsel %vm705, %v606, 0.0
      %794 = vadd.xlane.f32.xlu0 %v793
      %v795 = vpop.xlane.xlu0 %794
      %v796 = vsel %vm705, %v607, 0.0
      %797 = vadd.xlane.f32.xlu0 %v796
      %v798 = vpop.xlane.xlu0 %797
      %v799 = vsel %vm705, %v608, 0.0
      %800 = vadd.xlane.f32.xlu0 %v799
      %v801 = vpop.xlane.xlu0 %800
      %v802 = vsel %vm705, %v609, 0.0
      %803 = vadd.xlane.f32.xlu0 %v802
      %v804 = vpop.xlane.xlu0 %803
      %v805 = vsel %vm705, %v610, 0.0
      %806 = vadd.xlane.f32.xlu0 %v805
      %v807 = vpop.xlane.xlu0 %806
      %v808 = vsel %vm705, %v611, 0.0
      %809 = vadd.xlane.f32.xlu0 %v808
      %v810 = vpop.xlane.xlu0 %809
      %v811 = vsel %vm705, %v612, 0.0
      %812 = vadd.xlane.f32.xlu0 %v811
      %v813 = vpop.xlane.xlu0 %812
      %v814 = vsel %vm705, %v613, 0.0
      %815 = vadd.xlane.f32.xlu0 %v814
      %v816 = vpop.xlane.xlu0 %815
      %v817 = vsel %vm705, %v614, 0.0
      %818 = vadd.xlane.f32.xlu0 %v817
      %v819 = vpop.xlane.xlu0 %818
      %v820 = vsel %vm705, %v615, 0.0
      %821 = vadd.xlane.f32.xlu0 %v820
      %v822 = vpop.xlane.xlu0 %821
      %v823 = vsel %vm705, %v616, 0.0
      %824 = vadd.xlane.f32.xlu0 %v823
      %v825 = vpop.xlane.xlu0 %824
      %v826 = vsel %vm705, %v617, 0.0
      %827 = vadd.xlane.f32.xlu0 %v826
      %v828 = vpop.xlane.xlu0 %827
      %v829 = vsel %vm705, %v618, 0.0
      %830 = vadd.xlane.f32.xlu0 %v829
      %v831 = vpop.xlane.xlu0 %830
      %v832 = vsel %vm705, %v619, 0.0
      %833 = vadd.xlane.f32.xlu0 %v832
      %v834 = vpop.xlane.xlu0 %833
      %v835 = vsel %vm705, %v620, 0.0
      %836 = vadd.xlane.f32.xlu0 %v835
      %v837 = vpop.xlane.xlu0 %836
      %v838 = vsel %vm705, %v621, 0.0
      %839 = vadd.xlane.f32.xlu0 %v838
      %v840 = vpop.xlane.xlu0 %839
      %v841 = vsel %vm705, %v622, 0.0
      %842 = vadd.xlane.f32.xlu0 %v841
      %v843 = vpop.xlane.xlu0 %842
      %v844 = vsel %vm705, %v623, 0.0
      %845 = vadd.xlane.f32.xlu0 %v844
      %v846 = vpop.xlane.xlu0 %845
      %v847 = vsel %vm705, %v624, 0.0
      %848 = vadd.xlane.f32.xlu0 %v847
      %v849 = vpop.xlane.xlu0 %848
      %v850 = vsel %vm705, %v625, 0.0
      %851 = vadd.xlane.f32.xlu0 %v850
      %v852 = vpop.xlane.xlu0 %851
      %v853 = vsel %vm705, %v626, 0.0
      %854 = vadd.xlane.f32.xlu0 %v853
      %v855 = vpop.xlane.xlu0 %854
      %v856 = vsel %vm705, %v627, 0.0
      %857 = vadd.xlane.f32.xlu0 %v856
      %v858 = vpop.xlane.xlu0 %857
      %v859 = vsel %vm705, %v628, 0.0
      %860 = vadd.xlane.f32.xlu0 %v859
      %v861 = vpop.xlane.xlu0 %860
      %v862 = vsel %vm705, %v629, 0.0
      %863 = vadd.xlane.f32.xlu0 %v862
      %v864 = vpop.xlane.xlu0 %863
      %v865 = vsel %vm705, %v630, 0.0
      %866 = vadd.xlane.f32.xlu0 %v865
      %v867 = vpop.xlane.xlu0 %866
      %v868 = vsel %vm705, %v631, 0.0
      %869 = vadd.xlane.f32.xlu0 %v868
      %v870 = vpop.xlane.xlu0 %869
      %v871 = vsel %vm705, %v632, 0.0
      %872 = vadd.xlane.f32.xlu0 %v871
      %v873 = vpop.xlane.xlu0 %872
      %v874 = vsel %vm705, %v633, 0.0
      %875 = vadd.xlane.f32.xlu0 %v874
      %v876 = vpop.xlane.xlu0 %875
      %v877 = vsel %vm705, %v634, 0.0
      %878 = vadd.xlane.f32.xlu0 %v877
      %v879 = vpop.xlane.xlu0 %878
      %v880 = vsel %vm705, %v635, 0.0
      %881 = vadd.xlane.f32.xlu0 %v880
      %v882 = vpop.xlane.xlu0 %881
      %v883 = vsel %vm705, %v636, 0.0
      %884 = vadd.xlane.f32.xlu0 %v883
      %v885 = vpop.xlane.xlu0 %884
      %v886 = vsel %vm705, %v637, 0.0
      %887 = vadd.xlane.f32.xlu0 %v886
      %v888 = vpop.xlane.xlu0 %887
      %v889 = vsel %vm705, %v638, 0.0
      %890 = vadd.xlane.f32.xlu0 %v889
      %v891 = vpop.xlane.xlu0 %890
      %v892 = vsel %vm705, %v639, 0.0
      %893 = vadd.xlane.f32.xlu0 %v892
      %v894 = vpop.xlane.xlu0 %893
      %v895 = vsel %vm705, %v640, 0.0
      %896 = vadd.xlane.f32.xlu0 %v895
      %v897 = vpop.xlane.xlu0 %896
      %v898 = vsel %vm705, %v641, 0.0
      %899 = vadd.xlane.f32.xlu0 %v898
      %v900 = vpop.xlane.xlu0 %899
      %v901 = vsel %vm705, %v642, 0.0
      %902 = vadd.xlane.f32.xlu0 %v901
      %v903 = vpop.xlane.xlu0 %902
      %v904 = vsel %vm705, %v643, 0.0
      %905 = vadd.xlane.f32.xlu0 %v904
      %v906 = vpop.xlane.xlu0 %905
      %v907 = vsel %vm705, %v644, 0.0
      %908 = vadd.xlane.f32.xlu0 %v907
      %v909 = vpop.xlane.xlu0 %908
      %v910 = vsel %vm705, %v645, 0.0
      %911 = vadd.xlane.f32.xlu0 %v910
      %v912 = vpop.xlane.xlu0 %911
      %v913 = vsel %vm705, %v646, 0.0
      %914 = vadd.xlane.f32.xlu0 %v913
      %v915 = vpop.xlane.xlu0 %914
      %v916 = vsel %vm705, %v647, 0.0
      %917 = vadd.xlane.f32.xlu0 %v916
      %v918 = vpop.xlane.xlu0 %917
      %v919 = vsel %vm705, %v648, 0.0
      %920 = vadd.xlane.f32.xlu0 %v919
      %v921 = vpop.xlane.xlu0 %920
      %v922 = vsel %vm705, %v649, 0.0
      %923 = vadd.xlane.f32.xlu0 %v922
      %v924 = vpop.xlane.xlu0 %923
      %v925 = vsel %vm705, %v650, 0.0
      %926 = vadd.xlane.f32.xlu0 %v925
      %v927 = vpop.xlane.xlu0 %926
      %v928 = vsel %vm705, %v651, 0.0
      %929 = vadd.xlane.f32.xlu0 %v928
      %v930 = vpop.xlane.xlu0 %929
      %v931 = vsel %vm705, %v652, 0.0
      %932 = vadd.xlane.f32.xlu0 %v931
      %v933 = vpop.xlane.xlu0 %932
      %v934 = vsel %vm705, %v653, 0.0
      %935 = vadd.xlane.f32.xlu0 %v934
      %v936 = vpop.xlane.xlu0 %935
      %v937 = vsel %vm705, %v654, 0.0
      %938 = vadd.xlane.f32.xlu0 %v937
      %v939 = vpop.xlane.xlu0 %938
      %v940 = vsel %vm705, %v655, 0.0
      %941 = vadd.xlane.f32.xlu0 %v940
      %v942 = vpop.xlane.xlu0 %941
      %v943 = vsel %vm705, %v656, 0.0
      %944 = vadd.xlane.f32.xlu0 %v943
      %v945 = vpop.xlane.xlu0 %944
      %v946 = vsel %vm705, %v657, 0.0
      %947 = vadd.xlane.f32.xlu0 %v946
      %v948 = vpop.xlane.xlu0 %947
      %v949 = vsel %vm705, %v658, 0.0
      %950 = vadd.xlane.f32.xlu0 %v949
      %v951 = vpop.xlane.xlu0 %950
      %v952 = vsel %vm705, %v659, 0.0
      %953 = vadd.xlane.f32.xlu0 %v952
      %v954 = vpop.xlane.xlu0 %953
      %v955 = vsel %vm705, %v660, 0.0
      %956 = vadd.xlane.f32.xlu0 %v955
      %v957 = vpop.xlane.xlu0 %956
      %v958 = vsel %vm705, %v661, 0.0
      %959 = vadd.xlane.f32.xlu0 %v958
      %v960 = vpop.xlane.xlu0 %959
      %v961 = vsel %vm705, %v662, 0.0
      %962 = vadd.xlane.f32.xlu0 %v961
      %v963 = vpop.xlane.xlu0 %962
      %v964 = vsel %vm705, %v663, 0.0
      %965 = vadd.xlane.f32.xlu0 %v964
      %v966 = vpop.xlane.xlu0 %965
      %v967 = vsel %vm705, %v664, 0.0
      %968 = vadd.xlane.f32.xlu0 %v967
      %v969 = vpop.xlane.xlu0 %968
      %v970 = vsel %vm705, %v665, 0.0
      %971 = vadd.xlane.f32.xlu0 %v970
      %v972 = vpop.xlane.xlu0 %971
      %v973 = vsel %vm705, %v666, 0.0
      %974 = vadd.xlane.f32.xlu0 %v973
      %v975 = vpop.xlane.xlu0 %974
      %v976 = vsel %vm705, %v667, 0.0
      %977 = vadd.xlane.f32.xlu0 %v976
      %v978 = vpop.xlane.xlu0 %977
      %v979 = vsel %vm705, %v668, 0.0
      %980 = vadd.xlane.f32.xlu0 %v979
      %v981 = vpop.xlane.xlu0 %980
      %v982 = vsel %vm705, %v669, 0.0
      %983 = vadd.xlane.f32.xlu0 %v982
      %v984 = vpop.xlane.xlu0 %983
      %v985 = vsel %vm705, %v670, 0.0
      %986 = vadd.xlane.f32.xlu0 %v985
      %v987 = vpop.xlane.xlu0 %986
      %v988 = vsel %vm705, %v671, 0.0
      %989 = vadd.xlane.f32.xlu0 %v988
      %v990 = vpop.xlane.xlu0 %989
      %v991 = vsel %vm705, %v672, 0.0
      %992 = vadd.xlane.f32.xlu0 %v991
      %v993 = vpop.xlane.xlu0 %992
      %v994 = vsel %vm705, %v673, 0.0
      %995 = vadd.xlane.f32.xlu0 %v994
      %v996 = vpop.xlane.xlu0 %995
      %v997 = vsel %vm705, %v674, 0.0
      %998 = vadd.xlane.f32.xlu0 %v997
      %v999 = vpop.xlane.xlu0 %998
      %v1000 = vsel %vm705, %v675, 0.0
      %1001 = vadd.xlane.f32.xlu0 %v1000
      %v1002 = vpop.xlane.xlu0 %1001
      %v1003 = vsel %vm705, %v676, 0.0
      %1004 = vadd.xlane.f32.xlu0 %v1003
      %v1005 = vpop.xlane.xlu0 %1004
      %v1006 = vsel %vm705, %v677, 0.0
      %1007 = vadd.xlane.f32.xlu0 %v1006
      %v1008 = vpop.xlane.xlu0 %1007
      %v1009 = vsel %vm705, %v678, 0.0
      %1010 = vadd.xlane.f32.xlu0 %v1009
      %v1011 = vpop.xlane.xlu0 %1010
      %v1012 = vsel %vm705, %v679, 0.0
      %1013 = vadd.xlane.f32.xlu0 %v1012
      %v1014 = vpop.xlane.xlu0 %1013
      %v1015 = vsel %vm705, %v680, 0.0
      %1016 = vadd.xlane.f32.xlu0 %v1015
      %v1017 = vpop.xlane.xlu0 %1016
      %v1018 = vsel %vm705, %v681, 0.0
      %1019 = vadd.xlane.f32.xlu0 %v1018
      %v1020 = vpop.xlane.xlu0 %1019
      %v1021 = vsel %vm705, %v682, 0.0
      %1022 = vadd.xlane.f32.xlu0 %v1021
      %v1023 = vpop.xlane.xlu0 %1022
      %v1024 = vsel %vm705, %v683, 0.0
      %1025 = vadd.xlane.f32.xlu0 %v1024
      %v1026 = vpop.xlane.xlu0 %1025
      %v1027 = vsel %vm705, %v684, 0.0
      %1028 = vadd.xlane.f32.xlu0 %v1027
      %v1029 = vpop.xlane.xlu0 %1028
      %v1030 = vsel %vm705, %v685, 0.0
      %1031 = vadd.xlane.f32.xlu0 %v1030
      %v1032 = vpop.xlane.xlu0 %1031
      %v1033 = vsel %vm705, %v686, 0.0
      %1034 = vadd.xlane.f32.xlu0 %v1033
      %v1035 = vpop.xlane.xlu0 %1034
      %v1036 = vsel %vm705, %v687, 0.0
      %1037 = vadd.xlane.f32.xlu0 %v1036
      %v1038 = vpop.xlane.xlu0 %1037
      %v1039 = vsel %vm705, %v688, 0.0
      %1040 = vadd.xlane.f32.xlu0 %v1039
      %v1041 = vpop.xlane.xlu0 %1040
      %v1042 = vsel %vm705, %v689, 0.0
      %1043 = vadd.xlane.f32.xlu0 %v1042
      %v1044 = vpop.xlane.xlu0 %1043
      %v1045 = vsel %vm705, %v690, 0.0
      %1046 = vadd.xlane.f32.xlu0 %v1045
      %v1047 = vpop.xlane.xlu0 %1046
      %v1048 = vsel %vm705, %v691, 0.0
      %1049 = vadd.xlane.f32.xlu0 %v1048
      %v1050 = vpop.xlane.xlu0 %1049
      %v1051 = vsel %vm705, %v692, 0.0
      %1052 = vadd.xlane.f32.xlu0 %v1051
      %v1053 = vpop.xlane.xlu0 %1052
      %v1054 = vsel %vm705, %v693, 0.0
      %1055 = vadd.xlane.f32.xlu0 %v1054
      %v1056 = vpop.xlane.xlu0 %1055
      %v1057 = vsel %vm705, %v694, 0.0
      %1058 = vadd.xlane.f32.xlu0 %v1057
      %v1059 = vpop.xlane.xlu0 %1058
      %v1060 = vsel %vm705, %v695, 0.0
      %1061 = vadd.xlane.f32.xlu0 %v1060
      %v1062 = vpop.xlane.xlu0 %1061
      %v1063 = vsel %vm705, %v696, 0.0
      %1064 = vadd.xlane.f32.xlu0 %v1063
      %v1065 = vpop.xlane.xlu0 %1064
      %v1066 = vsel %vm705, %v697, 0.0
      %1067 = vadd.xlane.f32.xlu0 %v1066
      %v1068 = vpop.xlane.xlu0 %1067
      %v1069 = vsel %vm705, %v698, 0.0
      %1070 = vadd.xlane.f32.xlu0 %v1069
      %v1071 = vpop.xlane.xlu0 %1070
      %v1072 = vsel %vm705, %v699, 0.0
      %1073 = vadd.xlane.f32.xlu0 %v1072
      %v1074 = vpop.xlane.xlu0 %1073
      %v1075 = vsel %vm705, %v700, 0.0
      %1076 = vadd.xlane.f32.xlu0 %v1075
      %v1077 = vpop.xlane.xlu0 %1076
      %v1078 = vsel %vm705, %v701, 0.0
      %1079 = vadd.xlane.f32.xlu0 %v1078
      %v1080 = vpop.xlane.xlu0 %1079
      %v1081 = vsel %vm705, %v702, 0.0
      %1082 = vadd.xlane.f32.xlu0 %v1081
      %v1083 = vpop.xlane.xlu0 %1082
      %v1084 = vsel %vm705, %v703, 0.0
      %1085 = vadd.xlane.f32.xlu0 %v1084
      %v1086 = vpop.xlane.xlu0 %1085
      %v1087 = vsel %vm705, %v704, 0.0
      %1088 = vadd.xlane.f32.xlu0 %v1087
      %v1089 = vpop.xlane.xlu0 %1088
      %v1090 = vlaneseq
      %v1091 = vshrl.u32 %v1090, 7
      %v1092 = vsub.s32 0, %v1091
      %v1093 = vrot.slane %v484, %v1092
      %1095 = vbcast.lane.b32.xlu0 %v1093, 256
      %v1096 = vpop.permute.xlu0 %1095
      %v1097 = vlaneseq
      %v1098 = vshrl.u32 %v1097, 7
      %v1099 = vsub.s32 1, %v1098
      %v1100 = vrot.slane %v484, %v1099
      %1102 = vbcast.lane.b32.xlu0 %v1100, 256
      %v1103 = vpop.permute.xlu0 %1102
      %v1104 = vlaneseq
      %v1105 = vshrl.u32 %v1104, 7
      %v1106 = vsub.s32 2, %v1105
      %v1107 = vrot.slane %v484, %v1106
      %1109 = vbcast.lane.b32.xlu0 %v1107, 256
      %v1110 = vpop.permute.xlu0 %1109
      %v1111 = vlaneseq
      %v1112 = vshrl.u32 %v1111, 7
      %v1113 = vsub.s32 3, %v1112
      %v1114 = vrot.slane %v484, %v1113
      %1116 = vbcast.lane.b32.xlu0 %v1114, 256
      %v1117 = vpop.permute.xlu0 %1116
      %v1118 = vlaneseq
      %v1119 = vshrl.u32 %v1118, 7
      %v1120 = vsub.s32 4, %v1119
      %v1121 = vrot.slane %v484, %v1120
      %1123 = vbcast.lane.b32.xlu0 %v1121, 256
      %v1124 = vpop.permute.xlu0 %1123
      %v1125 = vlaneseq
      %v1126 = vshrl.u32 %v1125, 7
      %v1127 = vsub.s32 5, %v1126
      %v1128 = vrot.slane %v484, %v1127
      %1130 = vbcast.lane.b32.xlu0 %v1128, 256
      %v1131 = vpop.permute.xlu0 %1130
      %v1132 = vlaneseq
      %v1133 = vshrl.u32 %v1132, 7
      %v1134 = vsub.s32 6, %v1133
      %v1135 = vrot.slane %v484, %v1134
      %1137 = vbcast.lane.b32.xlu0 %v1135, 256
      %v1138 = vpop.permute.xlu0 %1137
      %v1139 = vlaneseq
      %v1140 = vshrl.u32 %v1139, 7
      %v1141 = vsub.s32 7, %v1140
      %v1142 = vrot.slane %v484, %v1141
      %1144 = vbcast.lane.b32.xlu0 %v1142, 256
      %v1145 = vpop.permute.xlu0 %1144
      %v1274 = vlaneseq
      %v1275 = vand.u32 %v1274, 127
      %v1276 = vlaneseq
      %v1277 = vshrl.u32 %v1276, 7
      %v1278 = vsub.s32 %v1275, %v1277
      %v1279 = vrot.slane %v708, %v1278
      %v1280 = vadd.s32 %v1275, 4294967288
      %v1281 = vlaneseq
      %v1282 = vshrl.u32 %v1281, 7
      %v1283 = vsub.s32 %v1280, %v1282
      %v1284 = vrot.slane %v711, %v1283
      %vm1285 = vcmask 130112
      %v1286 = vsel %vm1285, %v1284, %v1279
      %v1287 = vlaneseq
      %v1288 = vshrl.u32 %v1287, 7
      %v1289 = vsub.s32 %v1275, %v1288
      %v1290 = vrot.slane %v714, %v1289
      %v1291 = vlaneseq
      %v1292 = vshrl.u32 %v1291, 7
      %v1293 = vsub.s32 %v1280, %v1292
      %v1294 = vrot.slane %v717, %v1293
      %v1295 = vsel %vm1285, %v1294, %v1290
      %v1296 = vlaneseq
      %v1297 = vshrl.u32 %v1296, 7
      %v1298 = vsub.s32 %v1275, %v1297
      %v1299 = vrot.slane %v720, %v1298
      %v1300 = vlaneseq
      %v1301 = vshrl.u32 %v1300, 7
      %v1302 = vsub.s32 %v1280, %v1301
      %v1303 = vrot.slane %v723, %v1302
      %v1304 = vsel %vm1285, %v1303, %v1299
      %v1305 = vlaneseq
      %v1306 = vshrl.u32 %v1305, 7
      %v1307 = vsub.s32 %v1275, %v1306
      %v1308 = vrot.slane %v726, %v1307
      %v1309 = vlaneseq
      %v1310 = vshrl.u32 %v1309, 7
      %v1311 = vsub.s32 %v1280, %v1310
      %v1312 = vrot.slane %v729, %v1311
      %v1313 = vsel %vm1285, %v1312, %v1308
      %v1314 = vlaneseq
      %v1315 = vshrl.u32 %v1314, 7
      %v1316 = vsub.s32 %v1275, %v1315
      %v1317 = vrot.slane %v732, %v1316
      %v1318 = vlaneseq
      %v1319 = vshrl.u32 %v1318, 7
      %v1320 = vsub.s32 %v1280, %v1319
      %v1321 = vrot.slane %v735, %v1320
      %v1322 = vsel %vm1285, %v1321, %v1317
      %v1323 = vlaneseq
      %v1324 = vshrl.u32 %v1323, 7
      %v1325 = vsub.s32 %v1275, %v1324
      %v1326 = vrot.slane %v738, %v1325
      %v1327 = vlaneseq
      %v1328 = vshrl.u32 %v1327, 7
      %v1329 = vsub.s32 %v1280, %v1328
      %v1330 = vrot.slane %v741, %v1329
      %v1331 = vsel %vm1285, %v1330, %v1326
      %v1332 = vlaneseq
      %v1333 = vshrl.u32 %v1332, 7
      %v1334 = vsub.s32 %v1275, %v1333
      %v1335 = vrot.slane %v744, %v1334
      %v1336 = vlaneseq
      %v1337 = vshrl.u32 %v1336, 7
      %v1338 = vsub.s32 %v1280, %v1337
      %v1339 = vrot.slane %v747, %v1338
      %v1340 = vsel %vm1285, %v1339, %v1335
      %v1341 = vlaneseq
      %v1342 = vshrl.u32 %v1341, 7
      %v1343 = vsub.s32 %v1275, %v1342
      %v1344 = vrot.slane %v750, %v1343
      %v1345 = vlaneseq
      %v1346 = vshrl.u32 %v1345, 7
      %v1347 = vsub.s32 %v1280, %v1346
      %v1348 = vrot.slane %v753, %v1347
      %v1349 = vsel %vm1285, %v1348, %v1344
      %v1350 = vlaneseq
      %v1351 = vshrl.u32 %v1350, 7
      %v1352 = vsub.s32 %v1275, %v1351
      %v1353 = vrot.slane %v756, %v1352
      %v1354 = vlaneseq
      %v1355 = vshrl.u32 %v1354, 7
      %v1356 = vsub.s32 %v1280, %v1355
      %v1357 = vrot.slane %v759, %v1356
      %v1358 = vsel %vm1285, %v1357, %v1353
      %v1359 = vlaneseq
      %v1360 = vshrl.u32 %v1359, 7
      %v1361 = vsub.s32 %v1275, %v1360
      %v1362 = vrot.slane %v762, %v1361
      %v1363 = vlaneseq
      %v1364 = vshrl.u32 %v1363, 7
      %v1365 = vsub.s32 %v1280, %v1364
      %v1366 = vrot.slane %v765, %v1365
      %v1367 = vsel %vm1285, %v1366, %v1362
      %v1368 = vlaneseq
      %v1369 = vshrl.u32 %v1368, 7
      %v1370 = vsub.s32 %v1275, %v1369
      %v1371 = vrot.slane %v768, %v1370
      %v1372 = vlaneseq
      %v1373 = vshrl.u32 %v1372, 7
      %v1374 = vsub.s32 %v1280, %v1373
      %v1375 = vrot.slane %v771, %v1374
      %v1376 = vsel %vm1285, %v1375, %v1371
      %v1377 = vlaneseq
      %v1378 = vshrl.u32 %v1377, 7
      %v1379 = vsub.s32 %v1275, %v1378
      %v1380 = vrot.slane %v774, %v1379
      %v1381 = vlaneseq
      %v1382 = vshrl.u32 %v1381, 7
      %v1383 = vsub.s32 %v1280, %v1382
      %v1384 = vrot.slane %v777, %v1383
      %v1385 = vsel %vm1285, %v1384, %v1380
      %v1386 = vlaneseq
      %v1387 = vshrl.u32 %v1386, 7
      %v1388 = vsub.s32 %v1275, %v1387
      %v1389 = vrot.slane %v780, %v1388
      %v1390 = vlaneseq
      %v1391 = vshrl.u32 %v1390, 7
      %v1392 = vsub.s32 %v1280, %v1391
      %v1393 = vrot.slane %v783, %v1392
      %v1394 = vsel %vm1285, %v1393, %v1389
      %v1395 = vlaneseq
      %v1396 = vshrl.u32 %v1395, 7
      %v1397 = vsub.s32 %v1275, %v1396
      %v1398 = vrot.slane %v786, %v1397
      %v1399 = vlaneseq
      %v1400 = vshrl.u32 %v1399, 7
      %v1401 = vsub.s32 %v1280, %v1400
      %v1402 = vrot.slane %v789, %v1401
      %v1403 = vsel %vm1285, %v1402, %v1398
      %v1404 = vlaneseq
      %v1405 = vshrl.u32 %v1404, 7
      %v1406 = vsub.s32 %v1275, %v1405
      %v1407 = vrot.slane %v792, %v1406
      %v1408 = vlaneseq
      %v1409 = vshrl.u32 %v1408, 7
      %v1410 = vsub.s32 %v1280, %v1409
      %v1411 = vrot.slane %v795, %v1410
      %v1412 = vsel %vm1285, %v1411, %v1407
      %v1413 = vlaneseq
      %v1414 = vshrl.u32 %v1413, 7
      %v1415 = vsub.s32 %v1275, %v1414
      %v1416 = vrot.slane %v798, %v1415
      %v1417 = vlaneseq
      %v1418 = vshrl.u32 %v1417, 7
      %v1419 = vsub.s32 %v1280, %v1418
      %v1420 = vrot.slane %v801, %v1419
      %v1421 = vsel %vm1285, %v1420, %v1416
      %v1422 = vlaneseq
      %v1423 = vshrl.u32 %v1422, 7
      %v1424 = vsub.s32 %v1275, %v1423
      %v1425 = vrot.slane %v804, %v1424
      %v1426 = vlaneseq
      %v1427 = vshrl.u32 %v1426, 7
      %v1428 = vsub.s32 %v1280, %v1427
      %v1429 = vrot.slane %v807, %v1428
      %v1430 = vsel %vm1285, %v1429, %v1425
      %v1431 = vlaneseq
      %v1432 = vshrl.u32 %v1431, 7
      %v1433 = vsub.s32 %v1275, %v1432
      %v1434 = vrot.slane %v810, %v1433
      %v1435 = vlaneseq
      %v1436 = vshrl.u32 %v1435, 7
      %v1437 = vsub.s32 %v1280, %v1436
      %v1438 = vrot.slane %v813, %v1437
      %v1439 = vsel %vm1285, %v1438, %v1434
      %v1440 = vlaneseq
      %v1441 = vshrl.u32 %v1440, 7
      %v1442 = vsub.s32 %v1275, %v1441
      %v1443 = vrot.slane %v816, %v1442
      %v1444 = vlaneseq
      %v1445 = vshrl.u32 %v1444, 7
      %v1446 = vsub.s32 %v1280, %v1445
      %v1447 = vrot.slane %v819, %v1446
      %v1448 = vsel %vm1285, %v1447, %v1443
      %v1449 = vlaneseq
      %v1450 = vshrl.u32 %v1449, 7
      %v1451 = vsub.s32 %v1275, %v1450
      %v1452 = vrot.slane %v822, %v1451
      %v1453 = vlaneseq
      %v1454 = vshrl.u32 %v1453, 7
      %v1455 = vsub.s32 %v1280, %v1454
      %v1456 = vrot.slane %v825, %v1455
      %v1457 = vsel %vm1285, %v1456, %v1452
      %v1458 = vlaneseq
      %v1459 = vshrl.u32 %v1458, 7
      %v1460 = vsub.s32 %v1275, %v1459
      %v1461 = vrot.slane %v828, %v1460
      %v1462 = vlaneseq
      %v1463 = vshrl.u32 %v1462, 7
      %v1464 = vsub.s32 %v1280, %v1463
      %v1465 = vrot.slane %v831, %v1464
      %v1466 = vsel %vm1285, %v1465, %v1461
      %v1467 = vlaneseq
      %v1468 = vshrl.u32 %v1467, 7
      %v1469 = vsub.s32 %v1275, %v1468
      %v1470 = vrot.slane %v834, %v1469
      %v1471 = vlaneseq
      %v1472 = vshrl.u32 %v1471, 7
      %v1473 = vsub.s32 %v1280, %v1472
      %v1474 = vrot.slane %v837, %v1473
      %v1475 = vsel %vm1285, %v1474, %v1470
      %v1476 = vlaneseq
      %v1477 = vshrl.u32 %v1476, 7
      %v1478 = vsub.s32 %v1275, %v1477
      %v1479 = vrot.slane %v840, %v1478
      %v1480 = vlaneseq
      %v1481 = vshrl.u32 %v1480, 7
      %v1482 = vsub.s32 %v1280, %v1481
      %v1483 = vrot.slane %v843, %v1482
      %v1484 = vsel %vm1285, %v1483, %v1479
      %v1485 = vlaneseq
      %v1486 = vshrl.u32 %v1485, 7
      %v1487 = vsub.s32 %v1275, %v1486
      %v1488 = vrot.slane %v846, %v1487
      %v1489 = vlaneseq
      %v1490 = vshrl.u32 %v1489, 7
      %v1491 = vsub.s32 %v1280, %v1490
      %v1492 = vrot.slane %v849, %v1491
      %v1493 = vsel %vm1285, %v1492, %v1488
      %v1494 = vlaneseq
      %v1495 = vshrl.u32 %v1494, 7
      %v1496 = vsub.s32 %v1275, %v1495
      %v1497 = vrot.slane %v852, %v1496
      %v1498 = vlaneseq
      %v1499 = vshrl.u32 %v1498, 7
      %v1500 = vsub.s32 %v1280, %v1499
      %v1501 = vrot.slane %v855, %v1500
      %v1502 = vsel %vm1285, %v1501, %v1497
      %v1503 = vlaneseq
      %v1504 = vshrl.u32 %v1503, 7
      %v1505 = vsub.s32 %v1275, %v1504
      %v1506 = vrot.slane %v858, %v1505
      %v1507 = vlaneseq
      %v1508 = vshrl.u32 %v1507, 7
      %v1509 = vsub.s32 %v1280, %v1508
      %v1510 = vrot.slane %v861, %v1509
      %v1511 = vsel %vm1285, %v1510, %v1506
      %v1512 = vlaneseq
      %v1513 = vshrl.u32 %v1512, 7
      %v1514 = vsub.s32 %v1275, %v1513
      %v1515 = vrot.slane %v864, %v1514
      %v1516 = vlaneseq
      %v1517 = vshrl.u32 %v1516, 7
      %v1518 = vsub.s32 %v1280, %v1517
      %v1519 = vrot.slane %v867, %v1518
      %v1520 = vsel %vm1285, %v1519, %v1515
      %v1521 = vlaneseq
      %v1522 = vshrl.u32 %v1521, 7
      %v1523 = vsub.s32 %v1275, %v1522
      %v1524 = vrot.slane %v870, %v1523
      %v1525 = vlaneseq
      %v1526 = vshrl.u32 %v1525, 7
      %v1527 = vsub.s32 %v1280, %v1526
      %v1528 = vrot.slane %v873, %v1527
      %v1529 = vsel %vm1285, %v1528, %v1524
      %v1530 = vlaneseq
      %v1531 = vshrl.u32 %v1530, 7
      %v1532 = vsub.s32 %v1275, %v1531
      %v1533 = vrot.slane %v876, %v1532
      %v1534 = vlaneseq
      %v1535 = vshrl.u32 %v1534, 7
      %v1536 = vsub.s32 %v1280, %v1535
      %v1537 = vrot.slane %v879, %v1536
      %v1538 = vsel %vm1285, %v1537, %v1533
      %v1539 = vlaneseq
      %v1540 = vshrl.u32 %v1539, 7
      %v1541 = vsub.s32 %v1275, %v1540
      %v1542 = vrot.slane %v882, %v1541
      %v1543 = vlaneseq
      %v1544 = vshrl.u32 %v1543, 7
      %v1545 = vsub.s32 %v1280, %v1544
      %v1546 = vrot.slane %v885, %v1545
      %v1547 = vsel %vm1285, %v1546, %v1542
      %v1548 = vlaneseq
      %v1549 = vshrl.u32 %v1548, 7
      %v1550 = vsub.s32 %v1275, %v1549
      %v1551 = vrot.slane %v888, %v1550
      %v1552 = vlaneseq
      %v1553 = vshrl.u32 %v1552, 7
      %v1554 = vsub.s32 %v1280, %v1553
      %v1555 = vrot.slane %v891, %v1554
      %v1556 = vsel %vm1285, %v1555, %v1551
      %v1557 = vlaneseq
      %v1558 = vshrl.u32 %v1557, 7
      %v1559 = vsub.s32 %v1275, %v1558
      %v1560 = vrot.slane %v894, %v1559
      %v1561 = vlaneseq
      %v1562 = vshrl.u32 %v1561, 7
      %v1563 = vsub.s32 %v1280, %v1562
      %v1564 = vrot.slane %v897, %v1563
      %v1565 = vsel %vm1285, %v1564, %v1560
      %v1566 = vlaneseq
      %v1567 = vshrl.u32 %v1566, 7
      %v1568 = vsub.s32 %v1275, %v1567
      %v1569 = vrot.slane %v900, %v1568
      %v1570 = vlaneseq
      %v1571 = vshrl.u32 %v1570, 7
      %v1572 = vsub.s32 %v1280, %v1571
      %v1573 = vrot.slane %v903, %v1572
      %v1574 = vsel %vm1285, %v1573, %v1569
      %v1575 = vlaneseq
      %v1576 = vshrl.u32 %v1575, 7
      %v1577 = vsub.s32 %v1275, %v1576
      %v1578 = vrot.slane %v906, %v1577
      %v1579 = vlaneseq
      %v1580 = vshrl.u32 %v1579, 7
      %v1581 = vsub.s32 %v1280, %v1580
      %v1582 = vrot.slane %v909, %v1581
      %v1583 = vsel %vm1285, %v1582, %v1578
      %v1584 = vlaneseq
      %v1585 = vshrl.u32 %v1584, 7
      %v1586 = vsub.s32 %v1275, %v1585
      %v1587 = vrot.slane %v912, %v1586
      %v1588 = vlaneseq
      %v1589 = vshrl.u32 %v1588, 7
      %v1590 = vsub.s32 %v1280, %v1589
      %v1591 = vrot.slane %v915, %v1590
      %v1592 = vsel %vm1285, %v1591, %v1587
      %v1593 = vlaneseq
      %v1594 = vshrl.u32 %v1593, 7
      %v1595 = vsub.s32 %v1275, %v1594
      %v1596 = vrot.slane %v918, %v1595
      %v1597 = vlaneseq
      %v1598 = vshrl.u32 %v1597, 7
      %v1599 = vsub.s32 %v1280, %v1598
      %v1600 = vrot.slane %v921, %v1599
      %v1601 = vsel %vm1285, %v1600, %v1596
      %v1602 = vlaneseq
      %v1603 = vshrl.u32 %v1602, 7
      %v1604 = vsub.s32 %v1275, %v1603
      %v1605 = vrot.slane %v924, %v1604
      %v1606 = vlaneseq
      %v1607 = vshrl.u32 %v1606, 7
      %v1608 = vsub.s32 %v1280, %v1607
      %v1609 = vrot.slane %v927, %v1608
      %v1610 = vsel %vm1285, %v1609, %v1605
      %v1611 = vlaneseq
      %v1612 = vshrl.u32 %v1611, 7
      %v1613 = vsub.s32 %v1275, %v1612
      %v1614 = vrot.slane %v930, %v1613
      %v1615 = vlaneseq
      %v1616 = vshrl.u32 %v1615, 7
      %v1617 = vsub.s32 %v1280, %v1616
      %v1618 = vrot.slane %v933, %v1617
      %v1619 = vsel %vm1285, %v1618, %v1614
      %v1620 = vlaneseq
      %v1621 = vshrl.u32 %v1620, 7
      %v1622 = vsub.s32 %v1275, %v1621
      %v1623 = vrot.slane %v936, %v1622
      %v1624 = vlaneseq
      %v1625 = vshrl.u32 %v1624, 7
      %v1626 = vsub.s32 %v1280, %v1625
      %v1627 = vrot.slane %v939, %v1626
      %v1628 = vsel %vm1285, %v1627, %v1623
      %v1629 = vlaneseq
      %v1630 = vshrl.u32 %v1629, 7
      %v1631 = vsub.s32 %v1275, %v1630
      %v1632 = vrot.slane %v942, %v1631
      %v1633 = vlaneseq
      %v1634 = vshrl.u32 %v1633, 7
      %v1635 = vsub.s32 %v1280, %v1634
      %v1636 = vrot.slane %v945, %v1635
      %v1637 = vsel %vm1285, %v1636, %v1632
      %v1638 = vlaneseq
      %v1639 = vshrl.u32 %v1638, 7
      %v1640 = vsub.s32 %v1275, %v1639
      %v1641 = vrot.slane %v948, %v1640
      %v1642 = vlaneseq
      %v1643 = vshrl.u32 %v1642, 7
      %v1644 = vsub.s32 %v1280, %v1643
      %v1645 = vrot.slane %v951, %v1644
      %v1646 = vsel %vm1285, %v1645, %v1641
      %v1647 = vlaneseq
      %v1648 = vshrl.u32 %v1647, 7
      %v1649 = vsub.s32 %v1275, %v1648
      %v1650 = vrot.slane %v954, %v1649
      %v1651 = vlaneseq
      %v1652 = vshrl.u32 %v1651, 7
      %v1653 = vsub.s32 %v1280, %v1652
      %v1654 = vrot.slane %v957, %v1653
      %v1655 = vsel %vm1285, %v1654, %v1650
      %v1656 = vlaneseq
      %v1657 = vshrl.u32 %v1656, 7
      %v1658 = vsub.s32 %v1275, %v1657
      %v1659 = vrot.slane %v960, %v1658
      %v1660 = vlaneseq
      %v1661 = vshrl.u32 %v1660, 7
      %v1662 = vsub.s32 %v1280, %v1661
      %v1663 = vrot.slane %v963, %v1662
      %v1664 = vsel %vm1285, %v1663, %v1659
      %v1665 = vlaneseq
      %v1666 = vshrl.u32 %v1665, 7
      %v1667 = vsub.s32 %v1275, %v1666
      %v1668 = vrot.slane %v966, %v1667
      %v1669 = vlaneseq
      %v1670 = vshrl.u32 %v1669, 7
      %v1671 = vsub.s32 %v1280, %v1670
      %v1672 = vrot.slane %v969, %v1671
      %v1673 = vsel %vm1285, %v1672, %v1668
      %v1674 = vlaneseq
      %v1675 = vshrl.u32 %v1674, 7
      %v1676 = vsub.s32 %v1275, %v1675
      %v1677 = vrot.slane %v972, %v1676
      %v1678 = vlaneseq
      %v1679 = vshrl.u32 %v1678, 7
      %v1680 = vsub.s32 %v1280, %v1679
      %v1681 = vrot.slane %v975, %v1680
      %v1682 = vsel %vm1285, %v1681, %v1677
      %v1683 = vlaneseq
      %v1684 = vshrl.u32 %v1683, 7
      %v1685 = vsub.s32 %v1275, %v1684
      %v1686 = vrot.slane %v978, %v1685
      %v1687 = vlaneseq
      %v1688 = vshrl.u32 %v1687, 7
      %v1689 = vsub.s32 %v1280, %v1688
      %v1690 = vrot.slane %v981, %v1689
      %v1691 = vsel %vm1285, %v1690, %v1686
      %v1692 = vlaneseq
      %v1693 = vshrl.u32 %v1692, 7
      %v1694 = vsub.s32 %v1275, %v1693
      %v1695 = vrot.slane %v984, %v1694
      %v1696 = vlaneseq
      %v1697 = vshrl.u32 %v1696, 7
      %v1698 = vsub.s32 %v1280, %v1697
      %v1699 = vrot.slane %v987, %v1698
      %v1700 = vsel %vm1285, %v1699, %v1695
      %v1701 = vlaneseq
      %v1702 = vshrl.u32 %v1701, 7
      %v1703 = vsub.s32 %v1275, %v1702
      %v1704 = vrot.slane %v990, %v1703
      %v1705 = vlaneseq
      %v1706 = vshrl.u32 %v1705, 7
      %v1707 = vsub.s32 %v1280, %v1706
      %v1708 = vrot.slane %v993, %v1707
      %v1709 = vsel %vm1285, %v1708, %v1704
      %v1710 = vlaneseq
      %v1711 = vshrl.u32 %v1710, 7
      %v1712 = vsub.s32 %v1275, %v1711
      %v1713 = vrot.slane %v996, %v1712
      %v1714 = vlaneseq
      %v1715 = vshrl.u32 %v1714, 7
      %v1716 = vsub.s32 %v1280, %v1715
      %v1717 = vrot.slane %v999, %v1716
      %v1718 = vsel %vm1285, %v1717, %v1713
      %v1719 = vlaneseq
      %v1720 = vshrl.u32 %v1719, 7
      %v1721 = vsub.s32 %v1275, %v1720
      %v1722 = vrot.slane %v1002, %v1721
      %v1723 = vlaneseq
      %v1724 = vshrl.u32 %v1723, 7
      %v1725 = vsub.s32 %v1280, %v1724
      %v1726 = vrot.slane %v1005, %v1725
      %v1727 = vsel %vm1285, %v1726, %v1722
      %v1728 = vlaneseq
      %v1729 = vshrl.u32 %v1728, 7
      %v1730 = vsub.s32 %v1275, %v1729
      %v1731 = vrot.slane %v1008, %v1730
      %v1732 = vlaneseq
      %v1733 = vshrl.u32 %v1732, 7
      %v1734 = vsub.s32 %v1280, %v1733
      %v1735 = vrot.slane %v1011, %v1734
      %v1736 = vsel %vm1285, %v1735, %v1731
      %v1737 = vlaneseq
      %v1738 = vshrl.u32 %v1737, 7
      %v1739 = vsub.s32 %v1275, %v1738
      %v1740 = vrot.slane %v1014, %v1739
      %v1741 = vlaneseq
      %v1742 = vshrl.u32 %v1741, 7
      %v1743 = vsub.s32 %v1280, %v1742
      %v1744 = vrot.slane %v1017, %v1743
      %v1745 = vsel %vm1285, %v1744, %v1740
      %v1746 = vlaneseq
      %v1747 = vshrl.u32 %v1746, 7
      %v1748 = vsub.s32 %v1275, %v1747
      %v1749 = vrot.slane %v1020, %v1748
      %v1750 = vlaneseq
      %v1751 = vshrl.u32 %v1750, 7
      %v1752 = vsub.s32 %v1280, %v1751
      %v1753 = vrot.slane %v1023, %v1752
      %v1754 = vsel %vm1285, %v1753, %v1749
      %v1755 = vlaneseq
      %v1756 = vshrl.u32 %v1755, 7
      %v1757 = vsub.s32 %v1275, %v1756
      %v1758 = vrot.slane %v1026, %v1757
      %v1759 = vlaneseq
      %v1760 = vshrl.u32 %v1759, 7
      %v1761 = vsub.s32 %v1280, %v1760
      %v1762 = vrot.slane %v1029, %v1761
      %v1763 = vsel %vm1285, %v1762, %v1758
      %v1764 = vlaneseq
      %v1765 = vshrl.u32 %v1764, 7
      %v1766 = vsub.s32 %v1275, %v1765
      %v1767 = vrot.slane %v1032, %v1766
      %v1768 = vlaneseq
      %v1769 = vshrl.u32 %v1768, 7
      %v1770 = vsub.s32 %v1280, %v1769
      %v1771 = vrot.slane %v1035, %v1770
      %v1772 = vsel %vm1285, %v1771, %v1767
      %v1773 = vlaneseq
      %v1774 = vshrl.u32 %v1773, 7
      %v1775 = vsub.s32 %v1275, %v1774
      %v1776 = vrot.slane %v1038, %v1775
      %v1777 = vlaneseq
      %v1778 = vshrl.u32 %v1777, 7
      %v1779 = vsub.s32 %v1280, %v1778
      %v1780 = vrot.slane %v1041, %v1779
      %v1781 = vsel %vm1285, %v1780, %v1776
      %v1782 = vlaneseq
      %v1783 = vshrl.u32 %v1782, 7
      %v1784 = vsub.s32 %v1275, %v1783
      %v1785 = vrot.slane %v1044, %v1784
      %v1786 = vlaneseq
      %v1787 = vshrl.u32 %v1786, 7
      %v1788 = vsub.s32 %v1280, %v1787
      %v1789 = vrot.slane %v1047, %v1788
      %v1790 = vsel %vm1285, %v1789, %v1785
      %v1791 = vlaneseq
      %v1792 = vshrl.u32 %v1791, 7
      %v1793 = vsub.s32 %v1275, %v1792
      %v1794 = vrot.slane %v1050, %v1793
      %v1795 = vlaneseq
      %v1796 = vshrl.u32 %v1795, 7
      %v1797 = vsub.s32 %v1280, %v1796
      %v1798 = vrot.slane %v1053, %v1797
      %v1799 = vsel %vm1285, %v1798, %v1794
      %v1800 = vlaneseq
      %v1801 = vshrl.u32 %v1800, 7
      %v1802 = vsub.s32 %v1275, %v1801
      %v1803 = vrot.slane %v1056, %v1802
      %v1804 = vlaneseq
      %v1805 = vshrl.u32 %v1804, 7
      %v1806 = vsub.s32 %v1280, %v1805
      %v1807 = vrot.slane %v1059, %v1806
      %v1808 = vsel %vm1285, %v1807, %v1803
      %v1809 = vlaneseq
      %v1810 = vshrl.u32 %v1809, 7
      %v1811 = vsub.s32 %v1275, %v1810
      %v1812 = vrot.slane %v1062, %v1811
      %v1813 = vlaneseq
      %v1814 = vshrl.u32 %v1813, 7
      %v1815 = vsub.s32 %v1280, %v1814
      %v1816 = vrot.slane %v1065, %v1815
      %v1817 = vsel %vm1285, %v1816, %v1812
      %v1818 = vlaneseq
      %v1819 = vshrl.u32 %v1818, 7
      %v1820 = vsub.s32 %v1275, %v1819
      %v1821 = vrot.slane %v1068, %v1820
      %v1822 = vlaneseq
      %v1823 = vshrl.u32 %v1822, 7
      %v1824 = vsub.s32 %v1280, %v1823
      %v1825 = vrot.slane %v1071, %v1824
      %v1826 = vsel %vm1285, %v1825, %v1821
      %v1827 = vlaneseq
      %v1828 = vshrl.u32 %v1827, 7
      %v1829 = vsub.s32 %v1275, %v1828
      %v1830 = vrot.slane %v1074, %v1829
      %v1831 = vlaneseq
      %v1832 = vshrl.u32 %v1831, 7
      %v1833 = vsub.s32 %v1280, %v1832
      %v1834 = vrot.slane %v1077, %v1833
      %v1835 = vsel %vm1285, %v1834, %v1830
      %v1836 = vlaneseq
      %v1837 = vshrl.u32 %v1836, 7
      %v1838 = vsub.s32 %v1275, %v1837
      %v1839 = vrot.slane %v1080, %v1838
      %v1840 = vlaneseq
      %v1841 = vshrl.u32 %v1840, 7
      %v1842 = vsub.s32 %v1280, %v1841
      %v1843 = vrot.slane %v1083, %v1842
      %v1844 = vsel %vm1285, %v1843, %v1839
      %v1845 = vlaneseq
      %v1846 = vshrl.u32 %v1845, 7
      %v1847 = vsub.s32 %v1275, %v1846
      %v1848 = vrot.slane %v1086, %v1847
      %v1849 = vlaneseq
      %v1850 = vshrl.u32 %v1849, 7
      %v1851 = vsub.s32 %v1280, %v1850
      %v1852 = vrot.slane %v1089, %v1851
      %v1853 = vsel %vm1285, %v1852, %v1848
      %vm1854 = vcmask 1041409
      %v1855 = vsel %vm1854, %v1295, %v1286
      %vm1856 = vcmask 1042434
      %v1857 = vsel %vm1856, %v1304, %v1855
      %vm1858 = vcmask 1043459
      %v1859 = vsel %vm1858, %v1313, %v1857
      %vm1860 = vcmask 1044484
      %v1861 = vsel %vm1860, %v1322, %v1859
      %vm1862 = vcmask 1045509
      %v1863 = vsel %vm1862, %v1331, %v1861
      %vm1864 = vcmask 1046534
      %v1865 = vsel %vm1864, %v1340, %v1863
      %vm1866 = vcmask 1047559
      %v1867 = vsel %vm1866, %v1349, %v1865
      %v1868 = vsel %vm1854, %v1367, %v1358
      %v1869 = vsel %vm1856, %v1376, %v1868
      %v1870 = vsel %vm1858, %v1385, %v1869
      %v1871 = vsel %vm1860, %v1394, %v1870
      %v1872 = vsel %vm1862, %v1403, %v1871
      %v1873 = vsel %vm1864, %v1412, %v1872
      %v1874 = vsel %vm1866, %v1421, %v1873
      %v1875 = vsel %vm1854, %v1439, %v1430
      %v1876 = vsel %vm1856, %v1448, %v1875
      %v1877 = vsel %vm1858, %v1457, %v1876
      %v1878 = vsel %vm1860, %v1466, %v1877
      %v1879 = vsel %vm1862, %v1475, %v1878
      %v1880 = vsel %vm1864, %v1484, %v1879
      %v1881 = vsel %vm1866, %v1493, %v1880
      %v1882 = vsel %vm1854, %v1511, %v1502
      %v1883 = vsel %vm1856, %v1520, %v1882
      %v1884 = vsel %vm1858, %v1529, %v1883
      %v1885 = vsel %vm1860, %v1538, %v1884
      %v1886 = vsel %vm1862, %v1547, %v1885
      %v1887 = vsel %vm1864, %v1556, %v1886
      %v1888 = vsel %vm1866, %v1565, %v1887
      %v1889 = vsel %vm1854, %v1583, %v1574
      %v1890 = vsel %vm1856, %v1592, %v1889
      %v1891 = vsel %vm1858, %v1601, %v1890
      %v1892 = vsel %vm1860, %v1610, %v1891
      %v1893 = vsel %vm1862, %v1619, %v1892
      %v1894 = vsel %vm1864, %v1628, %v1893
      %v1895 = vsel %vm1866, %v1637, %v1894
      %v1896 = vsel %vm1854, %v1655, %v1646
      %v1897 = vsel %vm1856, %v1664, %v1896
      %v1898 = vsel %vm1858, %v1673, %v1897
      %v1899 = vsel %vm1860, %v1682, %v1898
      %v1900 = vsel %vm1862, %v1691, %v1899
      %v1901 = vsel %vm1864, %v1700, %v1900
      %v1902 = vsel %vm1866, %v1709, %v1901
      %v1903 = vsel %vm1854, %v1727, %v1718
      %v1904 = vsel %vm1856, %v1736, %v1903
      %v1905 = vsel %vm1858, %v1745, %v1904
      %v1906 = vsel %vm1860, %v1754, %v1905
      %v1907 = vsel %vm1862, %v1763, %v1906
      %v1908 = vsel %vm1864, %v1772, %v1907
      %v1909 = vsel %vm1866, %v1781, %v1908
      %v1910 = vsel %vm1854, %v1799, %v1790
      %v1911 = vsel %vm1856, %v1808, %v1910
      %v1912 = vsel %vm1858, %v1817, %v1911
      %v1913 = vsel %vm1860, %v1826, %v1912
      %v1914 = vsel %vm1862, %v1835, %v1913
      %v1915 = vsel %vm1864, %v1844, %v1914
      %v1916 = vsel %vm1866, %v1853, %v1915
      %v1925 = vmul.f32 %v1096, %v1867
      %v1926 = vmul.f32 %v1103, %v1874
      %v1927 = vmul.f32 %v1110, %v1881
      %v1928 = vmul.f32 %v1117, %v1888
      %v1929 = vmul.f32 %v1124, %v1895
      %v1930 = vmul.f32 %v1131, %v1902
      %v1931 = vmul.f32 %v1138, %v1909
      %v1932 = vmul.f32 %v1145, %v1916
      %v1933 = vsel %vm705, %v1925, 0.0
      %v1934 = vsel %vm705, %v1926, 0.0
      %v1935 = vadd.f32 %v1933, %v1934
      %v1936 = vsel %vm705, %v1927, 0.0
      %v1937 = vadd.f32 %v1935, %v1936
      %v1938 = vsel %vm705, %v1928, 0.0
      %v1939 = vadd.f32 %v1937, %v1938
      %v1940 = vsel %vm705, %v1929, 0.0
      %v1941 = vadd.f32 %v1939, %v1940
      %v1942 = vsel %vm705, %v1930, 0.0
      %v1943 = vadd.f32 %v1941, %v1942
      %v1944 = vsel %vm705, %v1931, 0.0
      %v1945 = vadd.f32 %v1943, %v1944
      %v1946 = vsel %vm705, %v1932, 0.0
      %v1947 = vadd.f32 %v1945, %v1946
      %v1948 = vpack.c.bf16 %v1947, %v1947
      %v1949 = vld [vmem:[%s4] sm:$0xff]
      %v1950 = vld [vmem:[%s4 + $0x8] sm:$0xff]
      %v1951 = vpack.c.bf16 %v1950, %v1949
      %v1952 = vld [vmem:[%s5] sm:$0x1]
      %v1954 = vlaneseq
      %v1955 = vshrl.u32 %v1954, 7
      %v1956 = vsub.s32 0, %v1955
      %v1957 = vrot.slane %v1952, %v1956
      %v1960 = vsel %vm705, %v1948, 0
      %1962 = vmatprep.subr.bf16.mxu0 0
      %1963 = vmatpush1.bf16.msra.mxu0 %v1951
      %1964 = vmatprep.subr.bf16.mxu0 0
      %1965 = vmatpush1.bf16.msra.mxu0 0
      %1966 = vmatprep.subr.bf16.mxu0 0
      %1967 = vmatpush1.bf16.msra.mxu0 0
      %1968 = vmatprep.subr.bf16.mxu0 0
      %1969 = vmatpush1.bf16.msra.mxu0 0
      %1970 = vmatprep.subr.bf16.mxu0 0
      %1971 = vmatpush1.bf16.msra.mxu0 0
      %1972 = vmatprep.subr.bf16.mxu0 0
      %1973 = vmatpush1.bf16.msra.mxu0 0
      %1974 = vmatprep.subr.bf16.mxu0 0
      %1975 = vmatpush1.bf16.msra.mxu0 0
      %1976 = vmatprep.subr.bf16.mxu0 0
      %1977 = vmatpush1.bf16.msra.mxu0 0
      %1978 = vmatprep.subr.bf16.mxu0 0
      %1979 = vmatpush1.bf16.msra.mxu0 0
      %1980 = vmatprep.subr.bf16.mxu0 0
      %1981 = vmatpush1.bf16.msra.mxu0 0
      %1982 = vmatprep.subr.bf16.mxu0 0
      %1983 = vmatpush1.bf16.msra.mxu0 0
      %1984 = vmatprep.subr.bf16.mxu0 0
      %1985 = vmatpush1.bf16.msra.mxu0 0
      %1986 = vmatprep.subr.bf16.mxu0 0
      %1987 = vmatpush1.bf16.msra.mxu0 0
      %1988 = vmatprep.subr.bf16.mxu0 0
      %1989 = vmatpush1.bf16.msra.mxu0 0
      %1990 = vmatprep.subr.bf16.mxu0 0
      %1991 = vmatpush1.bf16.msra.mxu0 0
      %1992 = vmatprep.subr.bf16.mxu0 0
      %1993 = vmatpush1.bf16.msra.mxu0 0
      %1994 = vmatprep.mubr.bf16.mxu0 0
      %1995 = vmatmul.mubr.bf16.gmra.mrb[0].mxu0 %v1960
      %v1996 = vpop.f32.mrb[0].mxu0
      %v1997 = vadd.f32 %v1957, %v1996
      %v1998 = vpop.f32.mrb[0].mxu0
      %v1999 = vpop.f32.mrb[0].mxu0
      %v2000 = vpop.f32.mrb[0].mxu0
      %2001 = vdwg.mxu0
      %v2002 = vpack.c.bf16 %v485, %v485
      %v2003 = vld [vmem:[%s6] sm:$0xff]
      %v2004 = vld [vmem:[%s6 + $0x8] sm:$0xff]
      %v2005 = vpack.c.bf16 %v2004, %v2003
      %v2006 = vld [vmem:[%s7] sm:$0x1]
      %v2008 = vlaneseq
      %v2009 = vshrl.u32 %v2008, 7
      %v2010 = vsub.s32 0, %v2009
      %v2011 = vrot.slane %v2006, %v2010
      %v2014 = vsel %vm705, %v2002, 0
      %2016 = vmatprep.subr.bf16.mxu0 0
      %2017 = vmatpush1.bf16.msra.mxu0 %v2005
      %2018 = vmatprep.subr.bf16.mxu0 0
      %2019 = vmatpush1.bf16.msra.mxu0 0
      %2020 = vmatprep.subr.bf16.mxu0 0
      %2021 = vmatpush1.bf16.msra.mxu0 0
      %2022 = vmatprep.subr.bf16.mxu0 0
      %2023 = vmatpush1.bf16.msra.mxu0 0
      %2024 = vmatprep.subr.bf16.mxu0 0
      %2025 = vmatpush1.bf16.msra.mxu0 0
      %2026 = vmatprep.subr.bf16.mxu0 0
      %2027 = vmatpush1.bf16.msra.mxu0 0
      %2028 = vmatprep.subr.bf16.mxu0 0
      %2029 = vmatpush1.bf16.msra.mxu0 0
      %2030 = vmatprep.subr.bf16.mxu0 0
      %2031 = vmatpush1.bf16.msra.mxu0 0
      %2032 = vmatprep.subr.bf16.mxu0 0
      %2033 = vmatpush1.bf16.msra.mxu0 0
      %2034 = vmatprep.subr.bf16.mxu0 0
      %2035 = vmatpush1.bf16.msra.mxu0 0
      %2036 = vmatprep.subr.bf16.mxu0 0
      %2037 = vmatpush1.bf16.msra.mxu0 0
      %2038 = vmatprep.subr.bf16.mxu0 0
      %2039 = vmatpush1.bf16.msra.mxu0 0
      %2040 = vmatprep.subr.bf16.mxu0 0
      %2041 = vmatpush1.bf16.msra.mxu0 0
      %2042 = vmatprep.subr.bf16.mxu0 0
      %2043 = vmatpush1.bf16.msra.mxu0 0
      %2044 = vmatprep.subr.bf16.mxu0 0
      %2045 = vmatpush1.bf16.msra.mxu0 0
      %2046 = vmatprep.subr.bf16.mxu0 0
      %2047 = vmatpush1.bf16.msra.mxu0 0
      %2048 = vmatprep.mubr.bf16.mxu0 0
      %2049 = vmatmul.mubr.bf16.gmra.mrb[0].mxu0 %v2014
      %v2050 = vpop.f32.mrb[0].mxu0
      %v2051 = vadd.f32 %v2011, %v2050
      %v2052 = vpop.f32.mrb[0].mxu0
      %v2053 = vpop.f32.mrb[0].mxu0
      %v2054 = vpop.f32.mrb[0].mxu0
      %2055 = vdwg.mxu0
      %v2056 = vadd.f32 %v1997, %v2051
      %v2057 = vxor.u32 %v2056, 2147483648
      %v2058 = vmul.f32 %v2057, 1.442695
      %v2059 = vpow.pop %v2058
      %v2060 = vadd.f32 %v2059, 1.0
      %v2061 = vrcp.pop %v2060
      %v2062 = vmul.f32 1.0, %v2061
      %2064 = vrot.lane.b32.xlu0 %v2051, 96
      %v2065 = vpop.permute.xlu0 %2064
      %v2067 = vmul.f32 %v2062, %v2065
      %2069 = vrot.lane.b32.xlu0 %v2067, 32
      %v2070 = vpop.permute.xlu0 %2069
      %v2072 = vadd.f32 %v1997, %v2070
      %v2073 = vtanh.pop %v2072
      %v2074 = vsub.f32 1.0, %v2062
      %2076 = vrot.lane.b32.xlu0 %v2073, 112
      %v2077 = vpop.permute.xlu0 %2076
      %v2079 = vmul.f32 %v2074, %v2077
      %2080 = vrot.lane.b32.xlu0 %v485, 16
      %v2081 = vpop.permute.xlu0 %2080
      %v2083 = vmul.f32 %v2062, %v2081
      %v2084 = vadd.f32 %v2079, %v2083
      %2086 = vset.pattern.permute.xlu0 0
      %2087 = vperm.xlu0 %2086, %v486
      %v2088 = vpop.permute.xlu0 %2087
      %v2090 = vmul.f32 %v2084, %v2088
      %2092 = vrot.lane.b32.xlu0 %v2090, 112
      %v2093 = vpop.permute.xlu0 %2092
      %2095 = vst.msk [vmem:[%s354] sm:$0xff] %vm705, %v2093
      %p2096 = scmp.lt.s32.totalorder %s19, 1
      %s2097 = scalar_select %p2096, %s19, 1
      %s2098 = smul.addr %s2097, 8
      %s2099 = scalar_lea.vmem %s8, %s2098
      // Predicated region
      $region53: #{mpnn_linear_forward.5} parent=51 // pred_check
        %p2100 = pneg %p225
      $region54: #{mpnn_linear_forward.5} parent=51 // pred_check_branch
        %2102 = sbr.rel (%p2100) target = $region56
      $region55: #{mpnn_linear_forward.5} parent=51 // pred_region
        _
      $region56: #{mpnn_linear_forward.5} parent=51 // pred_fallthru
        _
    $region52: #{mpnn_linear_forward.5} parent=5 // pred_fallthru
      _
    %p2103 = scmp.le.s32.totalorder 2, %s14
    // Predicated region
    $region57: #{mpnn_linear_forward.5} parent=5 // pred_check
      %p2104 = pneg %p2103
    $region58: #{mpnn_linear_forward.5} parent=5 // pred_check_branch
      %2106 = sbr.rel (%p2104) target = $region60
    $region59: #{mpnn_linear_forward.5} parent=5 // pred_region
      %s2107 = ssub.s32 %s14, 2
      // Predicated region
      $region61: #{mpnn_linear_forward.5} parent=59 // pred_check
        %p2108 = pneg %p231
      $region62: #{mpnn_linear_forward.5} parent=59 // pred_check_branch
        %2110 = sbr.rel (%p2108) target = $region64
      $region63: #{mpnn_linear_forward.5} parent=59 // pred_region
        %p2111 = scmp.lt.s32.totalorder %s20, 1
        %s2112 = scalar_select %p2111, %s20, 1
        %s2113 = smul.addr %s2112, 8
        %s2114 = scalar_lea.vmem %s8, %s2113
      $region64: #{mpnn_linear_forward.5} parent=59 // pred_fallthru
        _
    $region60: #{mpnn_linear_forward.5} parent=5 // pred_fallthru
      _
  $region6: #{mpnn_linear_forward.5} parent=0 // loop_footer
    %s18 = sadd.s32 1, %s14
  $region7: #{mpnn_linear_forward.5} parent=0 // loop_footer_branch
    %13 = sbr.rel target = $region3
  $region8: #{mpnn_linear_forward.5} parent=0 // loop_exit
    _

// kernel: mpnn_linear_forward.7
$region0: #{mpnn_linear_forward.7}
  #allocation0 [shape = 'u32[]', space=smem, size = 0x4, offset = 0x4, fixed_abs, tag = 'smem constant byte address 0x4 - core index']
  #allocation1 [shape = 'u32[144,128]{1,0:T(1,128)}', space=vmem, size = 0x12000, scoped, tag = 'internal scratch']
  %s0 = inlined_call_operand.vmem [shape: f32[2,8,16], index: 0, kind: input, shape index: {}]
  %s1 = inlined_call_operand.vmem [shape: f32[2,8,16], index: 1, kind: input, shape index: {}]
  %s2 = inlined_call_operand.vmem [shape: f32[2,8,1], index: 2, kind: input, shape index: {}]
  %s3 = inlined_call_operand.vmem [shape: f32[32,128], index: 3, kind: input, shape index: {}]
  %s4 = inlined_call_operand.vmem [shape: f32[1,128], index: 4, kind: input, shape index: {}]
  %s5 = inlined_call_operand.vmem [shape: f32[128,256], index: 5, kind: input, shape index: {}]
  %s6 = inlined_call_operand.vmem [shape: f32[1,256], index: 6, kind: input, shape index: {}]
  %s7 = inlined_call_operand.vmem [shape: f32[256,128], index: 7, kind: input, shape index: {}]
  %s8 = inlined_call_operand.vmem [shape: f32[1,128], index: 8, kind: input, shape index: {}]
  %s9 = inlined_call_operand.vmem [shape: f32[128,10], index: 9, kind: input, shape index: {}]
  %s10 = inlined_call_operand.vmem [shape: f32[1,10], index: 10, kind: input, shape index: {}]
  %s11 = inlined_call_operand.vmem [shape: f32[16,128], index: 11, kind: input, shape index: {}]
  %s12 = inlined_call_operand.vmem [shape: f32[1,128], index: 12, kind: input, shape index: {}]
  %s13 = inlined_call_operand.vmem [shape: f32[128,256], index: 13, kind: input, shape index: {}]
  %s14 = inlined_call_operand.vmem [shape: f32[1,256], index: 14, kind: input, shape index: {}]
  %s15 = inlined_call_operand.vmem [shape: f32[256,128], index: 15, kind: input, shape index: {}]
  %s16 = inlined_call_operand.vmem [shape: f32[1,128], index: 16, kind: input, shape index: {}]
  %s17 = inlined_call_operand.vmem [shape: f32[128,10], index: 17, kind: input, shape index: {}]
  %s18 = inlined_call_operand.vmem [shape: f32[1,10], index: 18, kind: input, shape index: {}]
  %s19 = inlined_call_operand.hbm [shape: f32[2,1,10], index: 19, kind: output, shape index: {}]
  %s20 = sld [smem:[#allocation0]]
  $region109: #{mpnn_linear_forward.7} parent=0
    _
  %s22 = ssub.s32 1, %s20
  %s23 = scalar_select 0, %s22, %s20
  $region1: #{mpnn_linear_forward.7} parent=0
    #allocation2 [shape = 'u8[1024]{0}', space=vmem, size = 0x400, scoped, tag = 'output window, operand 0']
    #allocation3 [shape = 's32[2]{0}', space=sflag, size = 0x8, scoped, tag = 'scoped memory for mpnn_linear_forward.7']
    %24 = vsyncpa [#allocation3], 0
    %s25 = scalar_lea.sflag [#allocation3], 1
    %26 = vsyncpa %s25, 0
    loop: start=0, step=1, limit=4
    $region2: #{mpnn_linear_forward.7} parent=1 // loop_pre_header
      _
    $region3: #{mpnn_linear_forward.7} parent=1 // loop_header
      %s28 = sphi 0, %s32
      %p29 = scmp.ge.s32.totalorder %s28, 4
      %s38 = sphi 0, %s40
      %s41 = sphi 0, %s38
      %s42 = sphi 0, %s41
      %s58 = sphi 0, %s42
      %s64 = sphi 0, %s66
      %s67 = sphi 0, %s64
      %s68 = sphi 0, %s67
      %s84 = sphi 0, %s68
      %s90 = sphi 0, %s92
      %s93 = sphi 0, %s90
      %s94 = sphi 0, %s93
      %s110 = sphi 0, %s94
      %s114 = sphi 0, %s114
      %s116 = sphi 0, %s114
      %s117 = sphi 0, %s116
      %s131 = sphi 0, %s117
      %s135 = sphi 0, %s135
      %s137 = sphi 0, %s135
      %s138 = sphi 0, %s137
      %s152 = sphi 0, %s138
      %s156 = sphi 0, %s156
      %s158 = sphi 0, %s156
      %s159 = sphi 0, %s158
      %s173 = sphi 0, %s159
      %s177 = sphi 0, %s177
      %s179 = sphi 0, %s177
      %s180 = sphi 0, %s179
      %s194 = sphi 0, %s180
      %s198 = sphi 0, %s198
      %s200 = sphi 0, %s198
      %s201 = sphi 0, %s200
      %s215 = sphi 0, %s201
      %s219 = sphi 0, %s219
      %s221 = sphi 0, %s219
      %s222 = sphi 0, %s221
      %s236 = sphi 0, %s222
      %s240 = sphi 0, %s240
      %s242 = sphi 0, %s240
      %s243 = sphi 0, %s242
      %s257 = sphi 0, %s243
      %s261 = sphi 0, %s261
      %s263 = sphi 0, %s261
      %s264 = sphi 0, %s263
      %s278 = sphi 0, %s264
      %s282 = sphi 0, %s282
      %s284 = sphi 0, %s282
      %s285 = sphi 0, %s284
      %s299 = sphi 0, %s285
      %s303 = sphi 0, %s303
      %s305 = sphi 0, %s303
      %s306 = sphi 0, %s305
      %s320 = sphi 0, %s306
      %s324 = sphi 0, %s324
      %s326 = sphi 0, %s324
      %s327 = sphi 0, %s326
      %s341 = sphi 0, %s327
      %s345 = sphi 0, %s345
      %s347 = sphi 0, %s345
      %s348 = sphi 0, %s347
      %s362 = sphi 0, %s348
      %s366 = sphi 0, %s366
      %s368 = sphi 0, %s366
      %s369 = sphi 0, %s368
      %s383 = sphi 0, %s369
      %s387 = sphi 0, %s387
      %s389 = sphi 0, %s387
      %s390 = sphi 0, %s389
      %s404 = sphi 0, %s390
      %s408 = sphi 0, %s408
      %s410 = sphi 0, %s408
      %s411 = sphi 0, %s410
      %s425 = sphi 0, %s411
      %s429 = sphi 0, %s429
      %s431 = sphi 0, %s429
      %s432 = sphi 0, %s431
      %s446 = sphi 0, %s432
      %s452 = sphi 0, %s454
      %s455 = sphi 0, %s452
      %s456 = sphi 0, %s455
      %s472 = sphi 0, %s456
    $region4: #{mpnn_linear_forward.7} parent=1 // loop_header_branch
      %31 = sbr.rel (%p29) target = $region8
    $region5: #{mpnn_linear_forward.7} parent=1 // loop_body
      %s33 = ssub.s32 %s28, 1
      %s34 = ssub.s32 %s28, 2
      %s35 = sadd.s32 %s28, 1
      %s36 = ssub.s32 %s28, %s35
      %p37 = scmp.eq.s32.totalorder %s36, 0
      %s39 = sadd.s32 %s38, 1
      %s40 = scalar_select %p37, %s38, %s39
      %p43 = pneg %p37
      %p44 = scmp.eq.s32.totalorder %s28, 1
      %p45 = por %p43, %p44
      %p46 = scmp.ne.s32.totalorder %s38, %s41
      %p47 = scmp.eq.s32.totalorder %s28, 0
      %p48 = por %p46, %p47
      %p49 = scmp.ne.s32.totalorder %s38, %s41
      %p50 = scmp.eq.s32.totalorder %s33, 1
      %p51 = por %p49, %p50
      %p52 = scmp.ne.s32.totalorder %s41, %s42
      %p53 = scmp.eq.s32.totalorder %s33, 0
      %p54 = por %p52, %p53
      %p55 = scmp.ne.s32.totalorder %s41, %s42
      %p56 = scmp.eq.s32.totalorder %s34, 1
      %p57 = por %p55, %p56
      %p59 = scmp.ne.s32.totalorder %s42, %s58
      %p60 = scmp.eq.s32.totalorder %s34, 0
      %p61 = por %p59, %p60
      %s62 = ssub.s32 %s28, %s35
      %p63 = scmp.eq.s32.totalorder %s62, 0
      %s65 = sadd.s32 %s64, 1
      %s66 = scalar_select %p63, %s64, %s65
      %p69 = pneg %p63
      %p70 = scmp.eq.s32.totalorder %s28, 1
      %p71 = por %p69, %p70
      %p72 = scmp.ne.s32.totalorder %s64, %s67
      %p73 = scmp.eq.s32.totalorder %s28, 0
      %p74 = por %p72, %p73
      %p75 = scmp.ne.s32.totalorder %s64, %s67
      %p76 = scmp.eq.s32.totalorder %s33, 1
      %p77 = por %p75, %p76
      %p78 = scmp.ne.s32.totalorder %s67, %s68
      %p79 = scmp.eq.s32.totalorder %s33, 0
      %p80 = por %p78, %p79
      %p81 = scmp.ne.s32.totalorder %s67, %s68
      %p82 = scmp.eq.s32.totalorder %s34, 1
      %p83 = por %p81, %p82
      %p85 = scmp.ne.s32.totalorder %s68, %s84
      %p86 = scmp.eq.s32.totalorder %s34, 0
      %p87 = por %p85, %p86
      %s88 = ssub.s32 %s28, %s35
      %p89 = scmp.eq.s32.totalorder %s88, 0
      %s91 = sadd.s32 %s90, 1
      %s92 = scalar_select %p89, %s90, %s91
      %p95 = pneg %p89
      %p96 = scmp.eq.s32.totalorder %s28, 1
      %p97 = por %p95, %p96
      %p98 = scmp.ne.s32.totalorder %s90, %s93
      %p99 = scmp.eq.s32.totalorder %s28, 0
      %p100 = por %p98, %p99
      %p101 = scmp.ne.s32.totalorder %s90, %s93
      %p102 = scmp.eq.s32.totalorder %s33, 1
      %p103 = por %p101, %p102
      %p104 = scmp.ne.s32.totalorder %s93, %s94
      %p105 = scmp.eq.s32.totalorder %s33, 0
      %p106 = por %p104, %p105
      %p107 = scmp.ne.s32.totalorder %s93, %s94
      %p108 = scmp.eq.s32.totalorder %s34, 1
      %p109 = por %p107, %p108
      %p111 = scmp.ne.s32.totalorder %s94, %s110
      %p112 = scmp.eq.s32.totalorder %s34, 0
      %p113 = por %p111, %p112
      %s115 = sadd.s32 %s114, 1
      %p118 = scmp.eq.s32.totalorder %s28, 1
      %p119 = scmp.ne.s32.totalorder %s114, %s116
      %p120 = scmp.eq.s32.totalorder %s28, 0
      %p121 = por %p119, %p120
      %p122 = scmp.ne.s32.totalorder %s114, %s116
      %p123 = scmp.eq.s32.totalorder %s33, 1
      %p124 = por %p122, %p123
      %p125 = scmp.ne.s32.totalorder %s116, %s117
      %p126 = scmp.eq.s32.totalorder %s33, 0
      %p127 = por %p125, %p126
      %p128 = scmp.ne.s32.totalorder %s116, %s117
      %p129 = scmp.eq.s32.totalorder %s34, 1
      %p130 = por %p128, %p129
      %p132 = scmp.ne.s32.totalorder %s117, %s131
      %p133 = scmp.eq.s32.totalorder %s34, 0
      %p134 = por %p132, %p133
      %s136 = sadd.s32 %s135, 1
      %p139 = scmp.eq.s32.totalorder %s28, 1
      %p140 = scmp.ne.s32.totalorder %s135, %s137
      %p141 = scmp.eq.s32.totalorder %s28, 0
      %p142 = por %p140, %p141
      %p143 = scmp.ne.s32.totalorder %s135, %s137
      %p144 = scmp.eq.s32.totalorder %s33, 1
      %p145 = por %p143, %p144
      %p146 = scmp.ne.s32.totalorder %s137, %s138
      %p147 = scmp.eq.s32.totalorder %s33, 0
      %p148 = por %p146, %p147
      %p149 = scmp.ne.s32.totalorder %s137, %s138
      %p150 = scmp.eq.s32.totalorder %s34, 1
      %p151 = por %p149, %p150
      %p153 = scmp.ne.s32.totalorder %s138, %s152
      %p154 = scmp.eq.s32.totalorder %s34, 0
      %p155 = por %p153, %p154
      %s157 = sadd.s32 %s156, 1
      %p160 = scmp.eq.s32.totalorder %s28, 1
      %p161 = scmp.ne.s32.totalorder %s156, %s158
      %p162 = scmp.eq.s32.totalorder %s28, 0
      %p163 = por %p161, %p162
      %p164 = scmp.ne.s32.totalorder %s156, %s158
      %p165 = scmp.eq.s32.totalorder %s33, 1
      %p166 = por %p164, %p165
      %p167 = scmp.ne.s32.totalorder %s158, %s159
      %p168 = scmp.eq.s32.totalorder %s33, 0
      %p169 = por %p167, %p168
      %p170 = scmp.ne.s32.totalorder %s158, %s159
      %p171 = scmp.eq.s32.totalorder %s34, 1
      %p172 = por %p170, %p171
      %p174 = scmp.ne.s32.totalorder %s159, %s173
      %p175 = scmp.eq.s32.totalorder %s34, 0
      %p176 = por %p174, %p175
      %s178 = sadd.s32 %s177, 1
      %p181 = scmp.eq.s32.totalorder %s28, 1
      %p182 = scmp.ne.s32.totalorder %s177, %s179
      %p183 = scmp.eq.s32.totalorder %s28, 0
      %p184 = por %p182, %p183
      %p185 = scmp.ne.s32.totalorder %s177, %s179
      %p186 = scmp.eq.s32.totalorder %s33, 1
      %p187 = por %p185, %p186
      %p188 = scmp.ne.s32.totalorder %s179, %s180
      %p189 = scmp.eq.s32.totalorder %s33, 0
      %p190 = por %p188, %p189
      %p191 = scmp.ne.s32.totalorder %s179, %s180
      %p192 = scmp.eq.s32.totalorder %s34, 1
      %p193 = por %p191, %p192
      %p195 = scmp.ne.s32.totalorder %s180, %s194
      %p196 = scmp.eq.s32.totalorder %s34, 0
      %p197 = por %p195, %p196
      %s199 = sadd.s32 %s198, 1
      %p202 = scmp.eq.s32.totalorder %s28, 1
      %p203 = scmp.ne.s32.totalorder %s198, %s200
      %p204 = scmp.eq.s32.totalorder %s28, 0
      %p205 = por %p203, %p204
      %p206 = scmp.ne.s32.totalorder %s198, %s200
      %p207 = scmp.eq.s32.totalorder %s33, 1
      %p208 = por %p206, %p207
      %p209 = scmp.ne.s32.totalorder %s200, %s201
      %p210 = scmp.eq.s32.totalorder %s33, 0
      %p211 = por %p209, %p210
      %p212 = scmp.ne.s32.totalorder %s200, %s201
      %p213 = scmp.eq.s32.totalorder %s34, 1
      %p214 = por %p212, %p213
      %p216 = scmp.ne.s32.totalorder %s201, %s215
      %p217 = scmp.eq.s32.totalorder %s34, 0
      %p218 = por %p216, %p217
      %s220 = sadd.s32 %s219, 1
      %p223 = scmp.eq.s32.totalorder %s28, 1
      %p224 = scmp.ne.s32.totalorder %s219, %s221
      %p225 = scmp.eq.s32.totalorder %s28, 0
      %p226 = por %p224, %p225
      %p227 = scmp.ne.s32.totalorder %s219, %s221
      %p228 = scmp.eq.s32.totalorder %s33, 1
      %p229 = por %p227, %p228
      %p230 = scmp.ne.s32.totalorder %s221, %s222
      %p231 = scmp.eq.s32.totalorder %s33, 0
      %p232 = por %p230, %p231
      %p233 = scmp.ne.s32.totalorder %s221, %s222
      %p234 = scmp.eq.s32.totalorder %s34, 1
      %p235 = por %p233, %p234
      %p237 = scmp.ne.s32.totalorder %s222, %s236
      %p238 = scmp.eq.s32.totalorder %s34, 0
      %p239 = por %p237, %p238
      %s241 = sadd.s32 %s240, 1
      %p244 = scmp.eq.s32.totalorder %s28, 1
      %p245 = scmp.ne.s32.totalorder %s240, %s242
      %p246 = scmp.eq.s32.totalorder %s28, 0
      %p247 = por %p245, %p246
      %p248 = scmp.ne.s32.totalorder %s240, %s242
      %p249 = scmp.eq.s32.totalorder %s33, 1
      %p250 = por %p248, %p249
      %p251 = scmp.ne.s32.totalorder %s242, %s243
      %p252 = scmp.eq.s32.totalorder %s33, 0
      %p253 = por %p251, %p252
      %p254 = scmp.ne.s32.totalorder %s242, %s243
      %p255 = scmp.eq.s32.totalorder %s34, 1
      %p256 = por %p254, %p255
      %p258 = scmp.ne.s32.totalorder %s243, %s257
      %p259 = scmp.eq.s32.totalorder %s34, 0
      %p260 = por %p258, %p259
      %s262 = sadd.s32 %s261, 1
      %p265 = scmp.eq.s32.totalorder %s28, 1
      %p266 = scmp.ne.s32.totalorder %s261, %s263
      %p267 = scmp.eq.s32.totalorder %s28, 0
      %p268 = por %p266, %p267
      %p269 = scmp.ne.s32.totalorder %s261, %s263
      %p270 = scmp.eq.s32.totalorder %s33, 1
      %p271 = por %p269, %p270
      %p272 = scmp.ne.s32.totalorder %s263, %s264
      %p273 = scmp.eq.s32.totalorder %s33, 0
      %p274 = por %p272, %p273
      %p275 = scmp.ne.s32.totalorder %s263, %s264
      %p276 = scmp.eq.s32.totalorder %s34, 1
      %p277 = por %p275, %p276
      %p279 = scmp.ne.s32.totalorder %s264, %s278
      %p280 = scmp.eq.s32.totalorder %s34, 0
      %p281 = por %p279, %p280
      %s283 = sadd.s32 %s282, 1
      %p286 = scmp.eq.s32.totalorder %s28, 1
      %p287 = scmp.ne.s32.totalorder %s282, %s284
      %p288 = scmp.eq.s32.totalorder %s28, 0
      %p289 = por %p287, %p288
      %p290 = scmp.ne.s32.totalorder %s282, %s284
      %p291 = scmp.eq.s32.totalorder %s33, 1
      %p292 = por %p290, %p291
      %p293 = scmp.ne.s32.totalorder %s284, %s285
      %p294 = scmp.eq.s32.totalorder %s33, 0
      %p295 = por %p293, %p294
      %p296 = scmp.ne.s32.totalorder %s284, %s285
      %p297 = scmp.eq.s32.totalorder %s34, 1
      %p298 = por %p296, %p297
      %p300 = scmp.ne.s32.totalorder %s285, %s299
      %p301 = scmp.eq.s32.totalorder %s34, 0
      %p302 = por %p300, %p301
      %s304 = sadd.s32 %s303, 1
      %p307 = scmp.eq.s32.totalorder %s28, 1
      %p308 = scmp.ne.s32.totalorder %s303, %s305
      %p309 = scmp.eq.s32.totalorder %s28, 0
      %p310 = por %p308, %p309
      %p311 = scmp.ne.s32.totalorder %s303, %s305
      %p312 = scmp.eq.s32.totalorder %s33, 1
      %p313 = por %p311, %p312
      %p314 = scmp.ne.s32.totalorder %s305, %s306
      %p315 = scmp.eq.s32.totalorder %s33, 0
      %p316 = por %p314, %p315
      %p317 = scmp.ne.s32.totalorder %s305, %s306
      %p318 = scmp.eq.s32.totalorder %s34, 1
      %p319 = por %p317, %p318
      %p321 = scmp.ne.s32.totalorder %s306, %s320
      %p322 = scmp.eq.s32.totalorder %s34, 0
      %p323 = por %p321, %p322
      %s325 = sadd.s32 %s324, 1
      %p328 = scmp.eq.s32.totalorder %s28, 1
      %p329 = scmp.ne.s32.totalorder %s324, %s326
      %p330 = scmp.eq.s32.totalorder %s28, 0
      %p331 = por %p329, %p330
      %p332 = scmp.ne.s32.totalorder %s324, %s326
      %p333 = scmp.eq.s32.totalorder %s33, 1
      %p334 = por %p332, %p333
      %p335 = scmp.ne.s32.totalorder %s326, %s327
      %p336 = scmp.eq.s32.totalorder %s33, 0
      %p337 = por %p335, %p336
      %p338 = scmp.ne.s32.totalorder %s326, %s327
      %p339 = scmp.eq.s32.totalorder %s34, 1
      %p340 = por %p338, %p339
      %p342 = scmp.ne.s32.totalorder %s327, %s341
      %p343 = scmp.eq.s32.totalorder %s34, 0
      %p344 = por %p342, %p343
      %s346 = sadd.s32 %s345, 1
      %p349 = scmp.eq.s32.totalorder %s28, 1
      %p350 = scmp.ne.s32.totalorder %s345, %s347
      %p351 = scmp.eq.s32.totalorder %s28, 0
      %p352 = por %p350, %p351
      %p353 = scmp.ne.s32.totalorder %s345, %s347
      %p354 = scmp.eq.s32.totalorder %s33, 1
      %p355 = por %p353, %p354
      %p356 = scmp.ne.s32.totalorder %s347, %s348
      %p357 = scmp.eq.s32.totalorder %s33, 0
      %p358 = por %p356, %p357
      %p359 = scmp.ne.s32.totalorder %s347, %s348
      %p360 = scmp.eq.s32.totalorder %s34, 1
      %p361 = por %p359, %p360
      %p363 = scmp.ne.s32.totalorder %s348, %s362
      %p364 = scmp.eq.s32.totalorder %s34, 0
      %p365 = por %p363, %p364
      %s367 = sadd.s32 %s366, 1
      %p370 = scmp.eq.s32.totalorder %s28, 1
      %p371 = scmp.ne.s32.totalorder %s366, %s368
      %p372 = scmp.eq.s32.totalorder %s28, 0
      %p373 = por %p371, %p372
      %p374 = scmp.ne.s32.totalorder %s366, %s368
      %p375 = scmp.eq.s32.totalorder %s33, 1
      %p376 = por %p374, %p375
      %p377 = scmp.ne.s32.totalorder %s368, %s369
      %p378 = scmp.eq.s32.totalorder %s33, 0
      %p379 = por %p377, %p378
      %p380 = scmp.ne.s32.totalorder %s368, %s369
      %p381 = scmp.eq.s32.totalorder %s34, 1
      %p382 = por %p380, %p381
      %p384 = scmp.ne.s32.totalorder %s369, %s383
      %p385 = scmp.eq.s32.totalorder %s34, 0
      %p386 = por %p384, %p385
      %s388 = sadd.s32 %s387, 1
      %p391 = scmp.eq.s32.totalorder %s28, 1
      %p392 = scmp.ne.s32.totalorder %s387, %s389
      %p393 = scmp.eq.s32.totalorder %s28, 0
      %p394 = por %p392, %p393
      %p395 = scmp.ne.s32.totalorder %s387, %s389
      %p396 = scmp.eq.s32.totalorder %s33, 1
      %p397 = por %p395, %p396
      %p398 = scmp.ne.s32.totalorder %s389, %s390
      %p399 = scmp.eq.s32.totalorder %s33, 0
      %p400 = por %p398, %p399
      %p401 = scmp.ne.s32.totalorder %s389, %s390
      %p402 = scmp.eq.s32.totalorder %s34, 1
      %p403 = por %p401, %p402
      %p405 = scmp.ne.s32.totalorder %s390, %s404
      %p406 = scmp.eq.s32.totalorder %s34, 0
      %p407 = por %p405, %p406
      %s409 = sadd.s32 %s408, 1
      %p412 = scmp.eq.s32.totalorder %s28, 1
      %p413 = scmp.ne.s32.totalorder %s408, %s410
      %p414 = scmp.eq.s32.totalorder %s28, 0
      %p415 = por %p413, %p414
      %p416 = scmp.ne.s32.totalorder %s408, %s410
      %p417 = scmp.eq.s32.totalorder %s33, 1
      %p418 = por %p416, %p417
      %p419 = scmp.ne.s32.totalorder %s410, %s411
      %p420 = scmp.eq.s32.totalorder %s33, 0
      %p421 = por %p419, %p420
      %p422 = scmp.ne.s32.totalorder %s410, %s411
      %p423 = scmp.eq.s32.totalorder %s34, 1
      %p424 = por %p422, %p423
      %p426 = scmp.ne.s32.totalorder %s411, %s425
      %p427 = scmp.eq.s32.totalorder %s34, 0
      %p428 = por %p426, %p427
      %s430 = sadd.s32 %s429, 1
      %p433 = scmp.eq.s32.totalorder %s28, 1
      %p434 = scmp.ne.s32.totalorder %s429, %s431
      %p435 = scmp.eq.s32.totalorder %s28, 0
      %p436 = por %p434, %p435
      %p437 = scmp.ne.s32.totalorder %s429, %s431
      %p438 = scmp.eq.s32.totalorder %s33, 1
      %p439 = por %p437, %p438
      %p440 = scmp.ne.s32.totalorder %s431, %s432
      %p441 = scmp.eq.s32.totalorder %s33, 0
      %p442 = por %p440, %p441
      %p443 = scmp.ne.s32.totalorder %s431, %s432
      %p444 = scmp.eq.s32.totalorder %s34, 1
      %p445 = por %p443, %p444
      %p447 = scmp.ne.s32.totalorder %s432, %s446
      %p448 = scmp.eq.s32.totalorder %s34, 0
      %p449 = por %p447, %p448
      %s450 = ssub.s32 %s28, %s35
      %p451 = scmp.eq.s32.totalorder %s450, 0
      %s453 = sadd.s32 %s452, 1
      %s454 = scalar_select %p451, %s452, %s453
      %p457 = pneg %p451
      %p458 = scmp.eq.s32.totalorder %s28, 1
      %p459 = por %p457, %p458
      %p460 = scmp.ne.s32.totalorder %s452, %s455
      %p461 = scmp.eq.s32.totalorder %s28, 0
      %p462 = por %p460, %p461
      %p463 = scmp.ne.s32.totalorder %s452, %s455
      %p464 = scmp.eq.s32.totalorder %s33, 1
      %p465 = por %p463, %p464
      %p466 = scmp.ne.s32.totalorder %s455, %s456
      %p467 = scmp.eq.s32.totalorder %s33, 0
      %p468 = por %p466, %p467
      %p469 = scmp.ne.s32.totalorder %s455, %s456
      %p470 = scmp.eq.s32.totalorder %s34, 1
      %p471 = por %p469, %p470
      %p473 = scmp.ne.s32.totalorder %s456, %s472
      %p474 = scmp.eq.s32.totalorder %s34, 0
      %p475 = por %p473, %p474
      %p476 = scmp.le.s32.totalorder 1, %s28
      %p477 = scmp.lt.s32.totalorder %s28, 3
      %p478 = pnand %p476, %p477
      %p479 = pneg %p478
      // Predicated region
      $region9: #{mpnn_linear_forward.7} parent=5 // pred_check
        _
      $region10: #{mpnn_linear_forward.7} parent=5 // pred_check_branch
        %481 = sbr.rel (%p478) target = $region12
      $region11: #{mpnn_linear_forward.7} parent=5 // pred_region
        %s482 = ssub.s32 %s28, 1
        // Predicated region
        $region13: #{mpnn_linear_forward.7} parent=11 // pred_check
          %p483 = pneg %p127
        $region14: #{mpnn_linear_forward.7} parent=11 // pred_check_branch
          %485 = sbr.rel (%p483) target = $region16
        $region15: #{mpnn_linear_forward.7} parent=11 // pred_region
          _
        $region16: #{mpnn_linear_forward.7} parent=11 // pred_fallthru
          _
        // Predicated region
        $region17: #{mpnn_linear_forward.7} parent=11 // pred_check
          %p486 = pneg %p148
        $region18: #{mpnn_linear_forward.7} parent=11 // pred_check_branch
          %488 = sbr.rel (%p486) target = $region20
        $region19: #{mpnn_linear_forward.7} parent=11 // pred_region
          _
        $region20: #{mpnn_linear_forward.7} parent=11 // pred_fallthru
          _
        // Predicated region
        $region21: #{mpnn_linear_forward.7} parent=11 // pred_check
          %p489 = pneg %p169
        $region22: #{mpnn_linear_forward.7} parent=11 // pred_check_branch
          %491 = sbr.rel (%p489) target = $region24
        $region23: #{mpnn_linear_forward.7} parent=11 // pred_region
          _
        $region24: #{mpnn_linear_forward.7} parent=11 // pred_fallthru
          _
        // Predicated region
        $region25: #{mpnn_linear_forward.7} parent=11 // pred_check
          %p492 = pneg %p190
        $region26: #{mpnn_linear_forward.7} parent=11 // pred_check_branch
          %494 = sbr.rel (%p492) target = $region28
        $region27: #{mpnn_linear_forward.7} parent=11 // pred_region
          _
        $region28: #{mpnn_linear_forward.7} parent=11 // pred_fallthru
          _
        // Predicated region
        $region29: #{mpnn_linear_forward.7} parent=11 // pred_check
          %p495 = pneg %p211
        $region30: #{mpnn_linear_forward.7} parent=11 // pred_check_branch
          %497 = sbr.rel (%p495) target = $region32
        $region31: #{mpnn_linear_forward.7} parent=11 // pred_region
          _
        $region32: #{mpnn_linear_forward.7} parent=11 // pred_fallthru
          _
        // Predicated region
        $region33: #{mpnn_linear_forward.7} parent=11 // pred_check
          %p498 = pneg %p232
        $region34: #{mpnn_linear_forward.7} parent=11 // pred_check_branch
          %500 = sbr.rel (%p498) target = $region36
        $region35: #{mpnn_linear_forward.7} parent=11 // pred_region
          _
        $region36: #{mpnn_linear_forward.7} parent=11 // pred_fallthru
          _
        // Predicated region
        $region37: #{mpnn_linear_forward.7} parent=11 // pred_check
          %p501 = pneg %p253
        $region38: #{mpnn_linear_forward.7} parent=11 // pred_check_branch
          %503 = sbr.rel (%p501) target = $region40
        $region39: #{mpnn_linear_forward.7} parent=11 // pred_region
          _
        $region40: #{mpnn_linear_forward.7} parent=11 // pred_fallthru
          _
        // Predicated region
        $region41: #{mpnn_linear_forward.7} parent=11 // pred_check
          %p504 = pneg %p274
        $region42: #{mpnn_linear_forward.7} parent=11 // pred_check_branch
          %506 = sbr.rel (%p504) target = $region44
        $region43: #{mpnn_linear_forward.7} parent=11 // pred_region
          _
        $region44: #{mpnn_linear_forward.7} parent=11 // pred_fallthru
          _
        // Predicated region
        $region45: #{mpnn_linear_forward.7} parent=11 // pred_check
          %p507 = pneg %p295
        $region46: #{mpnn_linear_forward.7} parent=11 // pred_check_branch
          %509 = sbr.rel (%p507) target = $region48
        $region47: #{mpnn_linear_forward.7} parent=11 // pred_region
          _
        $region48: #{mpnn_linear_forward.7} parent=11 // pred_fallthru
          _
        // Predicated region
        $region49: #{mpnn_linear_forward.7} parent=11 // pred_check
          %p510 = pneg %p316
        $region50: #{mpnn_linear_forward.7} parent=11 // pred_check_branch
          %512 = sbr.rel (%p510) target = $region52
        $region51: #{mpnn_linear_forward.7} parent=11 // pred_region
          _
        $region52: #{mpnn_linear_forward.7} parent=11 // pred_fallthru
          _
        // Predicated region
        $region53: #{mpnn_linear_forward.7} parent=11 // pred_check
          %p513 = pneg %p337
        $region54: #{mpnn_linear_forward.7} parent=11 // pred_check_branch
          %515 = sbr.rel (%p513) target = $region56
        $region55: #{mpnn_linear_forward.7} parent=11 // pred_region
          _
        $region56: #{mpnn_linear_forward.7} parent=11 // pred_fallthru
          _
        // Predicated region
        $region57: #{mpnn_linear_forward.7} parent=11 // pred_check
          %p516 = pneg %p358
        $region58: #{mpnn_linear_forward.7} parent=11 // pred_check_branch
          %518 = sbr.rel (%p516) target = $region60
        $region59: #{mpnn_linear_forward.7} parent=11 // pred_region
          _
        $region60: #{mpnn_linear_forward.7} parent=11 // pred_fallthru
          _
        // Predicated region
        $region61: #{mpnn_linear_forward.7} parent=11 // pred_check
          %p519 = pneg %p379
        $region62: #{mpnn_linear_forward.7} parent=11 // pred_check_branch
          %521 = sbr.rel (%p519) target = $region64
        $region63: #{mpnn_linear_forward.7} parent=11 // pred_region
          _
        $region64: #{mpnn_linear_forward.7} parent=11 // pred_fallthru
          _
        // Predicated region
        $region65: #{mpnn_linear_forward.7} parent=11 // pred_check
          %p522 = pneg %p400
        $region66: #{mpnn_linear_forward.7} parent=11 // pred_check_branch
          %524 = sbr.rel (%p522) target = $region68
        $region67: #{mpnn_linear_forward.7} parent=11 // pred_region
          _
        $region68: #{mpnn_linear_forward.7} parent=11 // pred_fallthru
          _
        // Predicated region
        $region69: #{mpnn_linear_forward.7} parent=11 // pred_check
          %p525 = pneg %p421
        $region70: #{mpnn_linear_forward.7} parent=11 // pred_check_branch
          %527 = sbr.rel (%p525) target = $region72
        $region71: #{mpnn_linear_forward.7} parent=11 // pred_region
          _
        $region72: #{mpnn_linear_forward.7} parent=11 // pred_fallthru
          _
        // Predicated region
        $region73: #{mpnn_linear_forward.7} parent=11 // pred_check
          %p528 = pneg %p442
        $region74: #{mpnn_linear_forward.7} parent=11 // pred_check_branch
          %530 = sbr.rel (%p528) target = $region76
        $region75: #{mpnn_linear_forward.7} parent=11 // pred_region
          _
        $region76: #{mpnn_linear_forward.7} parent=11 // pred_fallthru
          _
      $region12: #{mpnn_linear_forward.7} parent=5 // pred_fallthru
        _
      %p531 = scmp.lt.s32.totalorder %s28, 2
      // Predicated region
      $region77: #{mpnn_linear_forward.7} parent=5 // pred_check
        %p532 = pneg %p531
      $region78: #{mpnn_linear_forward.7} parent=5 // pred_check_branch
        %534 = sbr.rel (%p532) target = $region80
      $region79: #{mpnn_linear_forward.7} parent=5 // pred_region
        // Predicated region
        $region81: #{mpnn_linear_forward.7} parent=79 // pred_check
          %p535 = pneg %p48
        $region82: #{mpnn_linear_forward.7} parent=79 // pred_check_branch
          %537 = sbr.rel (%p535) target = $region84
        $region83: #{mpnn_linear_forward.7} parent=79 // pred_region
          %p538 = scmp.lt.s32.totalorder %s28, 1
          %s539 = scalar_select %p538, %s28, 1
          %s540 = smul.addr %s539, 8
          %s541 = scalar_lea.vmem %s0, %s540
        $region84: #{mpnn_linear_forward.7} parent=79 // pred_fallthru
          _
        // Predicated region
        $region85: #{mpnn_linear_forward.7} parent=79 // pred_check
          %p542 = pneg %p74
        $region86: #{mpnn_linear_forward.7} parent=79 // pred_check_branch
          %544 = sbr.rel (%p542) target = $region88
        $region87: #{mpnn_linear_forward.7} parent=79 // pred_region
          %p545 = scmp.lt.s32.totalorder %s28, 1
          %s546 = scalar_select %p545, %s28, 1
          %s547 = smul.addr %s546, 8
          %s548 = scalar_lea.vmem %s1, %s547
        $region88: #{mpnn_linear_forward.7} parent=79 // pred_fallthru
          _
        // Predicated region
        $region89: #{mpnn_linear_forward.7} parent=79 // pred_check
          %p549 = pneg %p100
        $region90: #{mpnn_linear_forward.7} parent=79 // pred_check_branch
          %551 = sbr.rel (%p549) target = $region92
        $region91: #{mpnn_linear_forward.7} parent=79 // pred_region
          %p552 = scmp.lt.s32.totalorder %s28, 1
          %s553 = scalar_select %p552, %s28, 1
          %s554 = smul.addr %s553, 8
          %s555 = scalar_lea.vmem %s2, %s554
        $region92: #{mpnn_linear_forward.7} parent=79 // pred_fallthru
          _
      $region80: #{mpnn_linear_forward.7} parent=5 // pred_fallthru
        _
      %p556 = scmp.le.s32.totalorder 1, %s28
      %p557 = scmp.lt.s32.totalorder %s28, 3
      %p558 = pnand %p556, %p557
      %p559 = pneg %p558
      // Predicated region
      $region93: #{mpnn_linear_forward.7} parent=5 // pred_check
        _
      $region94: #{mpnn_linear_forward.7} parent=5 // pred_check_branch
        %561 = sbr.rel (%p558) target = $region96
      $region95: #{mpnn_linear_forward.7} parent=5 // pred_region
        %s562 = ssub.s32 %s28, 1
        %p563 = scmp.lt.s32.totalorder %s33, 1
        %s564 = scalar_select %p563, %s33, 1
        %s565 = smul.addr %s564, 8
        %s566 = scalar_lea.vmem %s0, %s565
        %p567 = pneg %p54
        %p568 = pneg %p51
        %p569 = scmp.lt.s32.totalorder %s33, 1
        %s570 = scalar_select %p569, %s33, 1
        %s571 = smul.addr %s570, 8
        %s572 = scalar_lea.vmem %s1, %s571
        %p573 = pneg %p80
        %p574 = pneg %p77
        %p575 = scmp.lt.s32.totalorder %s33, 1
        %s576 = scalar_select %p575, %s33, 1
        %s577 = smul.addr %s576, 8
        %s578 = scalar_lea.vmem %s2, %s577
        %p579 = pneg %p106
        %p580 = pneg %p103
        %p581 = pneg %p127
        %p582 = pneg %p124
        %p583 = pneg %p148
        %p584 = pneg %p145
        %p585 = pneg %p169
        %p586 = pneg %p166
        %p587 = pneg %p190
        %p588 = pneg %p187
        %p589 = pneg %p211
        %p590 = pneg %p208
        %p591 = pneg %p232
        %p592 = pneg %p229
        %p593 = pneg %p253
        %p594 = pneg %p250
        %p595 = pneg %p274
        %p596 = pneg %p271
        %p597 = pneg %p295
        %p598 = pneg %p292
        %p599 = pneg %p316
        %p600 = pneg %p313
        %p601 = pneg %p337
        %p602 = pneg %p334
        %p603 = pneg %p358
        %p604 = pneg %p355
        %p605 = pneg %p379
        %p606 = pneg %p376
        %p607 = pneg %p400
        %p608 = pneg %p397
        %p609 = pneg %p421
        %p610 = pneg %p418
        %p611 = pneg %p442
        %p612 = pneg %p439
        %p613 = pneg %p468
        %p614 = pneg %p465
        %s615 = sand.u32 %s455, 1
        %s616 = scalar_lea.sflag [#allocation3], %s615
        %s617 = sand.u32 %s455, 1
        %s618 = scalar_lea.vmem [#allocation2], %s617
        %p619 = scmp.lt.s32.totalorder %s33, 1
        %s620 = scalar_select %p619, %s33, 1
        %s621 = smul.addr %s620, 8
        %s622 = scalar_lea.vmem %s0, %s621
        %p623 = scmp.lt.s32.totalorder %s33, 1
        %s624 = scalar_select %p623, %s33, 1
        %s625 = smul.addr %s624, 8
        %s626 = scalar_lea.vmem %s1, %s625
        %p627 = scmp.lt.s32.totalorder %s33, 1
        %s628 = scalar_select %p627, %s33, 1
        %s629 = smul.addr %s628, 8
        %s630 = scalar_lea.vmem %s2, %s629
        %v632 = vld [vmem:[%s622] sm:$0xff]
        %v633 = vld [vmem:[%s626] sm:$0xff]
        %v634 = vld [vmem:[%s630] sm:$0xff]
        %v635 = vld [vmem:[%s3] sm:$0xff]
        %v636 = vld [vmem:[%s3 + $0x8] sm:$0xff]
        %v637 = vld [vmem:[%s3 + $0x10] sm:$0xff]
        %v638 = vld [vmem:[%s3 + $0x18] sm:$0xff]
        %v639 = vld [vmem:[%s4] sm:$0x1]
        %v640 = vpack.c.bf16 %v632, %v632
        %v641 = vpack.c.bf16 %v636, %v635
        %v642 = vpack.c.bf16 %v633, %v633
        %v643 = vpack.c.bf16 %v638, %v637
        %vm644 = vcmask 130048
        %v646 = vsel %vm644, %v642, 0
        %648 = vmatprep.subr.bf16.mxu0 0
        %649 = vmatpush1.bf16.msra.mxu0 %v643
        %650 = vmatprep.subr.bf16.mxu0 0
        %651 = vmatpush1.bf16.msra.mxu0 0
        %652 = vmatprep.subr.bf16.mxu0 0
        %653 = vmatpush1.bf16.msra.mxu0 0
        %654 = vmatprep.subr.bf16.mxu0 0
        %655 = vmatpush1.bf16.msra.mxu0 0
        %656 = vmatprep.subr.bf16.mxu0 0
        %657 = vmatpush1.bf16.msra.mxu0 0
        %658 = vmatprep.subr.bf16.mxu0 0
        %659 = vmatpush1.bf16.msra.mxu0 0
        %660 = vmatprep.subr.bf16.mxu0 0
        %661 = vmatpush1.bf16.msra.mxu0 0
        %662 = vmatprep.subr.bf16.mxu0 0
        %663 = vmatpush1.bf16.msra.mxu0 0
        %664 = vmatprep.subr.bf16.mxu0 0
        %665 = vmatpush1.bf16.msra.mxu0 0
        %666 = vmatprep.subr.bf16.mxu0 0
        %667 = vmatpush1.bf16.msra.mxu0 0
        %668 = vmatprep.subr.bf16.mxu0 0
        %669 = vmatpush1.bf16.msra.mxu0 0
        %670 = vmatprep.subr.bf16.mxu0 0
        %671 = vmatpush1.bf16.msra.mxu0 0
        %672 = vmatprep.subr.bf16.mxu0 0
        %673 = vmatpush1.bf16.msra.mxu0 0
        %674 = vmatprep.subr.bf16.mxu0 0
        %675 = vmatpush1.bf16.msra.mxu0 0
        %676 = vmatprep.subr.bf16.mxu0 0
        %677 = vmatpush1.bf16.msra.mxu0 0
        %678 = vmatprep.subr.bf16.mxu0 0
        %679 = vmatpush1.bf16.msra.mxu0 0
        %680 = vmatprep.mubr.bf16.mxu0 0
        %681 = vmatmul.mubr.bf16.gmra.mrb[0].mxu0 %v646
        %v682 = vpop.f32.mrb[0].mxu0
        %v683 = vadd.f32 0.0, %v682
        %v684 = vpop.f32.mrb[0].mxu0
        %v685 = vpop.f32.mrb[0].mxu0
        %v686 = vpop.f32.mrb[0].mxu0
        %687 = vdwg.mxu0
        %v689 = vsel %vm644, %v640, 0
        %691 = vmatprep.subr.bf16.mxu0 0
        %692 = vmatpush1.bf16.msra.mxu0 %v641
        %693 = vmatprep.subr.bf16.mxu0 0
        %694 = vmatpush1.bf16.msra.mxu0 0
        %695 = vmatprep.subr.bf16.mxu0 0
        %696 = vmatpush1.bf16.msra.mxu0 0
        %697 = vmatprep.subr.bf16.mxu0 0
        %698 = vmatpush1.bf16.msra.mxu0 0
        %699 = vmatprep.subr.bf16.mxu0 0
        %700 = vmatpush1.bf16.msra.mxu0 0
        %701 = vmatprep.subr.bf16.mxu0 0
        %702 = vmatpush1.bf16.msra.mxu0 0
        %703 = vmatprep.subr.bf16.mxu0 0
        %704 = vmatpush1.bf16.msra.mxu0 0
        %705 = vmatprep.subr.bf16.mxu0 0
        %706 = vmatpush1.bf16.msra.mxu0 0
        %707 = vmatprep.subr.bf16.mxu0 0
        %708 = vmatpush1.bf16.msra.mxu0 0
        %709 = vmatprep.subr.bf16.mxu0 0
        %710 = vmatpush1.bf16.msra.mxu0 0
        %711 = vmatprep.subr.bf16.mxu0 0
        %712 = vmatpush1.bf16.msra.mxu0 0
        %713 = vmatprep.subr.bf16.mxu0 0
        %714 = vmatpush1.bf16.msra.mxu0 0
        %715 = vmatprep.subr.bf16.mxu0 0
        %716 = vmatpush1.bf16.msra.mxu0 0
        %717 = vmatprep.subr.bf16.mxu0 0
        %718 = vmatpush1.bf16.msra.mxu0 0
        %719 = vmatprep.subr.bf16.mxu0 0
        %720 = vmatpush1.bf16.msra.mxu0 0
        %721 = vmatprep.subr.bf16.mxu0 0
        %722 = vmatpush1.bf16.msra.mxu0 0
        %723 = vmatprep.mubr.bf16.mxu0 0
        %724 = vmatmul.mubr.bf16.gmra.mrb[0].mxu0 %v689
        %v725 = vpop.f32.mrb[0].mxu0
        %v726 = vadd.f32 %v683, %v725
        %v727 = vpop.f32.mrb[0].mxu0
        %v728 = vpop.f32.mrb[0].mxu0
        %v729 = vpop.f32.mrb[0].mxu0
        %730 = vdwg.mxu0
        %v732 = vlaneseq
        %v733 = vshrl.u32 %v732, 7
        %v734 = vsub.s32 0, %v733
        %v735 = vrot.slane %v639, %v734
        %v737 = vadd.f32 %v726, %v735
        %v738 = vmax.f32 %v737, 0.0
        %v739 = vld [vmem:[%s5] sm:$0xff]
        %v740 = vld [vmem:[%s5 + $0x8] sm:$0xff]
        %v741 = vld [vmem:[%s5 + $0x10] sm:$0xff]
        %v742 = vld [vmem:[%s5 + $0x18] sm:$0xff]
        %v743 = vld [vmem:[%s5 + $0x20] sm:$0xff]
        %v744 = vld [vmem:[%s5 + $0x28] sm:$0xff]
        %v745 = vld [vmem:[%s5 + $0x30] sm:$0xff]
        %v746 = vld [vmem:[%s5 + $0x38] sm:$0xff]
        %v747 = vld [vmem:[%s5 + $0x40] sm:$0xff]
        %v748 = vld [vmem:[%s5 + $0x48] sm:$0xff]
        %v749 = vld [vmem:[%s5 + $0x50] sm:$0xff]
        %v750 = vld [vmem:[%s5 + $0x58] sm:$0xff]
        %v751 = vld [vmem:[%s5 + $0x60] sm:$0xff]
        %v752 = vld [vmem:[%s5 + $0x68] sm:$0xff]
        %v753 = vld [vmem:[%s5 + $0x70] sm:$0xff]
        %v754 = vld [vmem:[%s5 + $0x78] sm:$0xff]
        %v755 = vld [vmem:[%s5 + $0x80] sm:$0xff]
        %v756 = vld [vmem:[%s5 + $0x88] sm:$0xff]
        %v757 = vld [vmem:[%s5 + $0x90] sm:$0xff]
        %v758 = vld [vmem:[%s5 + $0x98] sm:$0xff]
        %v759 = vld [vmem:[%s5 + $0xa0] sm:$0xff]
        %v760 = vld [vmem:[%s5 + $0xa8] sm:$0xff]
        %v761 = vld [vmem:[%s5 + $0xb0] sm:$0xff]
        %v762 = vld [vmem:[%s5 + $0xb8] sm:$0xff]
        %v763 = vld [vmem:[%s5 + $0xc0] sm:$0xff]
        %v764 = vld [vmem:[%s5 + $0xc8] sm:$0xff]
        %v765 = vld [vmem:[%s5 + $0xd0] sm:$0xff]
        %v766 = vld [vmem:[%s5 + $0xd8] sm:$0xff]
        %v767 = vld [vmem:[%s5 + $0xe0] sm:$0xff]
        %v768 = vld [vmem:[%s5 + $0xe8] sm:$0xff]
        %v769 = vld [vmem:[%s5 + $0xf0] sm:$0xff]
        %v770 = vld [vmem:[%s5 + $0xf8] sm:$0xff]
        %v771 = vld [vmem:[%s6] sm:$0x3]
        %v772 = vpack.c.bf16 %v738, %v738
        %v773 = vpack.c.bf16 %v741, %v739
        %v774 = vpack.c.bf16 %v742, %v740
        %v775 = vpack.c.bf16 %v745, %v743
        %v776 = vpack.c.bf16 %v746, %v744
        %v777 = vpack.c.bf16 %v749, %v747
        %v778 = vpack.c.bf16 %v750, %v748
        %v779 = vpack.c.bf16 %v753, %v751
        %v780 = vpack.c.bf16 %v754, %v752
        %v781 = vpack.c.bf16 %v757, %v755
        %v782 = vpack.c.bf16 %v758, %v756
        %v783 = vpack.c.bf16 %v761, %v759
        %v784 = vpack.c.bf16 %v762, %v760
        %v785 = vpack.c.bf16 %v765, %v763
        %v786 = vpack.c.bf16 %v766, %v764
        %v787 = vpack.c.bf16 %v769, %v767
        %v788 = vpack.c.bf16 %v770, %v768
        %v790 = vlaneseq
        %v791 = vshrl.u32 %v790, 7
        %v792 = vsub.s32 0, %v791
        %v793 = vrot.slane %v771, %v792
        %v794 = vlaneseq
        %v795 = vshrl.u32 %v794, 7
        %v796 = vsub.s32 1, %v795
        %v797 = vrot.slane %v771, %v796
        %800 = vmatprep.subr.bf16.mxu0 %v774
        %801 = vmatpush1.bf16.msra.mxu0 %v773
        %802 = vmatprep.subr.bf16.mxu0 %v776
        %803 = vmatpush1.bf16.msra.mxu0 %v775
        %804 = vmatprep.subr.bf16.mxu0 %v778
        %805 = vmatpush1.bf16.msra.mxu0 %v777
        %806 = vmatprep.subr.bf16.mxu0 %v780
        %807 = vmatpush1.bf16.msra.mxu0 %v779
        %808 = vmatprep.subr.bf16.mxu0 %v782
        %809 = vmatpush1.bf16.msra.mxu0 %v781
        %810 = vmatprep.subr.bf16.mxu0 %v784
        %811 = vmatpush1.bf16.msra.mxu0 %v783
        %812 = vmatprep.subr.bf16.mxu0 %v786
        %813 = vmatpush1.bf16.msra.mxu0 %v785
        %814 = vmatprep.subr.bf16.mxu0 %v788
        %815 = vmatpush1.bf16.msra.mxu0 %v787
        %816 = vmatprep.subr.bf16.mxu0 0
        %817 = vmatpush1.bf16.msra.mxu0 0
        %818 = vmatprep.subr.bf16.mxu0 0
        %819 = vmatpush1.bf16.msra.mxu0 0
        %820 = vmatprep.subr.bf16.mxu0 0
        %821 = vmatpush1.bf16.msra.mxu0 0
        %822 = vmatprep.subr.bf16.mxu0 0
        %823 = vmatpush1.bf16.msra.mxu0 0
        %824 = vmatprep.subr.bf16.mxu0 0
        %825 = vmatpush1.bf16.msra.mxu0 0
        %826 = vmatprep.subr.bf16.mxu0 0
        %827 = vmatpush1.bf16.msra.mxu0 0
        %828 = vmatprep.subr.bf16.mxu0 0
        %829 = vmatpush1.bf16.msra.mxu0 0
        %830 = vmatprep.subr.bf16.mxu0 0
        %831 = vmatpush1.bf16.msra.mxu0 0
        %832 = vmatprep.mubr.bf16.mxu0 0
        %833 = vmatmul.mubr.bf16.gmra.mrb[0].mxu0 %v772
        %v834 = vpop.f32.mrb[0].mxu0
        %v835 = vadd.f32 %v793, %v834
        %v836 = vpop.f32.mrb[0].mxu0
        %v837 = vadd.f32 %v797, %v836
        %v838 = vpop.f32.mrb[0].mxu0
        %v839 = vpop.f32.mrb[0].mxu0
        %840 = vdwg.mxu0
        %v841 = vmax.f32 %v835, 0.0
        %v842 = vmax.f32 %v837, 0.0
        %v843 = vld [vmem:[%s7] sm:$0xff]
        %v844 = vld [vmem:[%s7 + $0x8] sm:$0xff]
        %v845 = vld [vmem:[%s7 + $0x10] sm:$0xff]
        %v846 = vld [vmem:[%s7 + $0x18] sm:$0xff]
        %v847 = vld [vmem:[%s7 + $0x20] sm:$0xff]
        %v848 = vld [vmem:[%s7 + $0x28] sm:$0xff]
        %v849 = vld [vmem:[%s7 + $0x30] sm:$0xff]
        %v850 = vld [vmem:[%s7 + $0x38] sm:$0xff]
        %v851 = vld [vmem:[%s7 + $0x40] sm:$0xff]
        %v852 = vld [vmem:[%s7 + $0x48] sm:$0xff]
        %v853 = vld [vmem:[%s7 + $0x50] sm:$0xff]
        %v854 = vld [vmem:[%s7 + $0x58] sm:$0xff]
        %v855 = vld [vmem:[%s7 + $0x60] sm:$0xff]
        %v856 = vld [vmem:[%s7 + $0x68] sm:$0xff]
        %v857 = vld [vmem:[%s7 + $0x70] sm:$0xff]
        %v858 = vld [vmem:[%s7 + $0x78] sm:$0xff]
        %v859 = vld [vmem:[%s7 + $0x80] sm:$0xff]
        %v860 = vld [vmem:[%s7 + $0x88] sm:$0xff]
        %v861 = vld [vmem:[%s7 + $0x90] sm:$0xff]
        %v862 = vld [vmem:[%s7 + $0x98] sm:$0xff]
        %v863 = vld [vmem:[%s7 + $0xa0] sm:$0xff]
        %v864 = vld [vmem:[%s7 + $0xa8] sm:$0xff]
        %v865 = vld [vmem:[%s7 + $0xb0] sm:$0xff]
        %v866 = vld [vmem:[%s7 + $0xb8] sm:$0xff]
        %v867 = vld [vmem:[%s7 + $0xc0] sm:$0xff]
        %v868 = vld [vmem:[%s7 + $0xc8] sm:$0xff]
        %v869 = vld [vmem:[%s7 + $0xd0] sm:$0xff]
        %v870 = vld [vmem:[%s7 + $0xd8] sm:$0xff]
        %v871 = vld [vmem:[%s7 + $0xe0] sm:$0xff]
        %v872 = vld [vmem:[%s7 + $0xe8] sm:$0xff]
        %v873 = vld [vmem:[%s7 + $0xf0] sm:$0xff]
        %v874 = vld [vmem:[%s7 + $0xf8] sm:$0xff]
        %v875 = vld [vmem:[%s8] sm:$0x1]
        %v876 = vpack.c.bf16 %v841, %v841
        %v877 = vpack.c.bf16 %v842, %v842
        %v878 = vpack.c.bf16 %v844, %v843
        %v879 = vpack.c.bf16 %v846, %v845
        %v880 = vpack.c.bf16 %v848, %v847
        %v881 = vpack.c.bf16 %v850, %v849
        %v882 = vpack.c.bf16 %v852, %v851
        %v883 = vpack.c.bf16 %v854, %v853
        %v884 = vpack.c.bf16 %v856, %v855
        %v885 = vpack.c.bf16 %v858, %v857
        %v886 = vpack.c.bf16 %v860, %v859
        %v887 = vpack.c.bf16 %v862, %v861
        %v888 = vpack.c.bf16 %v864, %v863
        %v889 = vpack.c.bf16 %v866, %v865
        %v890 = vpack.c.bf16 %v868, %v867
        %v891 = vpack.c.bf16 %v870, %v869
        %v892 = vpack.c.bf16 %v872, %v871
        %v893 = vpack.c.bf16 %v874, %v873
        %v895 = vlaneseq
        %v896 = vshrl.u32 %v895, 7
        %v897 = vsub.s32 0, %v896
        %v898 = vrot.slane %v875, %v897
        %900 = vmatprep.subr.bf16.mxu0 0
        %901 = vmatpush1.bf16.msra.mxu0 %v878
        %902 = vmatprep.subr.bf16.mxu0 0
        %903 = vmatpush1.bf16.msra.mxu0 %v879
        %904 = vmatprep.subr.bf16.mxu0 0
        %905 = vmatpush1.bf16.msra.mxu0 %v880
        %906 = vmatprep.subr.bf16.mxu0 0
        %907 = vmatpush1.bf16.msra.mxu0 %v881
        %908 = vmatprep.subr.bf16.mxu0 0
        %909 = vmatpush1.bf16.msra.mxu0 %v882
        %910 = vmatprep.subr.bf16.mxu0 0
        %911 = vmatpush1.bf16.msra.mxu0 %v883
        %912 = vmatprep.subr.bf16.mxu0 0
        %913 = vmatpush1.bf16.msra.mxu0 %v884
        %914 = vmatprep.subr.bf16.mxu0 0
        %915 = vmatpush1.bf16.msra.mxu0 %v885
        %916 = vmatprep.subr.bf16.mxu0 0
        %917 = vmatpush1.bf16.msra.mxu0 %v886
        %918 = vmatprep.subr.bf16.mxu0 0
        %919 = vmatpush1.bf16.msra.mxu0 %v887
        %920 = vmatprep.subr.bf16.mxu0 0
        %921 = vmatpush1.bf16.msra.mxu0 %v888
        %922 = vmatprep.subr.bf16.mxu0 0
        %923 = vmatpush1.bf16.msra.mxu0 %v889
        %924 = vmatprep.subr.bf16.mxu0 0
        %925 = vmatpush1.bf16.msra.mxu0 %v890
        %926 = vmatprep.subr.bf16.mxu0 0
        %927 = vmatpush1.bf16.msra.mxu0 %v891
        %928 = vmatprep.subr.bf16.mxu0 0
        %929 = vmatpush1.bf16.msra.mxu0 %v892
        %930 = vmatprep.subr.bf16.mxu0 0
        %931 = vmatpush1.bf16.msra.mxu0 %v893
        %932 = vmatprep.mubr.bf16.mxu0 %v877
        %933 = vmatmul.mubr.bf16.gmra.mrb[0].mxu0 %v876
        %v934 = vpop.f32.mrb[0].mxu0
        %v935 = vadd.f32 %v898, %v934
        %v936 = vpop.f32.mrb[0].mxu0
        %v937 = vpop.f32.mrb[0].mxu0
        %v938 = vpop.f32.mrb[0].mxu0
        %939 = vdwg.mxu0
        %v940 = vmax.f32 %v935, 0.0
        %v941 = vld [vmem:[%s9] sm:$0xff]
        %v942 = vld [vmem:[%s9 + $0x8] sm:$0xff]
        %v943 = vld [vmem:[%s9 + $0x10] sm:$0xff]
        %v944 = vld [vmem:[%s9 + $0x18] sm:$0xff]
        %v945 = vld [vmem:[%s9 + $0x20] sm:$0xff]
        %v946 = vld [vmem:[%s9 + $0x28] sm:$0xff]
        %v947 = vld [vmem:[%s9 + $0x30] sm:$0xff]
        %v948 = vld [vmem:[%s9 + $0x38] sm:$0xff]
        %v949 = vld [vmem:[%s9 + $0x40] sm:$0xff]
        %v950 = vld [vmem:[%s9 + $0x48] sm:$0xff]
        %v951 = vld [vmem:[%s9 + $0x50] sm:$0xff]
        %v952 = vld [vmem:[%s9 + $0x58] sm:$0xff]
        %v953 = vld [vmem:[%s9 + $0x60] sm:$0xff]
        %v954 = vld [vmem:[%s9 + $0x68] sm:$0xff]
        %v955 = vld [vmem:[%s9 + $0x70] sm:$0xff]
        %v956 = vld [vmem:[%s9 + $0x78] sm:$0xff]
        %v957 = vld [vmem:[%s10] sm:$0x1]
        %v958 = vpack.c.bf16 %v940, %v940
        %v959 = vpack.c.bf16 %v942, %v941
        %v960 = vpack.c.bf16 %v944, %v943
        %v961 = vpack.c.bf16 %v946, %v945
        %v962 = vpack.c.bf16 %v948, %v947
        %v963 = vpack.c.bf16 %v950, %v949
        %v964 = vpack.c.bf16 %v952, %v951
        %v965 = vpack.c.bf16 %v954, %v953
        %v966 = vpack.c.bf16 %v956, %v955
        %v968 = vlaneseq
        %v969 = vshrl.u32 %v968, 7
        %v970 = vsub.s32 0, %v969
        %v971 = vrot.slane %v957, %v970
        %973 = vmatprep.subr.bf16.mxu0 0
        %974 = vmatpush1.bf16.msra.mxu0 %v959
        %975 = vmatprep.subr.bf16.mxu0 0
        %976 = vmatpush1.bf16.msra.mxu0 %v960
        %977 = vmatprep.subr.bf16.mxu0 0
        %978 = vmatpush1.bf16.msra.mxu0 %v961
        %979 = vmatprep.subr.bf16.mxu0 0
        %980 = vmatpush1.bf16.msra.mxu0 %v962
        %981 = vmatprep.subr.bf16.mxu0 0
        %982 = vmatpush1.bf16.msra.mxu0 %v963
        %983 = vmatprep.subr.bf16.mxu0 0
        %984 = vmatpush1.bf16.msra.mxu0 %v964
        %985 = vmatprep.subr.bf16.mxu0 0
        %986 = vmatpush1.bf16.msra.mxu0 %v965
        %987 = vmatprep.subr.bf16.mxu0 0
        %988 = vmatpush1.bf16.msra.mxu0 %v966
        %989 = vmatprep.subr.bf16.mxu0 0
        %990 = vmatpush1.bf16.msra.mxu0 0
        %991 = vmatprep.subr.bf16.mxu0 0
        %992 = vmatpush1.bf16.msra.mxu0 0
        %993 = vmatprep.subr.bf16.mxu0 0
        %994 = vmatpush1.bf16.msra.mxu0 0
        %995 = vmatprep.subr.bf16.mxu0 0
        %996 = vmatpush1.bf16.msra.mxu0 0
        %997 = vmatprep.subr.bf16.mxu0 0
        %998 = vmatpush1.bf16.msra.mxu0 0
        %999 = vmatprep.subr.bf16.mxu0 0
        %1000 = vmatpush1.bf16.msra.mxu0 0
        %1001 = vmatprep.subr.bf16.mxu0 0
        %1002 = vmatpush1.bf16.msra.mxu0 0
        %1003 = vmatprep.subr.bf16.mxu0 0
        %1004 = vmatpush1.bf16.msra.mxu0 0
        %1005 = vmatprep.mubr.bf16.mxu0 0
        %1006 = vmatmul.mubr.bf16.gmra.mrb[0].mxu0 %v958
        %v1007 = vpop.f32.mrb[0].mxu0
        %v1008 = vadd.f32 %v971, %v1007
        %v1009 = vpop.f32.mrb[0].mxu0
        %v1010 = vpop.f32.mrb[0].mxu0
        %v1011 = vpop.f32.mrb[0].mxu0
        %1012 = vdwg.mxu0
        %v1013 = vxor.u32 %v1008, 2147483648
        %v1014 = vmul.f32 %v1013, 1.442695
        %v1015 = vpow.pop %v1014
        %v1016 = vadd.f32 %v1015, 1.0
        %v1017 = vrcp.pop %v1016
        %v1018 = vmul.f32 1.0, %v1017
        %v1019 = vld [vmem:[%s11] sm:$0xff]
        %v1020 = vld [vmem:[%s11 + $0x8] sm:$0xff]
        %v1021 = vld [vmem:[%s12] sm:$0x1]
        %v1022 = vpack.c.bf16 %v1020, %v1019
        %v1024 = vlaneseq
        %v1025 = vshrl.u32 %v1024, 7
        %v1026 = vsub.s32 0, %v1025
        %v1027 = vrot.slane %v1021, %v1026
        %1029 = vmatprep.subr.bf16.mxu0 0
        %1030 = vmatpush1.bf16.msra.mxu0 %v1022
        %1031 = vmatprep.subr.bf16.mxu0 0
        %1032 = vmatpush1.bf16.msra.mxu0 0
        %1033 = vmatprep.subr.bf16.mxu0 0
        %1034 = vmatpush1.bf16.msra.mxu0 0
        %1035 = vmatprep.subr.bf16.mxu0 0
        %1036 = vmatpush1.bf16.msra.mxu0 0
        %1037 = vmatprep.subr.bf16.mxu0 0
        %1038 = vmatpush1.bf16.msra.mxu0 0
        %1039 = vmatprep.subr.bf16.mxu0 0
        %1040 = vmatpush1.bf16.msra.mxu0 0
        %1041 = vmatprep.subr.bf16.mxu0 0
        %1042 = vmatpush1.bf16.msra.mxu0 0
        %1043 = vmatprep.subr.bf16.mxu0 0
        %1044 = vmatpush1.bf16.msra.mxu0 0
        %1045 = vmatprep.subr.bf16.mxu0 0
        %1046 = vmatpush1.bf16.msra.mxu0 0
        %1047 = vmatprep.subr.bf16.mxu0 0
        %1048 = vmatpush1.bf16.msra.mxu0 0
        %1049 = vmatprep.subr.bf16.mxu0 0
        %1050 = vmatpush1.bf16.msra.mxu0 0
        %1051 = vmatprep.subr.bf16.mxu0 0
        %1052 = vmatpush1.bf16.msra.mxu0 0
        %1053 = vmatprep.subr.bf16.mxu0 0
        %1054 = vmatpush1.bf16.msra.mxu0 0
        %1055 = vmatprep.subr.bf16.mxu0 0
        %1056 = vmatpush1.bf16.msra.mxu0 0
        %1057 = vmatprep.subr.bf16.mxu0 0
        %1058 = vmatpush1.bf16.msra.mxu0 0
        %1059 = vmatprep.subr.bf16.mxu0 0
        %1060 = vmatpush1.bf16.msra.mxu0 0
        %1061 = vmatprep.mubr.bf16.mxu0 0
        %1062 = vmatmul.mubr.bf16.gmra.mrb[0].mxu0 %v646
        %v1063 = vpop.f32.mrb[0].mxu0
        %v1064 = vadd.f32 %v1027, %v1063
        %v1065 = vpop.f32.mrb[0].mxu0
        %v1066 = vpop.f32.mrb[0].mxu0
        %v1067 = vpop.f32.mrb[0].mxu0
        %1068 = vdwg.mxu0
        %v1069 = vmax.f32 %v1064, 0.0
        %v1070 = vld [vmem:[%s13] sm:$0xff]
        %v1071 = vld [vmem:[%s13 + $0x8] sm:$0xff]
        %v1072 = vld [vmem:[%s13 + $0x10] sm:$0xff]
        %v1073 = vld [vmem:[%s13 + $0x18] sm:$0xff]
        %v1074 = vld [vmem:[%s13 + $0x20] sm:$0xff]
        %v1075 = vld [vmem:[%s13 + $0x28] sm:$0xff]
        %v1076 = vld [vmem:[%s13 + $0x30] sm:$0xff]
        %v1077 = vld [vmem:[%s13 + $0x38] sm:$0xff]
        %v1078 = vld [vmem:[%s13 + $0x40] sm:$0xff]
        %v1079 = vld [vmem:[%s13 + $0x48] sm:$0xff]
        %v1080 = vld [vmem:[%s13 + $0x50] sm:$0xff]
        %v1081 = vld [vmem:[%s13 + $0x58] sm:$0xff]
        %v1082 = vld [vmem:[%s13 + $0x60] sm:$0xff]
        %v1083 = vld [vmem:[%s13 + $0x68] sm:$0xff]
        %v1084 = vld [vmem:[%s13 + $0x70] sm:$0xff]
        %v1085 = vld [vmem:[%s13 + $0x78] sm:$0xff]
        %v1086 = vld [vmem:[%s13 + $0x80] sm:$0xff]
        %v1087 = vld [vmem:[%s13 + $0x88] sm:$0xff]
        %v1088 = vld [vmem:[%s13 + $0x90] sm:$0xff]
        %v1089 = vld [vmem:[%s13 + $0x98] sm:$0xff]
        %v1090 = vld [vmem:[%s13 + $0xa0] sm:$0xff]
        %v1091 = vld [vmem:[%s13 + $0xa8] sm:$0xff]
        %v1092 = vld [vmem:[%s13 + $0xb0] sm:$0xff]
        %v1093 = vld [vmem:[%s13 + $0xb8] sm:$0xff]
        %v1094 = vld [vmem:[%s13 + $0xc0] sm:$0xff]
        %v1095 = vld [vmem:[%s13 + $0xc8] sm:$0xff]
        %v1096 = vld [vmem:[%s13 + $0xd0] sm:$0xff]
        %v1097 = vld [vmem:[%s13 + $0xd8] sm:$0xff]
        %v1098 = vld [vmem:[%s13 + $0xe0] sm:$0xff]
        %v1099 = vld [vmem:[%s13 + $0xe8] sm:$0xff]
        %v1100 = vld [vmem:[%s13 + $0xf0] sm:$0xff]
        %v1101 = vld [vmem:[%s13 + $0xf8] sm:$0xff]
        %v1102 = vld [vmem:[%s14] sm:$0x3]
        %v1103 = vpack.c.bf16 %v1069, %v1069
        %v1104 = vpack.c.bf16 %v1072, %v1070
        %v1105 = vpack.c.bf16 %v1073, %v1071
        %v1106 = vpack.c.bf16 %v1076, %v1074
        %v1107 = vpack.c.bf16 %v1077, %v1075
        %v1108 = vpack.c.bf16 %v1080, %v1078
        %v1109 = vpack.c.bf16 %v1081, %v1079
        %v1110 = vpack.c.bf16 %v1084, %v1082
        %v1111 = vpack.c.bf16 %v1085, %v1083
        %v1112 = vpack.c.bf16 %v1088, %v1086
        %v1113 = vpack.c.bf16 %v1089, %v1087
        %v1114 = vpack.c.bf16 %v1092, %v1090
        %v1115 = vpack.c.bf16 %v1093, %v1091
        %v1116 = vpack.c.bf16 %v1096, %v1094
        %v1117 = vpack.c.bf16 %v1097, %v1095
        %v1118 = vpack.c.bf16 %v1100, %v1098
        %v1119 = vpack.c.bf16 %v1101, %v1099
        %v1121 = vlaneseq
        %v1122 = vshrl.u32 %v1121, 7
        %v1123 = vsub.s32 0, %v1122
        %v1124 = vrot.slane %v1102, %v1123
        %v1125 = vlaneseq
        %v1126 = vshrl.u32 %v1125, 7
        %v1127 = vsub.s32 1, %v1126
        %v1128 = vrot.slane %v1102, %v1127
        %1131 = vmatprep.subr.bf16.mxu0 %v1105
        %1132 = vmatpush1.bf16.msra.mxu0 %v1104
        %1133 = vmatprep.subr.bf16.mxu0 %v1107
        %1134 = vmatpush1.bf16.msra.mxu0 %v1106
        %1135 = vmatprep.subr.bf16.mxu0 %v1109
        %1136 = vmatpush1.bf16.msra.mxu0 %v1108
        %1137 = vmatprep.subr.bf16.mxu0 %v1111
        %1138 = vmatpush1.bf16.msra.mxu0 %v1110
        %1139 = vmatprep.subr.bf16.mxu0 %v1113
        %1140 = vmatpush1.bf16.msra.mxu0 %v1112
        %1141 = vmatprep.subr.bf16.mxu0 %v1115
        %1142 = vmatpush1.bf16.msra.mxu0 %v1114
        %1143 = vmatprep.subr.bf16.mxu0 %v1117
        %1144 = vmatpush1.bf16.msra.mxu0 %v1116
        %1145 = vmatprep.subr.bf16.mxu0 %v1119
        %1146 = vmatpush1.bf16.msra.mxu0 %v1118
        %1147 = vmatprep.subr.bf16.mxu0 0
        %1148 = vmatpush1.bf16.msra.mxu0 0
        %1149 = vmatprep.subr.bf16.mxu0 0
        %1150 = vmatpush1.bf16.msra.mxu0 0
        %1151 = vmatprep.subr.bf16.mxu0 0
        %1152 = vmatpush1.bf16.msra.mxu0 0
        %1153 = vmatprep.subr.bf16.mxu0 0
        %1154 = vmatpush1.bf16.msra.mxu0 0
        %1155 = vmatprep.subr.bf16.mxu0 0
        %1156 = vmatpush1.bf16.msra.mxu0 0
        %1157 = vmatprep.subr.bf16.mxu0 0
        %1158 = vmatpush1.bf16.msra.mxu0 0
        %1159 = vmatprep.subr.bf16.mxu0 0
        %1160 = vmatpush1.bf16.msra.mxu0 0
        %1161 = vmatprep.subr.bf16.mxu0 0
        %1162 = vmatpush1.bf16.msra.mxu0 0
        %1163 = vmatprep.mubr.bf16.mxu0 0
        %1164 = vmatmul.mubr.bf16.gmra.mrb[0].mxu0 %v1103
        %v1165 = vpop.f32.mrb[0].mxu0
        %v1166 = vadd.f32 %v1124, %v1165
        %v1167 = vpop.f32.mrb[0].mxu0
        %v1168 = vadd.f32 %v1128, %v1167
        %v1169 = vpop.f32.mrb[0].mxu0
        %v1170 = vpop.f32.mrb[0].mxu0
        %1171 = vdwg.mxu0
        %v1172 = vmax.f32 %v1166, 0.0
        %v1173 = vmax.f32 %v1168, 0.0
        %v1174 = vld [vmem:[%s15] sm:$0xff]
        %v1175 = vld [vmem:[%s15 + $0x8] sm:$0xff]
        %v1176 = vld [vmem:[%s15 + $0x10] sm:$0xff]
        %v1177 = vld [vmem:[%s15 + $0x18] sm:$0xff]
        %v1178 = vld [vmem:[%s15 + $0x20] sm:$0xff]
        %v1179 = vld [vmem:[%s15 + $0x28] sm:$0xff]
        %v1180 = vld [vmem:[%s15 + $0x30] sm:$0xff]
        %v1181 = vld [vmem:[%s15 + $0x38] sm:$0xff]
        %v1182 = vld [vmem:[%s15 + $0x40] sm:$0xff]
        %v1183 = vld [vmem:[%s15 + $0x48] sm:$0xff]
        %v1184 = vld [vmem:[%s15 + $0x50] sm:$0xff]
        %v1185 = vld [vmem:[%s15 + $0x58] sm:$0xff]
        %v1186 = vld [vmem:[%s15 + $0x60] sm:$0xff]
        %v1187 = vld [vmem:[%s15 + $0x68] sm:$0xff]
        %v1188 = vld [vmem:[%s15 + $0x70] sm:$0xff]
        %v1189 = vld [vmem:[%s15 + $0x78] sm:$0xff]
        %v1190 = vld [vmem:[%s15 + $0x80] sm:$0xff]
        %v1191 = vld [vmem:[%s15 + $0x88] sm:$0xff]
        %v1192 = vld [vmem:[%s15 + $0x90] sm:$0xff]
        %v1193 = vld [vmem:[%s15 + $0x98] sm:$0xff]
        %v1194 = vld [vmem:[%s15 + $0xa0] sm:$0xff]
        %v1195 = vld [vmem:[%s15 + $0xa8] sm:$0xff]
        %v1196 = vld [vmem:[%s15 + $0xb0] sm:$0xff]
        %v1197 = vld [vmem:[%s15 + $0xb8] sm:$0xff]
        %v1198 = vld [vmem:[%s15 + $0xc0] sm:$0xff]
        %v1199 = vld [vmem:[%s15 + $0xc8] sm:$0xff]
        %v1200 = vld [vmem:[%s15 + $0xd0] sm:$0xff]
        %v1201 = vld [vmem:[%s15 + $0xd8] sm:$0xff]
        %v1202 = vld [vmem:[%s15 + $0xe0] sm:$0xff]
        %v1203 = vld [vmem:[%s15 + $0xe8] sm:$0xff]
        %v1204 = vld [vmem:[%s15 + $0xf0] sm:$0xff]
        %v1205 = vld [vmem:[%s15 + $0xf8] sm:$0xff]
        %v1206 = vld [vmem:[%s16] sm:$0x1]
        %v1207 = vpack.c.bf16 %v1172, %v1172
        %v1208 = vpack.c.bf16 %v1173, %v1173
        %v1209 = vpack.c.bf16 %v1175, %v1174
        %v1210 = vpack.c.bf16 %v1177, %v1176
        %v1211 = vpack.c.bf16 %v1179, %v1178
        %v1212 = vpack.c.bf16 %v1181, %v1180
        %v1213 = vpack.c.bf16 %v1183, %v1182
        %v1214 = vpack.c.bf16 %v1185, %v1184
        %v1215 = vpack.c.bf16 %v1187, %v1186
        %v1216 = vpack.c.bf16 %v1189, %v1188
        %v1217 = vpack.c.bf16 %v1191, %v1190
        %v1218 = vpack.c.bf16 %v1193, %v1192
        %v1219 = vpack.c.bf16 %v1195, %v1194
        %v1220 = vpack.c.bf16 %v1197, %v1196
        %v1221 = vpack.c.bf16 %v1199, %v1198
        %v1222 = vpack.c.bf16 %v1201, %v1200
        %v1223 = vpack.c.bf16 %v1203, %v1202
        %v1224 = vpack.c.bf16 %v1205, %v1204
        %v1226 = vlaneseq
        %v1227 = vshrl.u32 %v1226, 7
        %v1228 = vsub.s32 0, %v1227
        %v1229 = vrot.slane %v1206, %v1228
        %1231 = vmatprep.subr.bf16.mxu0 0
        %1232 = vmatpush1.bf16.msra.mxu0 %v1209
        %1233 = vmatprep.subr.bf16.mxu0 0
        %1234 = vmatpush1.bf16.msra.mxu0 %v1210
        %1235 = vmatprep.subr.bf16.mxu0 0
        %1236 = vmatpush1.bf16.msra.mxu0 %v1211
        %1237 = vmatprep.subr.bf16.mxu0 0
        %1238 = vmatpush1.bf16.msra.mxu0 %v1212
        %1239 = vmatprep.subr.bf16.mxu0 0
        %1240 = vmatpush1.bf16.msra.mxu0 %v1213
        %1241 = vmatprep.subr.bf16.mxu0 0
        %1242 = vmatpush1.bf16.msra.mxu0 %v1214
        %1243 = vmatprep.subr.bf16.mxu0 0
        %1244 = vmatpush1.bf16.msra.mxu0 %v1215
        %1245 = vmatprep.subr.bf16.mxu0 0
        %1246 = vmatpush1.bf16.msra.mxu0 %v1216
        %1247 = vmatprep.subr.bf16.mxu0 0
        %1248 = vmatpush1.bf16.msra.mxu0 %v1217
        %1249 = vmatprep.subr.bf16.mxu0 0
        %1250 = vmatpush1.bf16.msra.mxu0 %v1218
        %1251 = vmatprep.subr.bf16.mxu0 0
        %1252 = vmatpush1.bf16.msra.mxu0 %v1219
        %1253 = vmatprep.subr.bf16.mxu0 0
        %1254 = vmatpush1.bf16.msra.mxu0 %v1220
        %1255 = vmatprep.subr.bf16.mxu0 0
        %1256 = vmatpush1.bf16.msra.mxu0 %v1221
        %1257 = vmatprep.subr.bf16.mxu0 0
        %1258 = vmatpush1.bf16.msra.mxu0 %v1222
        %1259 = vmatprep.subr.bf16.mxu0 0
        %1260 = vmatpush1.bf16.msra.mxu0 %v1223
        %1261 = vmatprep.subr.bf16.mxu0 0
        %1262 = vmatpush1.bf16.msra.mxu0 %v1224
        %1263 = vmatprep.mubr.bf16.mxu0 %v1208
        %1264 = vmatmul.mubr.bf16.gmra.mrb[0].mxu0 %v1207
        %v1265 = vpop.f32.mrb[0].mxu0
        %v1266 = vadd.f32 %v1229, %v1265
        %v1267 = vpop.f32.mrb[0].mxu0
        %v1268 = vpop.f32.mrb[0].mxu0
        %v1269 = vpop.f32.mrb[0].mxu0
        %1270 = vdwg.mxu0
        %v1271 = vmax.f32 %v1266, 0.0
        %v1272 = vld [vmem:[%s17] sm:$0xff]
        %v1273 = vld [vmem:[%s17 + $0x8] sm:$0xff]
        %v1274 = vld [vmem:[%s17 + $0x10] sm:$0xff]
        %v1275 = vld [vmem:[%s17 + $0x18] sm:$0xff]
        %v1276 = vld [vmem:[%s17 + $0x20] sm:$0xff]
        %v1277 = vld [vmem:[%s17 + $0x28] sm:$0xff]
        %v1278 = vld [vmem:[%s17 + $0x30] sm:$0xff]
        %v1279 = vld [vmem:[%s17 + $0x38] sm:$0xff]
        %v1280 = vld [vmem:[%s17 + $0x40] sm:$0xff]
        %v1281 = vld [vmem:[%s17 + $0x48] sm:$0xff]
        %v1282 = vld [vmem:[%s17 + $0x50] sm:$0xff]
        %v1283 = vld [vmem:[%s17 + $0x58] sm:$0xff]
        %v1284 = vld [vmem:[%s17 + $0x60] sm:$0xff]
        %v1285 = vld [vmem:[%s17 + $0x68] sm:$0xff]
        %v1286 = vld [vmem:[%s17 + $0x70] sm:$0xff]
        %v1287 = vld [vmem:[%s17 + $0x78] sm:$0xff]
        %v1288 = vld [vmem:[%s18] sm:$0x1]
        %v1289 = vpack.c.bf16 %v1271, %v1271
        %v1290 = vpack.c.bf16 %v1273, %v1272
        %v1291 = vpack.c.bf16 %v1275, %v1274
        %v1292 = vpack.c.bf16 %v1277, %v1276
        %v1293 = vpack.c.bf16 %v1279, %v1278
        %v1294 = vpack.c.bf16 %v1281, %v1280
        %v1295 = vpack.c.bf16 %v1283, %v1282
        %v1296 = vpack.c.bf16 %v1285, %v1284
        %v1297 = vpack.c.bf16 %v1287, %v1286
        %v1299 = vlaneseq
        %v1300 = vshrl.u32 %v1299, 7
        %v1301 = vsub.s32 0, %v1300
        %v1302 = vrot.slane %v1288, %v1301
        %1304 = vmatprep.subr.bf16.mxu0 0
        %1305 = vmatpush1.bf16.msra.mxu0 %v1290
        %1306 = vmatprep.subr.bf16.mxu0 0
        %1307 = vmatpush1.bf16.msra.mxu0 %v1291
        %1308 = vmatprep.subr.bf16.mxu0 0
        %1309 = vmatpush1.bf16.msra.mxu0 %v1292
        %1310 = vmatprep.subr.bf16.mxu0 0
        %1311 = vmatpush1.bf16.msra.mxu0 %v1293
        %1312 = vmatprep.subr.bf16.mxu0 0
        %1313 = vmatpush1.bf16.msra.mxu0 %v1294
        %1314 = vmatprep.subr.bf16.mxu0 0
        %1315 = vmatpush1.bf16.msra.mxu0 %v1295
        %1316 = vmatprep.subr.bf16.mxu0 0
        %1317 = vmatpush1.bf16.msra.mxu0 %v1296
        %1318 = vmatprep.subr.bf16.mxu0 0
        %1319 = vmatpush1.bf16.msra.mxu0 %v1297
        %1320 = vmatprep.subr.bf16.mxu0 0
        %1321 = vmatpush1.bf16.msra.mxu0 0
        %1322 = vmatprep.subr.bf16.mxu0 0
        %1323 = vmatpush1.bf16.msra.mxu0 0
        %1324 = vmatprep.subr.bf16.mxu0 0
        %1325 = vmatpush1.bf16.msra.mxu0 0
        %1326 = vmatprep.subr.bf16.mxu0 0
        %1327 = vmatpush1.bf16.msra.mxu0 0
        %1328 = vmatprep.subr.bf16.mxu0 0
        %1329 = vmatpush1.bf16.msra.mxu0 0
        %1330 = vmatprep.subr.bf16.mxu0 0
        %1331 = vmatpush1.bf16.msra.mxu0 0
        %1332 = vmatprep.subr.bf16.mxu0 0
        %1333 = vmatpush1.bf16.msra.mxu0 0
        %1334 = vmatprep.subr.bf16.mxu0 0
        %1335 = vmatpush1.bf16.msra.mxu0 0
        %1336 = vmatprep.mubr.bf16.mxu0 0
        %1337 = vmatmul.mubr.bf16.gmra.mrb[0].mxu0 %v1289
        %v1338 = vpop.f32.mrb[0].mxu0
        %v1339 = vadd.f32 %v1302, %v1338
        %v1340 = vpop.f32.mrb[0].mxu0
        %v1341 = vpop.f32.mrb[0].mxu0
        %v1342 = vpop.f32.mrb[0].mxu0
        %1343 = vdwg.mxu0
        %v1344 = vmul.f32 %v1018, %v1339
        %1346 = vset.pattern.permute.xlu0 0
        %1347 = vperm.xlu0 %1346, %v634
        %v1348 = vpop.permute.xlu0 %1347
        %v1350 = vmul.f32 %v1344, %v1348
        %vm1351 = vcmask 80896
        %v1352 = vsel %vm1351, %v1350, 0.0
        %v1353 = vrot.slane %v1352, 4
        %v1354 = vadd.f32 %v1352, %v1353
        %v1355 = vrot.slane %v1354, 2
        %v1356 = vadd.f32 %v1354, %v1355
        %v1357 = vrot.slane %v1356, 1
        %v1358 = vadd.f32 %v1356, %v1357
        %vm1359 = vcmask 73728
        %1360 = vst.msk [vmem:[%s618] sm:$0x1] %vm1359, %v1358
        %s1361 = sand.u32 %s455, 1
        %s1362 = scalar_lea.sflag [#allocation3], %s1361
        %s1363 = sand.u32 %s455, 1
        %s1364 = scalar_lea.vmem [#allocation2], %s1363
        // Predicated region
        $region97: #{mpnn_linear_forward.7} parent=95 // pred_check
          %p1365 = pneg %p465
        $region98: #{mpnn_linear_forward.7} parent=95 // pred_check_branch
          %1367 = sbr.rel (%p1365) target = $region100
        $region99: #{mpnn_linear_forward.7} parent=95 // pred_region
          %s1369 = ssub.s32 16, 16
          %1370 = vsyncadd %s1362, %s1369
          %s1371 = smul.addr %s33, 16
          %s1372 = scalar_lea.hbm %s19, %s1371
          %s1374 = sshll.u32 %s1364, 4
          %s1375 = int_to_ptr.vmem [resolvable:$true] %s1374
          %1377 = dma.vmem_to_hbm [thread:$0]  %s1375, 16, %s1372, %s1362
        $region100: #{mpnn_linear_forward.7} parent=95 // pred_fallthru
          _
      $region96: #{mpnn_linear_forward.7} parent=5 // pred_fallthru
        _
      %p1378 = scmp.le.s32.totalorder 2, %s28
      // Predicated region
      $region101: #{mpnn_linear_forward.7} parent=5 // pred_check
        %p1379 = pneg %p1378
      $region102: #{mpnn_linear_forward.7} parent=5 // pred_check_branch
        %1381 = sbr.rel (%p1379) target = $region104
      $region103: #{mpnn_linear_forward.7} parent=5 // pred_region
        %s1382 = ssub.s32 %s28, 2
        // Predicated region
        $region105: #{mpnn_linear_forward.7} parent=103 // pred_check
          %p1383 = pneg %p471
        $region106: #{mpnn_linear_forward.7} parent=103 // pred_check_branch
          %1385 = sbr.rel (%p1383) target = $region108
        $region107: #{mpnn_linear_forward.7} parent=103 // pred_region
          %s1386 = sand.u32 %s456, 1
          %s1387 = scalar_lea.sflag [#allocation3], %s1386
          %s1388 = sand.u32 %s456, 1
          %s1389 = scalar_lea.vmem [#allocation2], %s1388
          %1390 = dma.done %s1387, 16
        $region108: #{mpnn_linear_forward.7} parent=103 // pred_fallthru
          _
      $region104: #{mpnn_linear_forward.7} parent=5 // pred_fallthru
        _
    $region6: #{mpnn_linear_forward.7} parent=1 // loop_footer
      %s32 = sadd.s32 1, %s28
    $region7: #{mpnn_linear_forward.7} parent=1 // loop_footer_branch
      %27 = sbr.rel target = $region3
    $region8: #{mpnn_linear_forward.7} parent=1 // loop_exit
      _
    %1391 = vsyncpa [#allocation3], 1
    %s1392 = scalar_lea.sflag [#allocation3], 1
    %1393 = vsyncpa %s1392, 1

</llo_original>
